<compile_context>
chip_gen: v5e
topology: v5e:2x2
jax: 0.10.0
libtpu: 0.0.40
codegen_flags: <defaults>
</compile_context>

<pallas_src>
import math
import numpy as np
import jax
import jax.numpy as jnp
from jax.experimental import pallas as pl
from jax.experimental.pallas import tpu as pltpu


# ----------------------------------------------------------------------------
# Fused per-branch kernel
# ----------------------------------------------------------------------------

def _make_branch_kernel(N, H, W, Cin, C1, C2, F1, do_pool):
    """Returns a kernel computing conv1->conv2->[pool]->fc1->fc2->pred->l2norm.

    Layouts inside the kernel (all f32, all in VMEM):
      x_ref    : (N, H, W*Cin)            lane-dense input rows
      w1_ref   : (3, W*Cin, W*C1)         banded conv1 weight (per vertical tap)
      w2_ref   : (3, W*C1, W*C2)          banded conv2 weight (surrnd: lane-permuted)
      wf1_ref  : (Hp, Wp*C2, F1)          fc1 weight, torch-flatten order folded in
      scratch  : pad1 (N,H+2,W*Cin), pad2 (N,H+2,W*C1), y2s (N,H,W*C2)
    """
    Hp, Wp = (H // 2, W // 2) if do_pool else (H, W)
    L0, L1, L2 = W * Cin, W * C1, W * C2

    def kernel(x_ref, w1_ref, b1_ref, w2_ref, b2_ref,
               wf1_ref, bf1_ref, wf2_ref, bf2_ref, wpr_ref, bpr_ref,
               o_ref, pad1_ref, pad2_ref, y2_ref):
        # ---- conv1: 3x3 SAME conv as 3 lane-dense banded matmuls + bias + relu
        pad1_ref[...] = jnp.zeros((N, H + 2, L0), jnp.float32)
        pad1_ref[:, 1:H + 1, :] = x_ref[...]
        acc1 = jnp.zeros((N * H, L1), jnp.float32)
        for dy in range(3):
            xs = pad1_ref[:, dy:dy + H, :].reshape(N * H, L0)
            acc1 = acc1 + jnp.dot(xs, w1_ref[dy],
                                  preferred_element_type=jnp.float32)
        y1 = jnp.maximum(acc1 + b1_ref[...], 0.0)            # (N*H, W*C1)

        # ---- conv2 (same scheme) ----
        pad2_ref[...] = jnp.zeros((N, H + 2, L1), jnp.float32)
        pad2_ref[:, 1:H + 1, :] = y1.reshape(N, H, L1)
        acc2 = jnp.zeros((N * H, L2), jnp.float32)
        for dy in range(3):
            xs = pad2_ref[:, dy:dy + H, :].reshape(N * H, L1)
            acc2 = acc2 + jnp.dot(xs, w2_ref[dy],
                                  preferred_element_type=jnp.float32)
        y2 = jnp.maximum(acc2 + b2_ref[...], 0.0)            # (N*H, W*C2)

        # ---- flatten + fc1, with the 2x2/2 max-pool fused into the loop ----
        y2_ref[...] = y2.reshape(N, H, L2)
        accf = jnp.zeros((N, F1), jnp.float32)
        for h in range(Hp):
            if do_pool:
                r0 = y2_ref[:, 2 * h, :]                     # rows 2h / 2h+1
                r1 = y2_ref[:, 2 * h + 1, :]
                v = jnp.maximum(r0, r1)                      # vertical max
                # conv2's output lanes were permuted offline so horizontal
                # pooling partners sit in opposite 128-lane halves.
                row = jnp.maximum(v[:, :Wp * C2], v[:, Wp * C2:])
            else:
                row = y2_ref[:, h, :]                        # (N, Wp*C2)
            accf = accf + jnp.dot(row, wf1_ref[h],
                                  preferred_element_type=jnp.float32)
        z = jnp.maximum(accf + bf1_ref[...], 0.0)            # fc1 + relu

        # ---- fc2 + relu ----
        z = jnp.maximum(jnp.dot(z, wf2_ref[...],
                                preferred_element_type=jnp.float32)
                        + bf2_ref[...], 0.0)

        # ---- embedding prediction + L2 normalize (rsqrt on the EUP) ----
        e = jnp.dot(z, wpr_ref[...],
                    preferred_element_type=jnp.float32) + bpr_ref[...]
        ss = jnp.sum(e * e, axis=-1, keepdims=True)
        inv = jax.lax.rsqrt(jnp.maximum(ss, 1e-24))          # == 1/max(||e||,1e-12)
        o_ref[...] = e * inv

    return kernel


def run_branch(x_nchw, bp, do_pool):
    """Run one fully-fused branch.  x_nchw: (N, Cin, H, W) f32."""
    N, Cin, H, W = x_nchw.shape
    C1 = bp["b1"].shape[1] // W
    C2 = bp["b2"].shape[1] // W
    F1 = bp["wf1"].shape[-1]
    EMB = bp["wpr"].shape[-1]
    # one tiny layout transform at the kernel boundary: NCHW -> (N, H, W*Cin)
    x = jnp.transpose(x_nchw, (0, 2, 3, 1)).reshape(N, H, W * Cin)
    kernel = _make_branch_kernel(N, H, W, Cin, C1, C2, F1, do_pool)
    return pl.pallas_call(
        kernel,
        out_shape=jax.ShapeDtypeStruct((N, EMB), jnp.float32),
        scratch_shapes=[
            pltpu.VMEM((N, H + 2, W * Cin), jnp.float32),   # conv1 padded rows
            pltpu.VMEM((N, H + 2, W * C1), jnp.float32),    # conv2 padded rows
            pltpu.VMEM((N, H, W * C2), jnp.float32),        # conv2 output slab
        ],
    )(x, bp["w1"], bp["b1"], bp["w2"], bp["b2"],
      bp["wf1"], bp["bf1"], bp["wf2"], bp["bf2"], bp["wpr"], bp["bpr"])


# ----------------------------------------------------------------------------
# One-time (offline) parameter packing: banded conv weights, lane permutations
# ----------------------------------------------------------------------------

def _expand_conv_weight(w, Wc, parity_out=False):
    """(3,3,Cin,Cout) -> (3, Wc*Cin, Wc*Cout) banded weight (horizontal taps and
    horizontal zero-padding baked in).  If parity_out, permute output lanes so
    that 2x2 horizontal pooling partners land in opposite lane halves."""
    w = np.asarray(w, np.float32)
    _, _, Cin, Cout = w.shape
    e = np.zeros((3, Wc * Cin, Wc * Cout), np.float32)
    for dy in range(3):
        for wo in range(Wc):
            for dx in range(3):
                wi = wo + dx - 1
                if 0 <= wi < Wc:
                    e[dy, wi * Cin:(wi + 1) * Cin,
                      wo * Cout:(wo + 1) * Cout] = w[dy, dx]
    if parity_out:
        half = (Wc // 2) * Cout
        perm = np.empty(Wc * Cout, np.int64)   # perm[new] = old
        for wo in range(Wc):
            for co in range(Cout):
                perm[(wo % 2) * half + (wo // 2) * Cout + co] = wo * Cout + co
        e = e[:, :, perm]
    return jnp.asarray(e)


def _permute_fc1_weight(wf1, Hp, Wp, C):
    """Reorder fc1 rows so the kernel can contract directly against the
    lane-dense (h, w*C+c) activation layout while matching torch.flatten's
    NCHW (c-major) order.  (Hp*Wp*C, F) -> (Hp, Wp*C, F)."""
    w = np.asarray(wf1, np.float32)
    src = np.empty(Hp * Wp * C, np.int64)
    for h in range(Hp):
        for ww in range(Wp):
            for c in range(C):
                src[(h * Wp + ww) * C + c] = c * Hp * Wp + h * Wp + ww
    return jnp.asarray(w[src].reshape(Hp, Wp * C, w.shape[1]))


def pack_params(params, Cin, H, W):
    """Pack raw (torch-layout) params into the fused-kernel layout.
    Assumes the synthetic config: 2 convs + 2 fcs per branch, square inputs."""
    def pack_branch(convs, fcs, pred, conv_h, conv_w, pool):
        (w1, b1), (w2, b2) = convs
        (wf1, bf1), (wf2, bf2) = fcs
        wpr, bpr = pred
        C2 = w2.shape[-1]
        Hp, Wp = (conv_h // 2, conv_w // 2) if pool else (conv_h, conv_w)
        return {
            "w1": _expand_conv_weight(w1, conv_w),
            "b1": jnp.tile(b1, conv_w)[None, :],
            "w2": _expand_conv_weight(w2, conv_w, parity_out=pool),
            "b2": jnp.tile(b2, conv_w)[None, :],   # permutation-invariant tile
            "wf1": _permute_fc1_weight(wf1, Hp, Wp, C2),
            "bf1": bf1[None, :],
            "wf2": wf2,
            "bf2": bf2[None, :],
            "wpr": wpr,
            "bpr": bpr[None, :],
        }

    app = pack_branch(params["app_convs"], params["app_fcs"],
                      params["pred_app"], H, W, pool=False)
    sur = pack_branch(params["sur_convs"], params["sur_fcs"],
                      params["pred_sur"], 2 * H, 2 * W, pool=True)
    return {"app": app, "sur": sur}


# ----------------------------------------------------------------------------
# Synthetic parameter construction (deterministic)
# ----------------------------------------------------------------------------

def init_params(key, in_channels, H, W, num_conv, conv_dim, num_fc, fc_dim,
                emb_dim):
    keys = iter(jax.random.split(key, 64))

    def conv_p(cin, cout):
        w = jax.random.normal(next(keys), (3, 3, cin, cout), jnp.float32)
        w = w * (1.0 / math.sqrt(9 * cin))
        b = jax.random.normal(next(keys), (cout,), jnp.float32) * 0.01
        return w, b

    def lin_p(din, dout):
        w = jax.random.normal(next(keys), (din, dout), jnp.float32)
        w = w * (1.0 / math.sqrt(din))
        b = jax.random.normal(next(keys), (dout,), jnp.float32) * 0.01
        return w, b

    params = {"app_convs": [], "sur_convs": [], "app_fcs": [], "sur_fcs": []}
    cin = in_channels
    for _ in range(num_conv):
        params["app_convs"].append(conv_p(cin, conv_dim))
        cin = conv_dim
    cin = in_channels
    for _ in range(num_conv):
        params["sur_convs"].append(conv_p(cin, conv_dim))
        cin = conv_dim
    # like the PyTorch module, fcs_sur reuses prod(_output_size_app)
    fc_in = conv_dim * H * W
    din = fc_in
    for _ in range(num_fc):
        params["app_fcs"].append(lin_p(din, fc_dim))
        din = fc_dim
    din = fc_in
    for _ in range(num_fc):
        params["sur_fcs"].append(lin_p(din, fc_dim))
        din = fc_dim
    params["pred_app"] = lin_p(fc_dim, emb_dim)
    params["pred_sur"] = lin_p(fc_dim, emb_dim)
    return params


# ----------------------------------------------------------------------------
# Forward pass
# ----------------------------------------------------------------------------

@jax.jit
def _forward_pair(packed, center_nchw, surrnd_nchw):
    emb_c = run_branch(center_nchw, packed["app"], do_pool=False)
    emb_s = run_branch(surrnd_nchw, packed["sur"], do_pool=True)
    return emb_c, emb_s


def embedding_head_forward(packed, center_nchw, surrnd_nchw,
                           num_boxes_per_image):
    emb_c, emb_s = _forward_pair(packed, center_nchw, surrnd_nchw)
    # torch.split(dim=0) per image -- pure glue.
    # TODO(synk): detectron2 Instances attribute assignment has no array
    # equivalent; the per-image embedding splits are returned as plain lists.
    splits_c, splits_s, off = [], [], 0
    for n in num_boxes_per_image:
        splits_c.append(emb_c[off:off + n])
        splits_s.append(emb_s[off:off + n])
        off += n
    return splits_c, splits_s, emb_c, emb_s


# ----------------------------------------------------------------------------
# Pure-JAX reference (uses the raw, unpacked params) for correctness check
# ----------------------------------------------------------------------------

def ref_forward(params, center_nchw, surrnd_nchw):
    def conv_ref(x, w, b):  # x NCHW, w (3,3,Cin,Cout)
        w_oihw = jnp.transpose(w, (3, 2, 0, 1))
        y = jax.lax.conv_general_dilated(
            x, w_oihw, (1, 1), "SAME",
            dimension_numbers=("NCHW", "OIHW", "NCHW"))
        return jnp.maximum(y + b[None, :, None, None], 0.0)

    def pool_ref(x):  # NCHW 2x2/2
        a = x[:, :, 0::2, 0::2]; b = x[:, :, 0::2, 1::2]
        c = x[:, :, 1::2, 0::2]; d = x[:, :, 1::2, 1::2]
        return jnp.maximum(jnp.maximum(a, b), jnp.maximum(c, d))

    N = center_nchw.shape[0]
    c = center_nchw
    for w, b in params["app_convs"]:
        c = conv_ref(c, w, b)
    c = c.reshape(N, -1)
    for w, b in params["app_fcs"]:
        c = jnp.maximum(c @ w + b, 0.0)
    s = surrnd_nchw
    for w, b in params["sur_convs"]:
        s = conv_ref(s, w, b)
    s = pool_ref(s).reshape(N, -1)
    for w, b in params["sur_fcs"]:
        s = jnp.maximum(s @ w + b, 0.0)
    wc, bc = params["pred_app"]; ws, bs = params["pred_sur"]
    ec = c @ wc + bc
    es = s @ ws + bs
    ec = ec / jnp.maximum(jnp.linalg.norm(ec, axis=1, keepdims=True), 1e-12)
    es = es / jnp.maximum(jnp.linalg.norm(es, axis=1, keepdims=True), 1e-12)
    return ec, es


# ----------------------------------------------------------------------------
if __name__ == "__main__":
    # synthetic config
    NUM_CONV, CONV_DIM = 2, 8
    NUM_FC, FC_DIM, EMB_DIM = 2, 32, 16
    N, CIN, H, W = 2, 4, 16, 16

    key = jax.random.PRNGKey(0)
    k_c, k_s, k_p = jax.random.split(key, 3)
    x_center = jax.random.normal(k_c, (N, CIN, H, W), jnp.float32)
    x_surrnd = jax.random.normal(k_s, (N, CIN, 2 * H, 2 * W), jnp.float32)
    params = init_params(k_p, CIN, H, W, NUM_CONV, CONV_DIM, NUM_FC, FC_DIM,
                         EMB_DIM)
    packed = pack_params(params, CIN, H, W)

    num_boxes_per_image = [1, 1]  # two "images", one box each
    splits_c, splits_s, emb_c, emb_s = embedding_head_forward(
        packed, x_center, x_surrnd, num_boxes_per_image)
    emb_c = jax.block_until_ready(emb_c)
    emb_s = jax.block_until_ready(emb_s)

    ref_c, ref_s = ref_forward(params, x_center, x_surrnd)
    assert emb_c.shape == (N, EMB_DIM) and emb_s.shape == (N, EMB_DIM)
    assert jnp.allclose(emb_c, ref_c, rtol=1e-3, atol=1e-3)
    assert jnp.allclose(emb_s, ref_s, rtol=1e-3, atol=1e-3)

    print("KERNEL_OK")
</pallas_src>

<mosaic_0001>
module attributes {stable_mosaic.version = 11 : i64} {
  func.func @kernel(%arg0: memref<2x16x64xf32, #tpu.memory_space<vmem>>, %arg1: memref<3x64x128xf32, #tpu.memory_space<vmem>>, %arg2: memref<1x128xf32, #tpu.memory_space<vmem>>, %arg3: memref<3x128x128xf32, #tpu.memory_space<vmem>>, %arg4: memref<1x128xf32, #tpu.memory_space<vmem>>, %arg5: memref<16x128x32xf32, #tpu.memory_space<vmem>>, %arg6: memref<1x32xf32, #tpu.memory_space<vmem>>, %arg7: memref<32x32xf32, #tpu.memory_space<vmem>>, %arg8: memref<1x32xf32, #tpu.memory_space<vmem>>, %arg9: memref<32x16xf32, #tpu.memory_space<vmem>>, %arg10: memref<1x16xf32, #tpu.memory_space<vmem>>, %arg11: memref<2x16xf32, #tpu.memory_space<vmem>>, %arg12: memref<2x18x64xf32, #tpu.memory_space<vmem>>, %arg13: memref<2x18x128xf32, #tpu.memory_space<vmem>>, %arg14: memref<2x16x128xf32, #tpu.memory_space<vmem>>) attributes {dimension_semantics = [], scalar_prefetch = 0 : i64, scratch_operands = 3 : i64, tpu.core_type = #tpu.core_type<tc>} {
    %cst = arith.constant 0.000000e+00 : f32
    %0 = vector.broadcast %cst : f32 to vector<2x18x64xf32>
    %c0 = arith.constant 0 : index
    %c0_0 = arith.constant 0 : index
    %c0_1 = arith.constant 0 : index
    %1 = vector.load %arg12[%c0, %c0_0, %c0_1] : memref<2x18x64xf32, #tpu.memory_space<vmem>>, vector<2x18x64xf32>
    tpu.vector_store %arg12[%c0, %c0_0, %c0_1], %0 {strides = array<i32>} : memref<2x18x64xf32, #tpu.memory_space<vmem>>, vector<2x18x64xf32>,
    %c0_2 = arith.constant 0 : index
    %c0_3 = arith.constant 0 : index
    %c0_4 = arith.constant 0 : index
    %2 = vector.load %arg0[%c0_2, %c0_3, %c0_4] : memref<2x16x64xf32, #tpu.memory_space<vmem>>, vector<2x16x64xf32>
    %c0_5 = arith.constant 0 : index
    %c1 = arith.constant 1 : index
    %c0_6 = arith.constant 0 : index
    %3 = vector.load %arg12[%c0_5, %c1, %c0_6] : memref<2x18x64xf32, #tpu.memory_space<vmem>>, vector<2x16x64xf32>
    tpu.vector_store %arg12[%c0_5, %c1, %c0_6], %2 {strides = array<i32>} : memref<2x18x64xf32, #tpu.memory_space<vmem>>, vector<2x16x64xf32>,
    %cst_7 = arith.constant 0.000000e+00 : f32
    %4 = vector.broadcast %cst_7 : f32 to vector<32x128xf32>
    %c0_8 = arith.constant 0 : index
    %c0_9 = arith.constant 0 : index
    %c0_10 = arith.constant 0 : index
    %5 = vector.load %arg12[%c0_8, %c0_9, %c0_10] : memref<2x18x64xf32, #tpu.memory_space<vmem>>, vector<2x16x64xf32>
    %6 = vector.shape_cast %5 : vector<2x16x64xf32> to vector<32x64xf32>
    %c0_11 = arith.constant 0 : index
    %c0_12 = arith.constant 0 : index
    %c0_13 = arith.constant 0 : index
    %7 = vector.load %arg1[%c0_11, %c0_12, %c0_13] : memref<3x64x128xf32, #tpu.memory_space<vmem>>, vector<1x64x128xf32>
    %8 = vector.shape_cast %7 : vector<1x64x128xf32> to vector<64x128xf32>
    %cst_14 = arith.constant dense<0.000000e+00> : vector<32x128xf32>
    %9 = tpu.matmul %6, %8, %cst_14 {dimension_numbers = #tpu.dot_dimension_numbers<[1], [0], [0], [1], [0, 0, 1, 1], [], []>} : vector<32x64xf32>, vector<64x128xf32>, vector<32x128xf32> -> vector<32x128xf32>
    %10 = arith.addf %4, %9 : vector<32x128xf32>
    %c0_15 = arith.constant 0 : index
    %c1_16 = arith.constant 1 : index
    %c0_17 = arith.constant 0 : index
    %11 = vector.load %arg12[%c0_15, %c1_16, %c0_17] : memref<2x18x64xf32, #tpu.memory_space<vmem>>, vector<2x16x64xf32>
    %12 = vector.shape_cast %11 : vector<2x16x64xf32> to vector<32x64xf32>
    %c1_18 = arith.constant 1 : index
    %c0_19 = arith.constant 0 : index
    %c0_20 = arith.constant 0 : index
    %13 = vector.load %arg1[%c1_18, %c0_19, %c0_20] : memref<3x64x128xf32, #tpu.memory_space<vmem>>, vector<1x64x128xf32>
    %14 = vector.shape_cast %13 : vector<1x64x128xf32> to vector<64x128xf32>
    %cst_21 = arith.constant dense<0.000000e+00> : vector<32x128xf32>
    %15 = tpu.matmul %12, %14, %cst_21 {dimension_numbers = #tpu.dot_dimension_numbers<[1], [0], [0], [1], [0, 0, 1, 1], [], []>} : vector<32x64xf32>, vector<64x128xf32>, vector<32x128xf32> -> vector<32x128xf32>
    %16 = arith.addf %10, %15 : vector<32x128xf32>
    %c0_22 = arith.constant 0 : index
    %c2 = arith.constant 2 : index
    %c0_23 = arith.constant 0 : index
    %17 = vector.load %arg12[%c0_22, %c2, %c0_23] : memref<2x18x64xf32, #tpu.memory_space<vmem>>, vector<2x16x64xf32>
    %18 = vector.shape_cast %17 : vector<2x16x64xf32> to vector<32x64xf32>
    %c2_24 = arith.constant 2 : index
    %c0_25 = arith.constant 0 : index
    %c0_26 = arith.constant 0 : index
    %19 = vector.load %arg1[%c2_24, %c0_25, %c0_26] : memref<3x64x128xf32, #tpu.memory_space<vmem>>, vector<1x64x128xf32>
    %20 = vector.shape_cast %19 : vector<1x64x128xf32> to vector<64x128xf32>
    %cst_27 = arith.constant dense<0.000000e+00> : vector<32x128xf32>
    %21 = tpu.matmul %18, %20, %cst_27 {dimension_numbers = #tpu.dot_dimension_numbers<[1], [0], [0], [1], [0, 0, 1, 1], [], []>} : vector<32x64xf32>, vector<64x128xf32>, vector<32x128xf32> -> vector<32x128xf32>
    %22 = arith.addf %16, %21 : vector<32x128xf32>
    %c0_28 = arith.constant 0 : index
    %c0_29 = arith.constant 0 : index
    %23 = vector.load %arg2[%c0_28, %c0_29] : memref<1x128xf32, #tpu.memory_space<vmem>>, vector<1x128xf32>
    %24 = vector.broadcast %23 : vector<1x128xf32> to vector<32x128xf32>
    %25 = arith.addf %22, %24 : vector<32x128xf32>
    %cst_30 = arith.constant 0.000000e+00 : f32
    %26 = vector.broadcast %cst_30 : f32 to vector<32x128xf32>
    %27 = arith.maximumf %25, %26 : vector<32x128xf32>
    %cst_31 = arith.constant 0.000000e+00 : f32
    %28 = vector.broadcast %cst_31 : f32 to vector<2x18x128xf32>
    %c0_32 = arith.constant 0 : index
    %c0_33 = arith.constant 0 : index
    %c0_34 = arith.constant 0 : index
    %29 = vector.load %arg13[%c0_32, %c0_33, %c0_34] : memref<2x18x128xf32, #tpu.memory_space<vmem>>, vector<2x18x128xf32>
    tpu.vector_store %arg13[%c0_32, %c0_33, %c0_34], %28 {strides = array<i32>} : memref<2x18x128xf32, #tpu.memory_space<vmem>>, vector<2x18x128xf32>,
    %30 = vector.shape_cast %27 : vector<32x128xf32> to vector<2x16x128xf32>
    %c0_35 = arith.constant 0 : index
    %c1_36 = arith.constant 1 : index
    %c0_37 = arith.constant 0 : index
    %31 = vector.load %arg13[%c0_35, %c1_36, %c0_37] : memref<2x18x128xf32, #tpu.memory_space<vmem>>, vector<2x16x128xf32>
    tpu.vector_store %arg13[%c0_35, %c1_36, %c0_37], %30 {strides = array<i32>} : memref<2x18x128xf32, #tpu.memory_space<vmem>>, vector<2x16x128xf32>,
    %cst_38 = arith.constant 0.000000e+00 : f32
    %32 = vector.broadcast %cst_38 : f32 to vector<32x128xf32>
    %c0_39 = arith.constant 0 : index
    %c0_40 = arith.constant 0 : index
    %c0_41 = arith.constant 0 : index
    %33 = vector.load %arg13[%c0_39, %c0_40, %c0_41] : memref<2x18x128xf32, #tpu.memory_space<vmem>>, vector<2x16x128xf32>
    %34 = vector.shape_cast %33 : vector<2x16x128xf32> to vector<32x128xf32>
    %c0_42 = arith.constant 0 : index
    %c0_43 = arith.constant 0 : index
    %c0_44 = arith.constant 0 : index
    %35 = vector.load %arg3[%c0_42, %c0_43, %c0_44] : memref<3x128x128xf32, #tpu.memory_space<vmem>>, vector<1x128x128xf32>
    %36 = vector.shape_cast %35 : vector<1x128x128xf32> to vector<128x128xf32>
    %cst_45 = arith.constant dense<0.000000e+00> : vector<32x128xf32>
    %37 = tpu.matmul %34, %36, %cst_45 {dimension_numbers = #tpu.dot_dimension_numbers<[1], [0], [0], [1], [0, 0, 1, 1], [], []>} : vector<32x128xf32>, vector<128x128xf32>, vector<32x128xf32> -> vector<32x128xf32>
    %38 = arith.addf %32, %37 : vector<32x128xf32>
    %c0_46 = arith.constant 0 : index
    %c1_47 = arith.constant 1 : index
    %c0_48 = arith.constant 0 : index
    %39 = vector.load %arg13[%c0_46, %c1_47, %c0_48] : memref<2x18x128xf32, #tpu.memory_space<vmem>>, vector<2x16x128xf32>
    %40 = vector.shape_cast %39 : vector<2x16x128xf32> to vector<32x128xf32>
    %c1_49 = arith.constant 1 : index
    %c0_50 = arith.constant 0 : index
    %c0_51 = arith.constant 0 : index
    %41 = vector.load %arg3[%c1_49, %c0_50, %c0_51] : memref<3x128x128xf32, #tpu.memory_space<vmem>>, vector<1x128x128xf32>
    %42 = vector.shape_cast %41 : vector<1x128x128xf32> to vector<128x128xf32>
    %cst_52 = arith.constant dense<0.000000e+00> : vector<32x128xf32>
    %43 = tpu.matmul %40, %42, %cst_52 {dimension_numbers = #tpu.dot_dimension_numbers<[1], [0], [0], [1], [0, 0, 1, 1], [], []>} : vector<32x128xf32>, vector<128x128xf32>, vector<32x128xf32> -> vector<32x128xf32>
    %44 = arith.addf %38, %43 : vector<32x128xf32>
    %c0_53 = arith.constant 0 : index
    %c2_54 = arith.constant 2 : index
    %c0_55 = arith.constant 0 : index
    %45 = vector.load %arg13[%c0_53, %c2_54, %c0_55] : memref<2x18x128xf32, #tpu.memory_space<vmem>>, vector<2x16x128xf32>
    %46 = vector.shape_cast %45 : vector<2x16x128xf32> to vector<32x128xf32>
    %c2_56 = arith.constant 2 : index
    %c0_57 = arith.constant 0 : index
    %c0_58 = arith.constant 0 : index
    %47 = vector.load %arg3[%c2_56, %c0_57, %c0_58] : memref<3x128x128xf32, #tpu.memory_space<vmem>>, vector<1x128x128xf32>
    %48 = vector.shape_cast %47 : vector<1x128x128xf32> to vector<128x128xf32>
    %cst_59 = arith.constant dense<0.000000e+00> : vector<32x128xf32>
    %49 = tpu.matmul %46, %48, %cst_59 {dimension_numbers = #tpu.dot_dimension_numbers<[1], [0], [0], [1], [0, 0, 1, 1], [], []>} : vector<32x128xf32>, vector<128x128xf32>, vector<32x128xf32> -> vector<32x128xf32>
    %50 = arith.addf %44, %49 : vector<32x128xf32>
    %c0_60 = arith.constant 0 : index
    %c0_61 = arith.constant 0 : index
    %51 = vector.load %arg4[%c0_60, %c0_61] : memref<1x128xf32, #tpu.memory_space<vmem>>, vector<1x128xf32>
    %52 = vector.broadcast %51 : vector<1x128xf32> to vector<32x128xf32>
    %53 = arith.addf %50, %52 : vector<32x128xf32>
    %cst_62 = arith.constant 0.000000e+00 : f32
    %54 = vector.broadcast %cst_62 : f32 to vector<32x128xf32>
    %55 = arith.maximumf %53, %54 : vector<32x128xf32>
    %56 = vector.shape_cast %55 : vector<32x128xf32> to vector<2x16x128xf32>
    %c0_63 = arith.constant 0 : index
    %c0_64 = arith.constant 0 : index
    %c0_65 = arith.constant 0 : index
    %57 = vector.load %arg14[%c0_63, %c0_64, %c0_65] : memref<2x16x128xf32, #tpu.memory_space<vmem>>, vector<2x16x128xf32>
    tpu.vector_store %arg14[%c0_63, %c0_64, %c0_65], %56 {strides = array<i32>} : memref<2x16x128xf32, #tpu.memory_space<vmem>>, vector<2x16x128xf32>,
    %cst_66 = arith.constant 0.000000e+00 : f32
    %58 = vector.broadcast %cst_66 : f32 to vector<2x32xf32>
    %c0_67 = arith.constant 0 : index
    %c0_68 = arith.constant 0 : index
    %c0_69 = arith.constant 0 : index
    %59 = vector.load %arg14[%c0_67, %c0_68, %c0_69] : memref<2x16x128xf32, #tpu.memory_space<vmem>>, vector<2x1x128xf32>
    %60 = vector.shape_cast %59 : vector<2x1x128xf32> to vector<2x128xf32>
    %c0_70 = arith.constant 0 : index
    %c0_71 = arith.constant 0 : index
    %c0_72 = arith.constant 0 : index
    %61 = vector.load %arg5[%c0_70, %c0_71, %c0_72] : memref<16x128x32xf32, #tpu.memory_space<vmem>>, vector<1x128x32xf32>
    %62 = vector.shape_cast %61 : vector<1x128x32xf32> to vector<128x32xf32>
    %cst_73 = arith.constant dense<0.000000e+00> : vector<2x32xf32>
    %63 = tpu.matmul %60, %62, %cst_73 {dimension_numbers = #tpu.dot_dimension_numbers<[1], [0], [0], [1], [0, 0, 1, 1], [], []>} : vector<2x128xf32>, vector<128x32xf32>, vector<2x32xf32> -> vector<2x32xf32>
    %64 = arith.addf %58, %63 : vector<2x32xf32>
    %c0_74 = arith.constant 0 : index
    %c1_75 = arith.constant 1 : index
    %c0_76 = arith.constant 0 : index
    %65 = vector.load %arg14[%c0_74, %c1_75, %c0_76] : memref<2x16x128xf32, #tpu.memory_space<vmem>>, vector<2x1x128xf32>
    %66 = vector.shape_cast %65 : vector<2x1x128xf32> to vector<2x128xf32>
    %c1_77 = arith.constant 1 : index
    %c0_78 = arith.constant 0 : index
    %c0_79 = arith.constant 0 : index
    %67 = vector.load %arg5[%c1_77, %c0_78, %c0_79] : memref<16x128x32xf32, #tpu.memory_space<vmem>>, vector<1x128x32xf32>
    %68 = vector.shape_cast %67 : vector<1x128x32xf32> to vector<128x32xf32>
    %cst_80 = arith.constant dense<0.000000e+00> : vector<2x32xf32>
    %69 = tpu.matmul %66, %68, %cst_80 {dimension_numbers = #tpu.dot_dimension_numbers<[1], [0], [0], [1], [0, 0, 1, 1], [], []>} : vector<2x128xf32>, vector<128x32xf32>, vector<2x32xf32> -> vector<2x32xf32>
    %70 = arith.addf %64, %69 : vector<2x32xf32>
    %c0_81 = arith.constant 0 : index
    %c2_82 = arith.constant 2 : index
    %c0_83 = arith.constant 0 : index
    %71 = vector.load %arg14[%c0_81, %c2_82, %c0_83] : memref<2x16x128xf32, #tpu.memory_space<vmem>>, vector<2x1x128xf32>
    %72 = vector.shape_cast %71 : vector<2x1x128xf32> to vector<2x128xf32>
    %c2_84 = arith.constant 2 : index
    %c0_85 = arith.constant 0 : index
    %c0_86 = arith.constant 0 : index
    %73 = vector.load %arg5[%c2_84, %c0_85, %c0_86] : memref<16x128x32xf32, #tpu.memory_space<vmem>>, vector<1x128x32xf32>
    %74 = vector.shape_cast %73 : vector<1x128x32xf32> to vector<128x32xf32>
    %cst_87 = arith.constant dense<0.000000e+00> : vector<2x32xf32>
    %75 = tpu.matmul %72, %74, %cst_87 {dimension_numbers = #tpu.dot_dimension_numbers<[1], [0], [0], [1], [0, 0, 1, 1], [], []>} : vector<2x128xf32>, vector<128x32xf32>, vector<2x32xf32> -> vector<2x32xf32>
    %76 = arith.addf %70, %75 : vector<2x32xf32>
    %c0_88 = arith.constant 0 : index
    %c3 = arith.constant 3 : index
    %c0_89 = arith.constant 0 : index
    %77 = vector.load %arg14[%c0_88, %c3, %c0_89] : memref<2x16x128xf32, #tpu.memory_space<vmem>>, vector<2x1x128xf32>
    %78 = vector.shape_cast %77 : vector<2x1x128xf32> to vector<2x128xf32>
    %c3_90 = arith.constant 3 : index
    %c0_91 = arith.constant 0 : index
    %c0_92 = arith.constant 0 : index
    %79 = vector.load %arg5[%c3_90, %c0_91, %c0_92] : memref<16x128x32xf32, #tpu.memory_space<vmem>>, vector<1x128x32xf32>
    %80 = vector.shape_cast %79 : vector<1x128x32xf32> to vector<128x32xf32>
    %cst_93 = arith.constant dense<0.000000e+00> : vector<2x32xf32>
    %81 = tpu.matmul %78, %80, %cst_93 {dimension_numbers = #tpu.dot_dimension_numbers<[1], [0], [0], [1], [0, 0, 1, 1], [], []>} : vector<2x128xf32>, vector<128x32xf32>, vector<2x32xf32> -> vector<2x32xf32>
    %82 = arith.addf %76, %81 : vector<2x32xf32>
    %c0_94 = arith.constant 0 : index
    %c4 = arith.constant 4 : index
    %c0_95 = arith.constant 0 : index
    %83 = vector.load %arg14[%c0_94, %c4, %c0_95] : memref<2x16x128xf32, #tpu.memory_space<vmem>>, vector<2x1x128xf32>
    %84 = vector.shape_cast %83 : vector<2x1x128xf32> to vector<2x128xf32>
    %c4_96 = arith.constant 4 : index
    %c0_97 = arith.constant 0 : index
    %c0_98 = arith.constant 0 : index
    %85 = vector.load %arg5[%c4_96, %c0_97, %c0_98] : memref<16x128x32xf32, #tpu.memory_space<vmem>>, vector<1x128x32xf32>
    %86 = vector.shape_cast %85 : vector<1x128x32xf32> to vector<128x32xf32>
    %cst_99 = arith.constant dense<0.000000e+00> : vector<2x32xf32>
    %87 = tpu.matmul %84, %86, %cst_99 {dimension_numbers = #tpu.dot_dimension_numbers<[1], [0], [0], [1], [0, 0, 1, 1], [], []>} : vector<2x128xf32>, vector<128x32xf32>, vector<2x32xf32> -> vector<2x32xf32>
    %88 = arith.addf %82, %87 : vector<2x32xf32>
    %c0_100 = arith.constant 0 : index
    %c5 = arith.constant 5 : index
    %c0_101 = arith.constant 0 : index
    %89 = vector.load %arg14[%c0_100, %c5, %c0_101] : memref<2x16x128xf32, #tpu.memory_space<vmem>>, vector<2x1x128xf32>
    %90 = vector.shape_cast %89 : vector<2x1x128xf32> to vector<2x128xf32>
    %c5_102 = arith.constant 5 : index
    %c0_103 = arith.constant 0 : index
    %c0_104 = arith.constant 0 : index
    %91 = vector.load %arg5[%c5_102, %c0_103, %c0_104] : memref<16x128x32xf32, #tpu.memory_space<vmem>>, vector<1x128x32xf32>
    %92 = vector.shape_cast %91 : vector<1x128x32xf32> to vector<128x32xf32>
    %cst_105 = arith.constant dense<0.000000e+00> : vector<2x32xf32>
    %93 = tpu.matmul %90, %92, %cst_105 {dimension_numbers = #tpu.dot_dimension_numbers<[1], [0], [0], [1], [0, 0, 1, 1], [], []>} : vector<2x128xf32>, vector<128x32xf32>, vector<2x32xf32> -> vector<2x32xf32>
    %94 = arith.addf %88, %93 : vector<2x32xf32>
    %c0_106 = arith.constant 0 : index
    %c6 = arith.constant 6 : index
    %c0_107 = arith.constant 0 : index
    %95 = vector.load %arg14[%c0_106, %c6, %c0_107] : memref<2x16x128xf32, #tpu.memory_space<vmem>>, vector<2x1x128xf32>
    %96 = vector.shape_cast %95 : vector<2x1x128xf32> to vector<2x128xf32>
    %c6_108 = arith.constant 6 : index
    %c0_109 = arith.constant 0 : index
    %c0_110 = arith.constant 0 : index
    %97 = vector.load %arg5[%c6_108, %c0_109, %c0_110] : memref<16x128x32xf32, #tpu.memory_space<vmem>>, vector<1x128x32xf32>
    %98 = vector.shape_cast %97 : vector<1x128x32xf32> to vector<128x32xf32>
    %cst_111 = arith.constant dense<0.000000e+00> : vector<2x32xf32>
    %99 = tpu.matmul %96, %98, %cst_111 {dimension_numbers = #tpu.dot_dimension_numbers<[1], [0], [0], [1], [0, 0, 1, 1], [], []>} : vector<2x128xf32>, vector<128x32xf32>, vector<2x32xf32> -> vector<2x32xf32>
    %100 = arith.addf %94, %99 : vector<2x32xf32>
    %c0_112 = arith.constant 0 : index
    %c7 = arith.constant 7 : index
    %c0_113 = arith.constant 0 : index
    %101 = vector.load %arg14[%c0_112, %c7, %c0_113] : memref<2x16x128xf32, #tpu.memory_space<vmem>>, vector<2x1x128xf32>
    %102 = vector.shape_cast %101 : vector<2x1x128xf32> to vector<2x128xf32>
    %c7_114 = arith.constant 7 : index
    %c0_115 = arith.constant 0 : index
    %c0_116 = arith.constant 0 : index
    %103 = vector.load %arg5[%c7_114, %c0_115, %c0_116] : memref<16x128x32xf32, #tpu.memory_space<vmem>>, vector<1x128x32xf32>
    %104 = vector.shape_cast %103 : vector<1x128x32xf32> to vector<128x32xf32>
    %cst_117 = arith.constant dense<0.000000e+00> : vector<2x32xf32>
    %105 = tpu.matmul %102, %104, %cst_117 {dimension_numbers = #tpu.dot_dimension_numbers<[1], [0], [0], [1], [0, 0, 1, 1], [], []>} : vector<2x128xf32>, vector<128x32xf32>, vector<2x32xf32> -> vector<2x32xf32>
    %106 = arith.addf %100, %105 : vector<2x32xf32>
    %c0_118 = arith.constant 0 : index
    %c8 = arith.constant 8 : index
    %c0_119 = arith.constant 0 : index
    %107 = vector.load %arg14[%c0_118, %c8, %c0_119] : memref<2x16x128xf32, #tpu.memory_space<vmem>>, vector<2x1x128xf32>
    %108 = vector.shape_cast %107 : vector<2x1x128xf32> to vector<2x128xf32>
    %c8_120 = arith.constant 8 : index
    %c0_121 = arith.constant 0 : index
    %c0_122 = arith.constant 0 : index
    %109 = vector.load %arg5[%c8_120, %c0_121, %c0_122] : memref<16x128x32xf32, #tpu.memory_space<vmem>>, vector<1x128x32xf32>
    %110 = vector.shape_cast %109 : vector<1x128x32xf32> to vector<128x32xf32>
    %cst_123 = arith.constant dense<0.000000e+00> : vector<2x32xf32>
    %111 = tpu.matmul %108, %110, %cst_123 {dimension_numbers = #tpu.dot_dimension_numbers<[1], [0], [0], [1], [0, 0, 1, 1], [], []>} : vector<2x128xf32>, vector<128x32xf32>, vector<2x32xf32> -> vector<2x32xf32>
    %112 = arith.addf %106, %111 : vector<2x32xf32>
    %c0_124 = arith.constant 0 : index
    %c9 = arith.constant 9 : index
    %c0_125 = arith.constant 0 : index
    %113 = vector.load %arg14[%c0_124, %c9, %c0_125] : memref<2x16x128xf32, #tpu.memory_space<vmem>>, vector<2x1x128xf32>
    %114 = vector.shape_cast %113 : vector<2x1x128xf32> to vector<2x128xf32>
    %c9_126 = arith.constant 9 : index
    %c0_127 = arith.constant 0 : index
    %c0_128 = arith.constant 0 : index
    %115 = vector.load %arg5[%c9_126, %c0_127, %c0_128] : memref<16x128x32xf32, #tpu.memory_space<vmem>>, vector<1x128x32xf32>
    %116 = vector.shape_cast %115 : vector<1x128x32xf32> to vector<128x32xf32>
    %cst_129 = arith.constant dense<0.000000e+00> : vector<2x32xf32>
    %117 = tpu.matmul %114, %116, %cst_129 {dimension_numbers = #tpu.dot_dimension_numbers<[1], [0], [0], [1], [0, 0, 1, 1], [], []>} : vector<2x128xf32>, vector<128x32xf32>, vector<2x32xf32> -> vector<2x32xf32>
    %118 = arith.addf %112, %117 : vector<2x32xf32>
    %c0_130 = arith.constant 0 : index
    %c10 = arith.constant 10 : index
    %c0_131 = arith.constant 0 : index
    %119 = vector.load %arg14[%c0_130, %c10, %c0_131] : memref<2x16x128xf32, #tpu.memory_space<vmem>>, vector<2x1x128xf32>
    %120 = vector.shape_cast %119 : vector<2x1x128xf32> to vector<2x128xf32>
    %c10_132 = arith.constant 10 : index
    %c0_133 = arith.constant 0 : index
    %c0_134 = arith.constant 0 : index
    %121 = vector.load %arg5[%c10_132, %c0_133, %c0_134] : memref<16x128x32xf32, #tpu.memory_space<vmem>>, vector<1x128x32xf32>
    %122 = vector.shape_cast %121 : vector<1x128x32xf32> to vector<128x32xf32>
    %cst_135 = arith.constant dense<0.000000e+00> : vector<2x32xf32>
    %123 = tpu.matmul %120, %122, %cst_135 {dimension_numbers = #tpu.dot_dimension_numbers<[1], [0], [0], [1], [0, 0, 1, 1], [], []>} : vector<2x128xf32>, vector<128x32xf32>, vector<2x32xf32> -> vector<2x32xf32>
    %124 = arith.addf %118, %123 : vector<2x32xf32>
    %c0_136 = arith.constant 0 : index
    %c11 = arith.constant 11 : index
    %c0_137 = arith.constant 0 : index
    %125 = vector.load %arg14[%c0_136, %c11, %c0_137] : memref<2x16x128xf32, #tpu.memory_space<vmem>>, vector<2x1x128xf32>
    %126 = vector.shape_cast %125 : vector<2x1x128xf32> to vector<2x128xf32>
    %c11_138 = arith.constant 11 : index
    %c0_139 = arith.constant 0 : index
    %c0_140 = arith.constant 0 : index
    %127 = vector.load %arg5[%c11_138, %c0_139, %c0_140] : memref<16x128x32xf32, #tpu.memory_space<vmem>>, vector<1x128x32xf32>
    %128 = vector.shape_cast %127 : vector<1x128x32xf32> to vector<128x32xf32>
    %cst_141 = arith.constant dense<0.000000e+00> : vector<2x32xf32>
    %129 = tpu.matmul %126, %128, %cst_141 {dimension_numbers = #tpu.dot_dimension_numbers<[1], [0], [0], [1], [0, 0, 1, 1], [], []>} : vector<2x128xf32>, vector<128x32xf32>, vector<2x32xf32> -> vector<2x32xf32>
    %130 = arith.addf %124, %129 : vector<2x32xf32>
    %c0_142 = arith.constant 0 : index
    %c12 = arith.constant 12 : index
    %c0_143 = arith.constant 0 : index
    %131 = vector.load %arg14[%c0_142, %c12, %c0_143] : memref<2x16x128xf32, #tpu.memory_space<vmem>>, vector<2x1x128xf32>
    %132 = vector.shape_cast %131 : vector<2x1x128xf32> to vector<2x128xf32>
    %c12_144 = arith.constant 12 : index
    %c0_145 = arith.constant 0 : index
    %c0_146 = arith.constant 0 : index
    %133 = vector.load %arg5[%c12_144, %c0_145, %c0_146] : memref<16x128x32xf32, #tpu.memory_space<vmem>>, vector<1x128x32xf32>
    %134 = vector.shape_cast %133 : vector<1x128x32xf32> to vector<128x32xf32>
    %cst_147 = arith.constant dense<0.000000e+00> : vector<2x32xf32>
    %135 = tpu.matmul %132, %134, %cst_147 {dimension_numbers = #tpu.dot_dimension_numbers<[1], [0], [0], [1], [0, 0, 1, 1], [], []>} : vector<2x128xf32>, vector<128x32xf32>, vector<2x32xf32> -> vector<2x32xf32>
    %136 = arith.addf %130, %135 : vector<2x32xf32>
    %c0_148 = arith.constant 0 : index
    %c13 = arith.constant 13 : index
    %c0_149 = arith.constant 0 : index
    %137 = vector.load %arg14[%c0_148, %c13, %c0_149] : memref<2x16x128xf32, #tpu.memory_space<vmem>>, vector<2x1x128xf32>
    %138 = vector.shape_cast %137 : vector<2x1x128xf32> to vector<2x128xf32>
    %c13_150 = arith.constant 13 : index
    %c0_151 = arith.constant 0 : index
    %c0_152 = arith.constant 0 : index
    %139 = vector.load %arg5[%c13_150, %c0_151, %c0_152] : memref<16x128x32xf32, #tpu.memory_space<vmem>>, vector<1x128x32xf32>
    %140 = vector.shape_cast %139 : vector<1x128x32xf32> to vector<128x32xf32>
    %cst_153 = arith.constant dense<0.000000e+00> : vector<2x32xf32>
    %141 = tpu.matmul %138, %140, %cst_153 {dimension_numbers = #tpu.dot_dimension_numbers<[1], [0], [0], [1], [0, 0, 1, 1], [], []>} : vector<2x128xf32>, vector<128x32xf32>, vector<2x32xf32> -> vector<2x32xf32>
    %142 = arith.addf %136, %141 : vector<2x32xf32>
    %c0_154 = arith.constant 0 : index
    %c14 = arith.constant 14 : index
    %c0_155 = arith.constant 0 : index
    %143 = vector.load %arg14[%c0_154, %c14, %c0_155] : memref<2x16x128xf32, #tpu.memory_space<vmem>>, vector<2x1x128xf32>
    %144 = vector.shape_cast %143 : vector<2x1x128xf32> to vector<2x128xf32>
    %c14_156 = arith.constant 14 : index
    %c0_157 = arith.constant 0 : index
    %c0_158 = arith.constant 0 : index
    %145 = vector.load %arg5[%c14_156, %c0_157, %c0_158] : memref<16x128x32xf32, #tpu.memory_space<vmem>>, vector<1x128x32xf32>
    %146 = vector.shape_cast %145 : vector<1x128x32xf32> to vector<128x32xf32>
    %cst_159 = arith.constant dense<0.000000e+00> : vector<2x32xf32>
    %147 = tpu.matmul %144, %146, %cst_159 {dimension_numbers = #tpu.dot_dimension_numbers<[1], [0], [0], [1], [0, 0, 1, 1], [], []>} : vector<2x128xf32>, vector<128x32xf32>, vector<2x32xf32> -> vector<2x32xf32>
    %148 = arith.addf %142, %147 : vector<2x32xf32>
    %c0_160 = arith.constant 0 : index
    %c15 = arith.constant 15 : index
    %c0_161 = arith.constant 0 : index
    %149 = vector.load %arg14[%c0_160, %c15, %c0_161] : memref<2x16x128xf32, #tpu.memory_space<vmem>>, vector<2x1x128xf32>
    %150 = vector.shape_cast %149 : vector<2x1x128xf32> to vector<2x128xf32>
    %c15_162 = arith.constant 15 : index
    %c0_163 = arith.constant 0 : index
    %c0_164 = arith.constant 0 : index
    %151 = vector.load %arg5[%c15_162, %c0_163, %c0_164] : memref<16x128x32xf32, #tpu.memory_space<vmem>>, vector<1x128x32xf32>
    %152 = vector.shape_cast %151 : vector<1x128x32xf32> to vector<128x32xf32>
    %cst_165 = arith.constant dense<0.000000e+00> : vector<2x32xf32>
    %153 = tpu.matmul %150, %152, %cst_165 {dimension_numbers = #tpu.dot_dimension_numbers<[1], [0], [0], [1], [0, 0, 1, 1], [], []>} : vector<2x128xf32>, vector<128x32xf32>, vector<2x32xf32> -> vector<2x32xf32>
    %154 = arith.addf %148, %153 : vector<2x32xf32>
    %c0_166 = arith.constant 0 : index
    %c0_167 = arith.constant 0 : index
    %155 = vector.load %arg6[%c0_166, %c0_167] : memref<1x32xf32, #tpu.memory_space<vmem>>, vector<1x32xf32>
    %156 = vector.broadcast %155 : vector<1x32xf32> to vector<2x32xf32>
    %157 = arith.addf %154, %156 : vector<2x32xf32>
    %cst_168 = arith.constant 0.000000e+00 : f32
    %158 = vector.broadcast %cst_168 : f32 to vector<2x32xf32>
    %159 = arith.maximumf %157, %158 : vector<2x32xf32>
    %c0_169 = arith.constant 0 : index
    %c0_170 = arith.constant 0 : index
    %160 = vector.load %arg7[%c0_169, %c0_170] : memref<32x32xf32, #tpu.memory_space<vmem>>, vector<32x32xf32>
    %cst_171 = arith.constant dense<0.000000e+00> : vector<2x32xf32>
    %161 = tpu.matmul %159, %160, %cst_171 {dimension_numbers = #tpu.dot_dimension_numbers<[1], [0], [0], [1], [0, 0, 1, 1], [], []>} : vector<2x32xf32>, vector<32x32xf32>, vector<2x32xf32> -> vector<2x32xf32>
    %c0_172 = arith.constant 0 : index
    %c0_173 = arith.constant 0 : index
    %162 = vector.load %arg8[%c0_172, %c0_173] : memref<1x32xf32, #tpu.memory_space<vmem>>, vector<1x32xf32>
    %163 = vector.broadcast %162 : vector<1x32xf32> to vector<2x32xf32>
    %164 = arith.addf %161, %163 : vector<2x32xf32>
    %cst_174 = arith.constant 0.000000e+00 : f32
    %165 = vector.broadcast %cst_174 : f32 to vector<2x32xf32>
    %166 = arith.maximumf %164, %165 : vector<2x32xf32>
    %c0_175 = arith.constant 0 : index
    %c0_176 = arith.constant 0 : index
    %167 = vector.load %arg9[%c0_175, %c0_176] : memref<32x16xf32, #tpu.memory_space<vmem>>, vector<32x16xf32>
    %cst_177 = arith.constant dense<0.000000e+00> : vector<2x16xf32>
    %168 = tpu.matmul %166, %167, %cst_177 {dimension_numbers = #tpu.dot_dimension_numbers<[1], [0], [0], [1], [0, 0, 1, 1], [], []>} : vector<2x32xf32>, vector<32x16xf32>, vector<2x16xf32> -> vector<2x16xf32>
    %c0_178 = arith.constant 0 : index
    %c0_179 = arith.constant 0 : index
    %169 = vector.load %arg10[%c0_178, %c0_179] : memref<1x16xf32, #tpu.memory_space<vmem>>, vector<1x16xf32>
    %170 = vector.broadcast %169 : vector<1x16xf32> to vector<2x16xf32>
    %171 = arith.addf %168, %170 : vector<2x16xf32>
    %172 = arith.mulf %171, %171 : vector<2x16xf32>
    %cst_180 = arith.constant dense<0.000000e+00> : vector<2xf32>
    %173 = vector.multi_reduction <add>, %172, %cst_180 [1] : vector<2x16xf32> to vector<2xf32>
    %174 = vector.shape_cast %173 : vector<2xf32> to vector<2x1xf32>
    %cst_181 = arith.constant 1.000000e-24 : f32
    %175 = vector.broadcast %cst_181 : f32 to vector<2x1xf32>
    %176 = arith.maximumf %174, %175 : vector<2x1xf32>
    %177 = math.rsqrt %176 : vector<2x1xf32>
    %178 = vector.broadcast %177 : vector<2x1xf32> to vector<2x16xf32>
    %179 = arith.mulf %171, %178 : vector<2x16xf32>
    %c0_182 = arith.constant 0 : index
    %c0_183 = arith.constant 0 : index
    %180 = vector.load %arg11[%c0_182, %c0_183] : memref<2x16xf32, #tpu.memory_space<vmem>>, vector<2x16xf32>
    tpu.vector_store %arg11[%c0_182, %c0_183], %179 {strides = array<i32>} : memref<2x16xf32, #tpu.memory_space<vmem>>, vector<2x16xf32>,
    return
  }
}

module attributes {stable_mosaic.version = 11 : i64} {
  func.func @kernel(%arg0: memref<2x32x128xf32, #tpu.memory_space<vmem>>, %arg1: memref<3x128x256xf32, #tpu.memory_space<vmem>>, %arg2: memref<1x256xf32, #tpu.memory_space<vmem>>, %arg3: memref<3x256x256xf32, #tpu.memory_space<vmem>>, %arg4: memref<1x256xf32, #tpu.memory_space<vmem>>, %arg5: memref<16x128x32xf32, #tpu.memory_space<vmem>>, %arg6: memref<1x32xf32, #tpu.memory_space<vmem>>, %arg7: memref<32x32xf32, #tpu.memory_space<vmem>>, %arg8: memref<1x32xf32, #tpu.memory_space<vmem>>, %arg9: memref<32x16xf32, #tpu.memory_space<vmem>>, %arg10: memref<1x16xf32, #tpu.memory_space<vmem>>, %arg11: memref<2x16xf32, #tpu.memory_space<vmem>>, %arg12: memref<2x34x128xf32, #tpu.memory_space<vmem>>, %arg13: memref<2x34x256xf32, #tpu.memory_space<vmem>>, %arg14: memref<2x32x256xf32, #tpu.memory_space<vmem>>) attributes {dimension_semantics = [], scalar_prefetch = 0 : i64, scratch_operands = 3 : i64, tpu.core_type = #tpu.core_type<tc>} {
    %cst = arith.constant 0.000000e+00 : f32
    %0 = vector.broadcast %cst : f32 to vector<2x34x128xf32>
    %c0 = arith.constant 0 : index
    %c0_0 = arith.constant 0 : index
    %c0_1 = arith.constant 0 : index
    %1 = vector.load %arg12[%c0, %c0_0, %c0_1] : memref<2x34x128xf32, #tpu.memory_space<vmem>>, vector<2x34x128xf32>
    tpu.vector_store %arg12[%c0, %c0_0, %c0_1], %0 {strides = array<i32>} : memref<2x34x128xf32, #tpu.memory_space<vmem>>, vector<2x34x128xf32>,
    %c0_2 = arith.constant 0 : index
    %c0_3 = arith.constant 0 : index
    %c0_4 = arith.constant 0 : index
    %2 = vector.load %arg0[%c0_2, %c0_3, %c0_4] : memref<2x32x128xf32, #tpu.memory_space<vmem>>, vector<2x32x128xf32>
    %c0_5 = arith.constant 0 : index
    %c1 = arith.constant 1 : index
    %c0_6 = arith.constant 0 : index
    %3 = vector.load %arg12[%c0_5, %c1, %c0_6] : memref<2x34x128xf32, #tpu.memory_space<vmem>>, vector<2x32x128xf32>
    tpu.vector_store %arg12[%c0_5, %c1, %c0_6], %2 {strides = array<i32>} : memref<2x34x128xf32, #tpu.memory_space<vmem>>, vector<2x32x128xf32>,
    %cst_7 = arith.constant 0.000000e+00 : f32
    %4 = vector.broadcast %cst_7 : f32 to vector<64x256xf32>
    %c0_8 = arith.constant 0 : index
    %c0_9 = arith.constant 0 : index
    %c0_10 = arith.constant 0 : index
    %5 = vector.load %arg12[%c0_8, %c0_9, %c0_10] : memref<2x34x128xf32, #tpu.memory_space<vmem>>, vector<2x32x128xf32>
    %6 = vector.shape_cast %5 : vector<2x32x128xf32> to vector<64x128xf32>
    %c0_11 = arith.constant 0 : index
    %c0_12 = arith.constant 0 : index
    %c0_13 = arith.constant 0 : index
    %7 = vector.load %arg1[%c0_11, %c0_12, %c0_13] : memref<3x128x256xf32, #tpu.memory_space<vmem>>, vector<1x128x256xf32>
    %8 = vector.shape_cast %7 : vector<1x128x256xf32> to vector<128x256xf32>
    %cst_14 = arith.constant dense<0.000000e+00> : vector<64x256xf32>
    %9 = tpu.matmul %6, %8, %cst_14 {dimension_numbers = #tpu.dot_dimension_numbers<[1], [0], [0], [1], [0, 0, 1, 1], [], []>} : vector<64x128xf32>, vector<128x256xf32>, vector<64x256xf32> -> vector<64x256xf32>
    %10 = arith.addf %4, %9 : vector<64x256xf32>
    %c0_15 = arith.constant 0 : index
    %c1_16 = arith.constant 1 : index
    %c0_17 = arith.constant 0 : index
    %11 = vector.load %arg12[%c0_15, %c1_16, %c0_17] : memref<2x34x128xf32, #tpu.memory_space<vmem>>, vector<2x32x128xf32>
    %12 = vector.shape_cast %11 : vector<2x32x128xf32> to vector<64x128xf32>
    %c1_18 = arith.constant 1 : index
    %c0_19 = arith.constant 0 : index
    %c0_20 = arith.constant 0 : index
    %13 = vector.load %arg1[%c1_18, %c0_19, %c0_20] : memref<3x128x256xf32, #tpu.memory_space<vmem>>, vector<1x128x256xf32>
    %14 = vector.shape_cast %13 : vector<1x128x256xf32> to vector<128x256xf32>
    %cst_21 = arith.constant dense<0.000000e+00> : vector<64x256xf32>
    %15 = tpu.matmul %12, %14, %cst_21 {dimension_numbers = #tpu.dot_dimension_numbers<[1], [0], [0], [1], [0, 0, 1, 1], [], []>} : vector<64x128xf32>, vector<128x256xf32>, vector<64x256xf32> -> vector<64x256xf32>
    %16 = arith.addf %10, %15 : vector<64x256xf32>
    %c0_22 = arith.constant 0 : index
    %c2 = arith.constant 2 : index
    %c0_23 = arith.constant 0 : index
    %17 = vector.load %arg12[%c0_22, %c2, %c0_23] : memref<2x34x128xf32, #tpu.memory_space<vmem>>, vector<2x32x128xf32>
    %18 = vector.shape_cast %17 : vector<2x32x128xf32> to vector<64x128xf32>
    %c2_24 = arith.constant 2 : index
    %c0_25 = arith.constant 0 : index
    %c0_26 = arith.constant 0 : index
    %19 = vector.load %arg1[%c2_24, %c0_25, %c0_26] : memref<3x128x256xf32, #tpu.memory_space<vmem>>, vector<1x128x256xf32>
    %20 = vector.shape_cast %19 : vector<1x128x256xf32> to vector<128x256xf32>
    %cst_27 = arith.constant dense<0.000000e+00> : vector<64x256xf32>
    %21 = tpu.matmul %18, %20, %cst_27 {dimension_numbers = #tpu.dot_dimension_numbers<[1], [0], [0], [1], [0, 0, 1, 1], [], []>} : vector<64x128xf32>, vector<128x256xf32>, vector<64x256xf32> -> vector<64x256xf32>
    %22 = arith.addf %16, %21 : vector<64x256xf32>
    %c0_28 = arith.constant 0 : index
    %c0_29 = arith.constant 0 : index
    %23 = vector.load %arg2[%c0_28, %c0_29] : memref<1x256xf32, #tpu.memory_space<vmem>>, vector<1x256xf32>
    %24 = vector.broadcast %23 : vector<1x256xf32> to vector<64x256xf32>
    %25 = arith.addf %22, %24 : vector<64x256xf32>
    %cst_30 = arith.constant 0.000000e+00 : f32
    %26 = vector.broadcast %cst_30 : f32 to vector<64x256xf32>
    %27 = arith.maximumf %25, %26 : vector<64x256xf32>
    %cst_31 = arith.constant 0.000000e+00 : f32
    %28 = vector.broadcast %cst_31 : f32 to vector<2x34x256xf32>
    %c0_32 = arith.constant 0 : index
    %c0_33 = arith.constant 0 : index
    %c0_34 = arith.constant 0 : index
    %29 = vector.load %arg13[%c0_32, %c0_33, %c0_34] : memref<2x34x256xf32, #tpu.memory_space<vmem>>, vector<2x34x256xf32>
    tpu.vector_store %arg13[%c0_32, %c0_33, %c0_34], %28 {strides = array<i32>} : memref<2x34x256xf32, #tpu.memory_space<vmem>>, vector<2x34x256xf32>,
    %30 = vector.shape_cast %27 : vector<64x256xf32> to vector<2x32x256xf32>
    %c0_35 = arith.constant 0 : index
    %c1_36 = arith.constant 1 : index
    %c0_37 = arith.constant 0 : index
    %31 = vector.load %arg13[%c0_35, %c1_36, %c0_37] : memref<2x34x256xf32, #tpu.memory_space<vmem>>, vector<2x32x256xf32>
    tpu.vector_store %arg13[%c0_35, %c1_36, %c0_37], %30 {strides = array<i32>} : memref<2x34x256xf32, #tpu.memory_space<vmem>>, vector<2x32x256xf32>,
    %cst_38 = arith.constant 0.000000e+00 : f32
    %32 = vector.broadcast %cst_38 : f32 to vector<64x256xf32>
    %c0_39 = arith.constant 0 : index
    %c0_40 = arith.constant 0 : index
    %c0_41 = arith.constant 0 : index
    %33 = vector.load %arg13[%c0_39, %c0_40, %c0_41] : memref<2x34x256xf32, #tpu.memory_space<vmem>>, vector<2x32x256xf32>
    %34 = vector.shape_cast %33 : vector<2x32x256xf32> to vector<64x256xf32>
    %c0_42 = arith.constant 0 : index
    %c0_43 = arith.constant 0 : index
    %c0_44 = arith.constant 0 : index
    %35 = vector.load %arg3[%c0_42, %c0_43, %c0_44] : memref<3x256x256xf32, #tpu.memory_space<vmem>>, vector<1x256x256xf32>
    %36 = vector.shape_cast %35 : vector<1x256x256xf32> to vector<256x256xf32>
    %cst_45 = arith.constant dense<0.000000e+00> : vector<64x256xf32>
    %37 = tpu.matmul %34, %36, %cst_45 {dimension_numbers = #tpu.dot_dimension_numbers<[1], [0], [0], [1], [0, 0, 1, 1], [], []>} : vector<64x256xf32>, vector<256x256xf32>, vector<64x256xf32> -> vector<64x256xf32>
    %38 = arith.addf %32, %37 : vector<64x256xf32>
    %c0_46 = arith.constant 0 : index
    %c1_47 = arith.constant 1 : index
    %c0_48 = arith.constant 0 : index
    %39 = vector.load %arg13[%c0_46, %c1_47, %c0_48] : memref<2x34x256xf32, #tpu.memory_space<vmem>>, vector<2x32x256xf32>
    %40 = vector.shape_cast %39 : vector<2x32x256xf32> to vector<64x256xf32>
    %c1_49 = arith.constant 1 : index
    %c0_50 = arith.constant 0 : index
    %c0_51 = arith.constant 0 : index
    %41 = vector.load %arg3[%c1_49, %c0_50, %c0_51] : memref<3x256x256xf32, #tpu.memory_space<vmem>>, vector<1x256x256xf32>
    %42 = vector.shape_cast %41 : vector<1x256x256xf32> to vector<256x256xf32>
    %cst_52 = arith.constant dense<0.000000e+00> : vector<64x256xf32>
    %43 = tpu.matmul %40, %42, %cst_52 {dimension_numbers = #tpu.dot_dimension_numbers<[1], [0], [0], [1], [0, 0, 1, 1], [], []>} : vector<64x256xf32>, vector<256x256xf32>, vector<64x256xf32> -> vector<64x256xf32>
    %44 = arith.addf %38, %43 : vector<64x256xf32>
    %c0_53 = arith.constant 0 : index
    %c2_54 = arith.constant 2 : index
    %c0_55 = arith.constant 0 : index
    %45 = vector.load %arg13[%c0_53, %c2_54, %c0_55] : memref<2x34x256xf32, #tpu.memory_space<vmem>>, vector<2x32x256xf32>
    %46 = vector.shape_cast %45 : vector<2x32x256xf32> to vector<64x256xf32>
    %c2_56 = arith.constant 2 : index
    %c0_57 = arith.constant 0 : index
    %c0_58 = arith.constant 0 : index
    %47 = vector.load %arg3[%c2_56, %c0_57, %c0_58] : memref<3x256x256xf32, #tpu.memory_space<vmem>>, vector<1x256x256xf32>
    %48 = vector.shape_cast %47 : vector<1x256x256xf32> to vector<256x256xf32>
    %cst_59 = arith.constant dense<0.000000e+00> : vector<64x256xf32>
    %49 = tpu.matmul %46, %48, %cst_59 {dimension_numbers = #tpu.dot_dimension_numbers<[1], [0], [0], [1], [0, 0, 1, 1], [], []>} : vector<64x256xf32>, vector<256x256xf32>, vector<64x256xf32> -> vector<64x256xf32>
    %50 = arith.addf %44, %49 : vector<64x256xf32>
    %c0_60 = arith.constant 0 : index
    %c0_61 = arith.constant 0 : index
    %51 = vector.load %arg4[%c0_60, %c0_61] : memref<1x256xf32, #tpu.memory_space<vmem>>, vector<1x256xf32>
    %52 = vector.broadcast %51 : vector<1x256xf32> to vector<64x256xf32>
    %53 = arith.addf %50, %52 : vector<64x256xf32>
    %cst_62 = arith.constant 0.000000e+00 : f32
    %54 = vector.broadcast %cst_62 : f32 to vector<64x256xf32>
    %55 = arith.maximumf %53, %54 : vector<64x256xf32>
    %56 = vector.shape_cast %55 : vector<64x256xf32> to vector<2x32x256xf32>
    %c0_63 = arith.constant 0 : index
    %c0_64 = arith.constant 0 : index
    %c0_65 = arith.constant 0 : index
    %57 = vector.load %arg14[%c0_63, %c0_64, %c0_65] : memref<2x32x256xf32, #tpu.memory_space<vmem>>, vector<2x32x256xf32>
    tpu.vector_store %arg14[%c0_63, %c0_64, %c0_65], %56 {strides = array<i32>} : memref<2x32x256xf32, #tpu.memory_space<vmem>>, vector<2x32x256xf32>,
    %cst_66 = arith.constant 0.000000e+00 : f32
    %58 = vector.broadcast %cst_66 : f32 to vector<2x32xf32>
    %c0_67 = arith.constant 0 : index
    %c0_68 = arith.constant 0 : index
    %c0_69 = arith.constant 0 : index
    %59 = vector.load %arg14[%c0_67, %c0_68, %c0_69] : memref<2x32x256xf32, #tpu.memory_space<vmem>>, vector<2x1x256xf32>
    %60 = vector.shape_cast %59 : vector<2x1x256xf32> to vector<2x256xf32>
    %c0_70 = arith.constant 0 : index
    %c1_71 = arith.constant 1 : index
    %c0_72 = arith.constant 0 : index
    %61 = vector.load %arg14[%c0_70, %c1_71, %c0_72] : memref<2x32x256xf32, #tpu.memory_space<vmem>>, vector<2x1x256xf32>
    %62 = vector.shape_cast %61 : vector<2x1x256xf32> to vector<2x256xf32>
    %63 = arith.maximumf %60, %62 : vector<2x256xf32>
    %64 = vector.extract_strided_slice %63 {offsets = [0, 0], sizes = [2, 128], strides = [1, 1]} : vector<2x256xf32> to vector<2x128xf32>
    %65 = vector.extract_strided_slice %63 {offsets = [0, 128], sizes = [2, 128], strides = [1, 1]} : vector<2x256xf32> to vector<2x128xf32>
    %66 = arith.maximumf %64, %65 : vector<2x128xf32>
    %c0_73 = arith.constant 0 : index
    %c0_74 = arith.constant 0 : index
    %c0_75 = arith.constant 0 : index
    %67 = vector.load %arg5[%c0_73, %c0_74, %c0_75] : memref<16x128x32xf32, #tpu.memory_space<vmem>>, vector<1x128x32xf32>
    %68 = vector.shape_cast %67 : vector<1x128x32xf32> to vector<128x32xf32>
    %cst_76 = arith.constant dense<0.000000e+00> : vector<2x32xf32>
    %69 = tpu.matmul %66, %68, %cst_76 {dimension_numbers = #tpu.dot_dimension_numbers<[1], [0], [0], [1], [0, 0, 1, 1], [], []>} : vector<2x128xf32>, vector<128x32xf32>, vector<2x32xf32> -> vector<2x32xf32>
    %70 = arith.addf %58, %69 : vector<2x32xf32>
    %c0_77 = arith.constant 0 : index
    %c2_78 = arith.constant 2 : index
    %c0_79 = arith.constant 0 : index
    %71 = vector.load %arg14[%c0_77, %c2_78, %c0_79] : memref<2x32x256xf32, #tpu.memory_space<vmem>>, vector<2x1x256xf32>
    %72 = vector.shape_cast %71 : vector<2x1x256xf32> to vector<2x256xf32>
    %c0_80 = arith.constant 0 : index
    %c3 = arith.constant 3 : index
    %c0_81 = arith.constant 0 : index
    %73 = vector.load %arg14[%c0_80, %c3, %c0_81] : memref<2x32x256xf32, #tpu.memory_space<vmem>>, vector<2x1x256xf32>
    %74 = vector.shape_cast %73 : vector<2x1x256xf32> to vector<2x256xf32>
    %75 = arith.maximumf %72, %74 : vector<2x256xf32>
    %76 = vector.extract_strided_slice %75 {offsets = [0, 0], sizes = [2, 128], strides = [1, 1]} : vector<2x256xf32> to vector<2x128xf32>
    %77 = vector.extract_strided_slice %75 {offsets = [0, 128], sizes = [2, 128], strides = [1, 1]} : vector<2x256xf32> to vector<2x128xf32>
    %78 = arith.maximumf %76, %77 : vector<2x128xf32>
    %c1_82 = arith.constant 1 : index
    %c0_83 = arith.constant 0 : index
    %c0_84 = arith.constant 0 : index
    %79 = vector.load %arg5[%c1_82, %c0_83, %c0_84] : memref<16x128x32xf32, #tpu.memory_space<vmem>>, vector<1x128x32xf32>
    %80 = vector.shape_cast %79 : vector<1x128x32xf32> to vector<128x32xf32>
    %cst_85 = arith.constant dense<0.000000e+00> : vector<2x32xf32>
    %81 = tpu.matmul %78, %80, %cst_85 {dimension_numbers = #tpu.dot_dimension_numbers<[1], [0], [0], [1], [0, 0, 1, 1], [], []>} : vector<2x128xf32>, vector<128x32xf32>, vector<2x32xf32> -> vector<2x32xf32>
    %82 = arith.addf %70, %81 : vector<2x32xf32>
    %c0_86 = arith.constant 0 : index
    %c4 = arith.constant 4 : index
    %c0_87 = arith.constant 0 : index
    %83 = vector.load %arg14[%c0_86, %c4, %c0_87] : memref<2x32x256xf32, #tpu.memory_space<vmem>>, vector<2x1x256xf32>
    %84 = vector.shape_cast %83 : vector<2x1x256xf32> to vector<2x256xf32>
    %c0_88 = arith.constant 0 : index
    %c5 = arith.constant 5 : index
    %c0_89 = arith.constant 0 : index
    %85 = vector.load %arg14[%c0_88, %c5, %c0_89] : memref<2x32x256xf32, #tpu.memory_space<vmem>>, vector<2x1x256xf32>
    %86 = vector.shape_cast %85 : vector<2x1x256xf32> to vector<2x256xf32>
    %87 = arith.maximumf %84, %86 : vector<2x256xf32>
    %88 = vector.extract_strided_slice %87 {offsets = [0, 0], sizes = [2, 128], strides = [1, 1]} : vector<2x256xf32> to vector<2x128xf32>
    %89 = vector.extract_strided_slice %87 {offsets = [0, 128], sizes = [2, 128], strides = [1, 1]} : vector<2x256xf32> to vector<2x128xf32>
    %90 = arith.maximumf %88, %89 : vector<2x128xf32>
    %c2_90 = arith.constant 2 : index
    %c0_91 = arith.constant 0 : index
    %c0_92 = arith.constant 0 : index
    %91 = vector.load %arg5[%c2_90, %c0_91, %c0_92] : memref<16x128x32xf32, #tpu.memory_space<vmem>>, vector<1x128x32xf32>
    %92 = vector.shape_cast %91 : vector<1x128x32xf32> to vector<128x32xf32>
    %cst_93 = arith.constant dense<0.000000e+00> : vector<2x32xf32>
    %93 = tpu.matmul %90, %92, %cst_93 {dimension_numbers = #tpu.dot_dimension_numbers<[1], [0], [0], [1], [0, 0, 1, 1], [], []>} : vector<2x128xf32>, vector<128x32xf32>, vector<2x32xf32> -> vector<2x32xf32>
    %94 = arith.addf %82, %93 : vector<2x32xf32>
    %c0_94 = arith.constant 0 : index
    %c6 = arith.constant 6 : index
    %c0_95 = arith.constant 0 : index
    %95 = vector.load %arg14[%c0_94, %c6, %c0_95] : memref<2x32x256xf32, #tpu.memory_space<vmem>>, vector<2x1x256xf32>
    %96 = vector.shape_cast %95 : vector<2x1x256xf32> to vector<2x256xf32>
    %c0_96 = arith.constant 0 : index
    %c7 = arith.constant 7 : index
    %c0_97 = arith.constant 0 : index
    %97 = vector.load %arg14[%c0_96, %c7, %c0_97] : memref<2x32x256xf32, #tpu.memory_space<vmem>>, vector<2x1x256xf32>
    %98 = vector.shape_cast %97 : vector<2x1x256xf32> to vector<2x256xf32>
    %99 = arith.maximumf %96, %98 : vector<2x256xf32>
    %100 = vector.extract_strided_slice %99 {offsets = [0, 0], sizes = [2, 128], strides = [1, 1]} : vector<2x256xf32> to vector<2x128xf32>
    %101 = vector.extract_strided_slice %99 {offsets = [0, 128], sizes = [2, 128], strides = [1, 1]} : vector<2x256xf32> to vector<2x128xf32>
    %102 = arith.maximumf %100, %101 : vector<2x128xf32>
    %c3_98 = arith.constant 3 : index
    %c0_99 = arith.constant 0 : index
    %c0_100 = arith.constant 0 : index
    %103 = vector.load %arg5[%c3_98, %c0_99, %c0_100] : memref<16x128x32xf32, #tpu.memory_space<vmem>>, vector<1x128x32xf32>
    %104 = vector.shape_cast %103 : vector<1x128x32xf32> to vector<128x32xf32>
    %cst_101 = arith.constant dense<0.000000e+00> : vector<2x32xf32>
    %105 = tpu.matmul %102, %104, %cst_101 {dimension_numbers = #tpu.dot_dimension_numbers<[1], [0], [0], [1], [0, 0, 1, 1], [], []>} : vector<2x128xf32>, vector<128x32xf32>, vector<2x32xf32> -> vector<2x32xf32>
    %106 = arith.addf %94, %105 : vector<2x32xf32>
    %c0_102 = arith.constant 0 : index
    %c8 = arith.constant 8 : index
    %c0_103 = arith.constant 0 : index
    %107 = vector.load %arg14[%c0_102, %c8, %c0_103] : memref<2x32x256xf32, #tpu.memory_space<vmem>>, vector<2x1x256xf32>
    %108 = vector.shape_cast %107 : vector<2x1x256xf32> to vector<2x256xf32>
    %c0_104 = arith.constant 0 : index
    %c9 = arith.constant 9 : index
    %c0_105 = arith.constant 0 : index
    %109 = vector.load %arg14[%c0_104, %c9, %c0_105] : memref<2x32x256xf32, #tpu.memory_space<vmem>>, vector<2x1x256xf32>
    %110 = vector.shape_cast %109 : vector<2x1x256xf32> to vector<2x256xf32>
    %111 = arith.maximumf %108, %110 : vector<2x256xf32>
    %112 = vector.extract_strided_slice %111 {offsets = [0, 0], sizes = [2, 128], strides = [1, 1]} : vector<2x256xf32> to vector<2x128xf32>
    %113 = vector.extract_strided_slice %111 {offsets = [0, 128], sizes = [2, 128], strides = [1, 1]} : vector<2x256xf32> to vector<2x128xf32>
    %114 = arith.maximumf %112, %113 : vector<2x128xf32>
    %c4_106 = arith.constant 4 : index
    %c0_107 = arith.constant 0 : index
    %c0_108 = arith.constant 0 : index
    %115 = vector.load %arg5[%c4_106, %c0_107, %c0_108] : memref<16x128x32xf32, #tpu.memory_space<vmem>>, vector<1x128x32xf32>
    %116 = vector.shape_cast %115 : vector<1x128x32xf32> to vector<128x32xf32>
    %cst_109 = arith.constant dense<0.000000e+00> : vector<2x32xf32>
    %117 = tpu.matmul %114, %116, %cst_109 {dimension_numbers = #tpu.dot_dimension_numbers<[1], [0], [0], [1], [0, 0, 1, 1], [], []>} : vector<2x128xf32>, vector<128x32xf32>, vector<2x32xf32> -> vector<2x32xf32>
    %118 = arith.addf %106, %117 : vector<2x32xf32>
    %c0_110 = arith.constant 0 : index
    %c10 = arith.constant 10 : index
    %c0_111 = arith.constant 0 : index
    %119 = vector.load %arg14[%c0_110, %c10, %c0_111] : memref<2x32x256xf32, #tpu.memory_space<vmem>>, vector<2x1x256xf32>
    %120 = vector.shape_cast %119 : vector<2x1x256xf32> to vector<2x256xf32>
    %c0_112 = arith.constant 0 : index
    %c11 = arith.constant 11 : index
    %c0_113 = arith.constant 0 : index
    %121 = vector.load %arg14[%c0_112, %c11, %c0_113] : memref<2x32x256xf32, #tpu.memory_space<vmem>>, vector<2x1x256xf32>
    %122 = vector.shape_cast %121 : vector<2x1x256xf32> to vector<2x256xf32>
    %123 = arith.maximumf %120, %122 : vector<2x256xf32>
    %124 = vector.extract_strided_slice %123 {offsets = [0, 0], sizes = [2, 128], strides = [1, 1]} : vector<2x256xf32> to vector<2x128xf32>
    %125 = vector.extract_strided_slice %123 {offsets = [0, 128], sizes = [2, 128], strides = [1, 1]} : vector<2x256xf32> to vector<2x128xf32>
    %126 = arith.maximumf %124, %125 : vector<2x128xf32>
    %c5_114 = arith.constant 5 : index
    %c0_115 = arith.constant 0 : index
    %c0_116 = arith.constant 0 : index
    %127 = vector.load %arg5[%c5_114, %c0_115, %c0_116] : memref<16x128x32xf32, #tpu.memory_space<vmem>>, vector<1x128x32xf32>
    %128 = vector.shape_cast %127 : vector<1x128x32xf32> to vector<128x32xf32>
    %cst_117 = arith.constant dense<0.000000e+00> : vector<2x32xf32>
    %129 = tpu.matmul %126, %128, %cst_117 {dimension_numbers = #tpu.dot_dimension_numbers<[1], [0], [0], [1], [0, 0, 1, 1], [], []>} : vector<2x128xf32>, vector<128x32xf32>, vector<2x32xf32> -> vector<2x32xf32>
    %130 = arith.addf %118, %129 : vector<2x32xf32>
    %c0_118 = arith.constant 0 : index
    %c12 = arith.constant 12 : index
    %c0_119 = arith.constant 0 : index
    %131 = vector.load %arg14[%c0_118, %c12, %c0_119] : memref<2x32x256xf32, #tpu.memory_space<vmem>>, vector<2x1x256xf32>
    %132 = vector.shape_cast %131 : vector<2x1x256xf32> to vector<2x256xf32>
    %c0_120 = arith.constant 0 : index
    %c13 = arith.constant 13 : index
    %c0_121 = arith.constant 0 : index
    %133 = vector.load %arg14[%c0_120, %c13, %c0_121] : memref<2x32x256xf32, #tpu.memory_space<vmem>>, vector<2x1x256xf32>
    %134 = vector.shape_cast %133 : vector<2x1x256xf32> to vector<2x256xf32>
    %135 = arith.maximumf %132, %134 : vector<2x256xf32>
    %136 = vector.extract_strided_slice %135 {offsets = [0, 0], sizes = [2, 128], strides = [1, 1]} : vector<2x256xf32> to vector<2x128xf32>
    %137 = vector.extract_strided_slice %135 {offsets = [0, 128], sizes = [2, 128], strides = [1, 1]} : vector<2x256xf32> to vector<2x128xf32>
    %138 = arith.maximumf %136, %137 : vector<2x128xf32>
    %c6_122 = arith.constant 6 : index
    %c0_123 = arith.constant 0 : index
    %c0_124 = arith.constant 0 : index
    %139 = vector.load %arg5[%c6_122, %c0_123, %c0_124] : memref<16x128x32xf32, #tpu.memory_space<vmem>>, vector<1x128x32xf32>
    %140 = vector.shape_cast %139 : vector<1x128x32xf32> to vector<128x32xf32>
    %cst_125 = arith.constant dense<0.000000e+00> : vector<2x32xf32>
    %141 = tpu.matmul %138, %140, %cst_125 {dimension_numbers = #tpu.dot_dimension_numbers<[1], [0], [0], [1], [0, 0, 1, 1], [], []>} : vector<2x128xf32>, vector<128x32xf32>, vector<2x32xf32> -> vector<2x32xf32>
    %142 = arith.addf %130, %141 : vector<2x32xf32>
    %c0_126 = arith.constant 0 : index
    %c14 = arith.constant 14 : index
    %c0_127 = arith.constant 0 : index
    %143 = vector.load %arg14[%c0_126, %c14, %c0_127] : memref<2x32x256xf32, #tpu.memory_space<vmem>>, vector<2x1x256xf32>
    %144 = vector.shape_cast %143 : vector<2x1x256xf32> to vector<2x256xf32>
    %c0_128 = arith.constant 0 : index
    %c15 = arith.constant 15 : index
    %c0_129 = arith.constant 0 : index
    %145 = vector.load %arg14[%c0_128, %c15, %c0_129] : memref<2x32x256xf32, #tpu.memory_space<vmem>>, vector<2x1x256xf32>
    %146 = vector.shape_cast %145 : vector<2x1x256xf32> to vector<2x256xf32>
    %147 = arith.maximumf %144, %146 : vector<2x256xf32>
    %148 = vector.extract_strided_slice %147 {offsets = [0, 0], sizes = [2, 128], strides = [1, 1]} : vector<2x256xf32> to vector<2x128xf32>
    %149 = vector.extract_strided_slice %147 {offsets = [0, 128], sizes = [2, 128], strides = [1, 1]} : vector<2x256xf32> to vector<2x128xf32>
    %150 = arith.maximumf %148, %149 : vector<2x128xf32>
    %c7_130 = arith.constant 7 : index
    %c0_131 = arith.constant 0 : index
    %c0_132 = arith.constant 0 : index
    %151 = vector.load %arg5[%c7_130, %c0_131, %c0_132] : memref<16x128x32xf32, #tpu.memory_space<vmem>>, vector<1x128x32xf32>
    %152 = vector.shape_cast %151 : vector<1x128x32xf32> to vector<128x32xf32>
    %cst_133 = arith.constant dense<0.000000e+00> : vector<2x32xf32>
    %153 = tpu.matmul %150, %152, %cst_133 {dimension_numbers = #tpu.dot_dimension_numbers<[1], [0], [0], [1], [0, 0, 1, 1], [], []>} : vector<2x128xf32>, vector<128x32xf32>, vector<2x32xf32> -> vector<2x32xf32>
    %154 = arith.addf %142, %153 : vector<2x32xf32>
    %c0_134 = arith.constant 0 : index
    %c16 = arith.constant 16 : index
    %c0_135 = arith.constant 0 : index
    %155 = vector.load %arg14[%c0_134, %c16, %c0_135] : memref<2x32x256xf32, #tpu.memory_space<vmem>>, vector<2x1x256xf32>
    %156 = vector.shape_cast %155 : vector<2x1x256xf32> to vector<2x256xf32>
    %c0_136 = arith.constant 0 : index
    %c17 = arith.constant 17 : index
    %c0_137 = arith.constant 0 : index
    %157 = vector.load %arg14[%c0_136, %c17, %c0_137] : memref<2x32x256xf32, #tpu.memory_space<vmem>>, vector<2x1x256xf32>
    %158 = vector.shape_cast %157 : vector<2x1x256xf32> to vector<2x256xf32>
    %159 = arith.maximumf %156, %158 : vector<2x256xf32>
    %160 = vector.extract_strided_slice %159 {offsets = [0, 0], sizes = [2, 128], strides = [1, 1]} : vector<2x256xf32> to vector<2x128xf32>
    %161 = vector.extract_strided_slice %159 {offsets = [0, 128], sizes = [2, 128], strides = [1, 1]} : vector<2x256xf32> to vector<2x128xf32>
    %162 = arith.maximumf %160, %161 : vector<2x128xf32>
    %c8_138 = arith.constant 8 : index
    %c0_139 = arith.constant 0 : index
    %c0_140 = arith.constant 0 : index
    %163 = vector.load %arg5[%c8_138, %c0_139, %c0_140] : memref<16x128x32xf32, #tpu.memory_space<vmem>>, vector<1x128x32xf32>
    %164 = vector.shape_cast %163 : vector<1x128x32xf32> to vector<128x32xf32>
    %cst_141 = arith.constant dense<0.000000e+00> : vector<2x32xf32>
    %165 = tpu.matmul %162, %164, %cst_141 {dimension_numbers = #tpu.dot_dimension_numbers<[1], [0], [0], [1], [0, 0, 1, 1], [], []>} : vector<2x128xf32>, vector<128x32xf32>, vector<2x32xf32> -> vector<2x32xf32>
    %166 = arith.addf %154, %165 : vector<2x32xf32>
    %c0_142 = arith.constant 0 : index
    %c18 = arith.constant 18 : index
    %c0_143 = arith.constant 0 : index
    %167 = vector.load %arg14[%c0_142, %c18, %c0_143] : memref<2x32x256xf32, #tpu.memory_space<vmem>>, vector<2x1x256xf32>
    %168 = vector.shape_cast %167 : vector<2x1x256xf32> to vector<2x256xf32>
    %c0_144 = arith.constant 0 : index
    %c19 = arith.constant 19 : index
    %c0_145 = arith.constant 0 : index
    %169 = vector.load %arg14[%c0_144, %c19, %c0_145] : memref<2x32x256xf32, #tpu.memory_space<vmem>>, vector<2x1x256xf32>
    %170 = vector.shape_cast %169 : vector<2x1x256xf32> to vector<2x256xf32>
    %171 = arith.maximumf %168, %170 : vector<2x256xf32>
    %172 = vector.extract_strided_slice %171 {offsets = [0, 0], sizes = [2, 128], strides = [1, 1]} : vector<2x256xf32> to vector<2x128xf32>
    %173 = vector.extract_strided_slice %171 {offsets = [0, 128], sizes = [2, 128], strides = [1, 1]} : vector<2x256xf32> to vector<2x128xf32>
    %174 = arith.maximumf %172, %173 : vector<2x128xf32>
    %c9_146 = arith.constant 9 : index
    %c0_147 = arith.constant 0 : index
    %c0_148 = arith.constant 0 : index
    %175 = vector.load %arg5[%c9_146, %c0_147, %c0_148] : memref<16x128x32xf32, #tpu.memory_space<vmem>>, vector<1x128x32xf32>
    %176 = vector.shape_cast %175 : vector<1x128x32xf32> to vector<128x32xf32>
    %cst_149 = arith.constant dense<0.000000e+00> : vector<2x32xf32>
    %177 = tpu.matmul %174, %176, %cst_149 {dimension_numbers = #tpu.dot_dimension_numbers<[1], [0], [0], [1], [0, 0, 1, 1], [], []>} : vector<2x128xf32>, vector<128x32xf32>, vector<2x32xf32> -> vector<2x32xf32>
    %178 = arith.addf %166, %177 : vector<2x32xf32>
    %c0_150 = arith.constant 0 : index
    %c20 = arith.constant 20 : index
    %c0_151 = arith.constant 0 : index
    %179 = vector.load %arg14[%c0_150, %c20, %c0_151] : memref<2x32x256xf32, #tpu.memory_space<vmem>>, vector<2x1x256xf32>
    %180 = vector.shape_cast %179 : vector<2x1x256xf32> to vector<2x256xf32>
    %c0_152 = arith.constant 0 : index
    %c21 = arith.constant 21 : index
    %c0_153 = arith.constant 0 : index
    %181 = vector.load %arg14[%c0_152, %c21, %c0_153] : memref<2x32x256xf32, #tpu.memory_space<vmem>>, vector<2x1x256xf32>
    %182 = vector.shape_cast %181 : vector<2x1x256xf32> to vector<2x256xf32>
    %183 = arith.maximumf %180, %182 : vector<2x256xf32>
    %184 = vector.extract_strided_slice %183 {offsets = [0, 0], sizes = [2, 128], strides = [1, 1]} : vector<2x256xf32> to vector<2x128xf32>
    %185 = vector.extract_strided_slice %183 {offsets = [0, 128], sizes = [2, 128], strides = [1, 1]} : vector<2x256xf32> to vector<2x128xf32>
    %186 = arith.maximumf %184, %185 : vector<2x128xf32>
    %c10_154 = arith.constant 10 : index
    %c0_155 = arith.constant 0 : index
    %c0_156 = arith.constant 0 : index
    %187 = vector.load %arg5[%c10_154, %c0_155, %c0_156] : memref<16x128x32xf32, #tpu.memory_space<vmem>>, vector<1x128x32xf32>
    %188 = vector.shape_cast %187 : vector<1x128x32xf32> to vector<128x32xf32>
    %cst_157 = arith.constant dense<0.000000e+00> : vector<2x32xf32>
    %189 = tpu.matmul %186, %188, %cst_157 {dimension_numbers = #tpu.dot_dimension_numbers<[1], [0], [0], [1], [0, 0, 1, 1], [], []>} : vector<2x128xf32>, vector<128x32xf32>, vector<2x32xf32> -> vector<2x32xf32>
    %190 = arith.addf %178, %189 : vector<2x32xf32>
    %c0_158 = arith.constant 0 : index
    %c22 = arith.constant 22 : index
    %c0_159 = arith.constant 0 : index
    %191 = vector.load %arg14[%c0_158, %c22, %c0_159] : memref<2x32x256xf32, #tpu.memory_space<vmem>>, vector<2x1x256xf32>
    %192 = vector.shape_cast %191 : vector<2x1x256xf32> to vector<2x256xf32>
    %c0_160 = arith.constant 0 : index
    %c23 = arith.constant 23 : index
    %c0_161 = arith.constant 0 : index
    %193 = vector.load %arg14[%c0_160, %c23, %c0_161] : memref<2x32x256xf32, #tpu.memory_space<vmem>>, vector<2x1x256xf32>
    %194 = vector.shape_cast %193 : vector<2x1x256xf32> to vector<2x256xf32>
    %195 = arith.maximumf %192, %194 : vector<2x256xf32>
    %196 = vector.extract_strided_slice %195 {offsets = [0, 0], sizes = [2, 128], strides = [1, 1]} : vector<2x256xf32> to vector<2x128xf32>
    %197 = vector.extract_strided_slice %195 {offsets = [0, 128], sizes = [2, 128], strides = [1, 1]} : vector<2x256xf32> to vector<2x128xf32>
    %198 = arith.maximumf %196, %197 : vector<2x128xf32>
    %c11_162 = arith.constant 11 : index
    %c0_163 = arith.constant 0 : index
    %c0_164 = arith.constant 0 : index
    %199 = vector.load %arg5[%c11_162, %c0_163, %c0_164] : memref<16x128x32xf32, #tpu.memory_space<vmem>>, vector<1x128x32xf32>
    %200 = vector.shape_cast %199 : vector<1x128x32xf32> to vector<128x32xf32>
    %cst_165 = arith.constant dense<0.000000e+00> : vector<2x32xf32>
    %201 = tpu.matmul %198, %200, %cst_165 {dimension_numbers = #tpu.dot_dimension_numbers<[1], [0], [0], [1], [0, 0, 1, 1], [], []>} : vector<2x128xf32>, vector<128x32xf32>, vector<2x32xf32> -> vector<2x32xf32>
    %202 = arith.addf %190, %201 : vector<2x32xf32>
    %c0_166 = arith.constant 0 : index
    %c24 = arith.constant 24 : index
    %c0_167 = arith.constant 0 : index
    %203 = vector.load %arg14[%c0_166, %c24, %c0_167] : memref<2x32x256xf32, #tpu.memory_space<vmem>>, vector<2x1x256xf32>
    %204 = vector.shape_cast %203 : vector<2x1x256xf32> to vector<2x256xf32>
    %c0_168 = arith.constant 0 : index
    %c25 = arith.constant 25 : index
    %c0_169 = arith.constant 0 : index
    %205 = vector.load %arg14[%c0_168, %c25, %c0_169] : memref<2x32x256xf32, #tpu.memory_space<vmem>>, vector<2x1x256xf32>
    %206 = vector.shape_cast %205 : vector<2x1x256xf32> to vector<2x256xf32>
    %207 = arith.maximumf %204, %206 : vector<2x256xf32>
    %208 = vector.extract_strided_slice %207 {offsets = [0, 0], sizes = [2, 128], strides = [1, 1]} : vector<2x256xf32> to vector<2x128xf32>
    %209 = vector.extract_strided_slice %207 {offsets = [0, 128], sizes = [2, 128], strides = [1, 1]} : vector<2x256xf32> to vector<2x128xf32>
    %210 = arith.maximumf %208, %209 : vector<2x128xf32>
    %c12_170 = arith.constant 12 : index
    %c0_171 = arith.constant 0 : index
    %c0_172 = arith.constant 0 : index
    %211 = vector.load %arg5[%c12_170, %c0_171, %c0_172] : memref<16x128x32xf32, #tpu.memory_space<vmem>>, vector<1x128x32xf32>
    %212 = vector.shape_cast %211 : vector<1x128x32xf32> to vector<128x32xf32>
    %cst_173 = arith.constant dense<0.000000e+00> : vector<2x32xf32>
    %213 = tpu.matmul %210, %212, %cst_173 {dimension_numbers = #tpu.dot_dimension_numbers<[1], [0], [0], [1], [0, 0, 1, 1], [], []>} : vector<2x128xf32>, vector<128x32xf32>, vector<2x32xf32> -> vector<2x32xf32>
    %214 = arith.addf %202, %213 : vector<2x32xf32>
    %c0_174 = arith.constant 0 : index
    %c26 = arith.constant 26 : index
    %c0_175 = arith.constant 0 : index
    %215 = vector.load %arg14[%c0_174, %c26, %c0_175] : memref<2x32x256xf32, #tpu.memory_space<vmem>>, vector<2x1x256xf32>
    %216 = vector.shape_cast %215 : vector<2x1x256xf32> to vector<2x256xf32>
    %c0_176 = arith.constant 0 : index
    %c27 = arith.constant 27 : index
    %c0_177 = arith.constant 0 : index
    %217 = vector.load %arg14[%c0_176, %c27, %c0_177] : memref<2x32x256xf32, #tpu.memory_space<vmem>>, vector<2x1x256xf32>
    %218 = vector.shape_cast %217 : vector<2x1x256xf32> to vector<2x256xf32>
    %219 = arith.maximumf %216, %218 : vector<2x256xf32>
    %220 = vector.extract_strided_slice %219 {offsets = [0, 0], sizes = [2, 128], strides = [1, 1]} : vector<2x256xf32> to vector<2x128xf32>
    %221 = vector.extract_strided_slice %219 {offsets = [0, 128], sizes = [2, 128], strides = [1, 1]} : vector<2x256xf32> to vector<2x128xf32>
    %222 = arith.maximumf %220, %221 : vector<2x128xf32>
    %c13_178 = arith.constant 13 : index
    %c0_179 = arith.constant 0 : index
    %c0_180 = arith.constant 0 : index
    %223 = vector.load %arg5[%c13_178, %c0_179, %c0_180] : memref<16x128x32xf32, #tpu.memory_space<vmem>>, vector<1x128x32xf32>
    %224 = vector.shape_cast %223 : vector<1x128x32xf32> to vector<128x32xf32>
    %cst_181 = arith.constant dense<0.000000e+00> : vector<2x32xf32>
    %225 = tpu.matmul %222, %224, %cst_181 {dimension_numbers = #tpu.dot_dimension_numbers<[1], [0], [0], [1], [0, 0, 1, 1], [], []>} : vector<2x128xf32>, vector<128x32xf32>, vector<2x32xf32> -> vector<2x32xf32>
    %226 = arith.addf %214, %225 : vector<2x32xf32>
    %c0_182 = arith.constant 0 : index
    %c28 = arith.constant 28 : index
    %c0_183 = arith.constant 0 : index
    %227 = vector.load %arg14[%c0_182, %c28, %c0_183] : memref<2x32x256xf32, #tpu.memory_space<vmem>>, vector<2x1x256xf32>
    %228 = vector.shape_cast %227 : vector<2x1x256xf32> to vector<2x256xf32>
    %c0_184 = arith.constant 0 : index
    %c29 = arith.constant 29 : index
    %c0_185 = arith.constant 0 : index
    %229 = vector.load %arg14[%c0_184, %c29, %c0_185] : memref<2x32x256xf32, #tpu.memory_space<vmem>>, vector<2x1x256xf32>
    %230 = vector.shape_cast %229 : vector<2x1x256xf32> to vector<2x256xf32>
    %231 = arith.maximumf %228, %230 : vector<2x256xf32>
    %232 = vector.extract_strided_slice %231 {offsets = [0, 0], sizes = [2, 128], strides = [1, 1]} : vector<2x256xf32> to vector<2x128xf32>
    %233 = vector.extract_strided_slice %231 {offsets = [0, 128], sizes = [2, 128], strides = [1, 1]} : vector<2x256xf32> to vector<2x128xf32>
    %234 = arith.maximumf %232, %233 : vector<2x128xf32>
    %c14_186 = arith.constant 14 : index
    %c0_187 = arith.constant 0 : index
    %c0_188 = arith.constant 0 : index
    %235 = vector.load %arg5[%c14_186, %c0_187, %c0_188] : memref<16x128x32xf32, #tpu.memory_space<vmem>>, vector<1x128x32xf32>
    %236 = vector.shape_cast %235 : vector<1x128x32xf32> to vector<128x32xf32>
    %cst_189 = arith.constant dense<0.000000e+00> : vector<2x32xf32>
    %237 = tpu.matmul %234, %236, %cst_189 {dimension_numbers = #tpu.dot_dimension_numbers<[1], [0], [0], [1], [0, 0, 1, 1], [], []>} : vector<2x128xf32>, vector<128x32xf32>, vector<2x32xf32> -> vector<2x32xf32>
    %238 = arith.addf %226, %237 : vector<2x32xf32>
    %c0_190 = arith.constant 0 : index
    %c30 = arith.constant 30 : index
    %c0_191 = arith.constant 0 : index
    %239 = vector.load %arg14[%c0_190, %c30, %c0_191] : memref<2x32x256xf32, #tpu.memory_space<vmem>>, vector<2x1x256xf32>
    %240 = vector.shape_cast %239 : vector<2x1x256xf32> to vector<2x256xf32>
    %c0_192 = arith.constant 0 : index
    %c31 = arith.constant 31 : index
    %c0_193 = arith.constant 0 : index
    %241 = vector.load %arg14[%c0_192, %c31, %c0_193] : memref<2x32x256xf32, #tpu.memory_space<vmem>>, vector<2x1x256xf32>
    %242 = vector.shape_cast %241 : vector<2x1x256xf32> to vector<2x256xf32>
    %243 = arith.maximumf %240, %242 : vector<2x256xf32>
    %244 = vector.extract_strided_slice %243 {offsets = [0, 0], sizes = [2, 128], strides = [1, 1]} : vector<2x256xf32> to vector<2x128xf32>
    %245 = vector.extract_strided_slice %243 {offsets = [0, 128], sizes = [2, 128], strides = [1, 1]} : vector<2x256xf32> to vector<2x128xf32>
    %246 = arith.maximumf %244, %245 : vector<2x128xf32>
    %c15_194 = arith.constant 15 : index
    %c0_195 = arith.constant 0 : index
    %c0_196 = arith.constant 0 : index
    %247 = vector.load %arg5[%c15_194, %c0_195, %c0_196] : memref<16x128x32xf32, #tpu.memory_space<vmem>>, vector<1x128x32xf32>
    %248 = vector.shape_cast %247 : vector<1x128x32xf32> to vector<128x32xf32>
    %cst_197 = arith.constant dense<0.000000e+00> : vector<2x32xf32>
    %249 = tpu.matmul %246, %248, %cst_197 {dimension_numbers = #tpu.dot_dimension_numbers<[1], [0], [0], [1], [0, 0, 1, 1], [], []>} : vector<2x128xf32>, vector<128x32xf32>, vector<2x32xf32> -> vector<2x32xf32>
    %250 = arith.addf %238, %249 : vector<2x32xf32>
    %c0_198 = arith.constant 0 : index
    %c0_199 = arith.constant 0 : index
    %251 = vector.load %arg6[%c0_198, %c0_199] : memref<1x32xf32, #tpu.memory_space<vmem>>, vector<1x32xf32>
    %252 = vector.broadcast %251 : vector<1x32xf32> to vector<2x32xf32>
    %253 = arith.addf %250, %252 : vector<2x32xf32>
    %cst_200 = arith.constant 0.000000e+00 : f32
    %254 = vector.broadcast %cst_200 : f32 to vector<2x32xf32>
    %255 = arith.maximumf %253, %254 : vector<2x32xf32>
    %c0_201 = arith.constant 0 : index
    %c0_202 = arith.constant 0 : index
    %256 = vector.load %arg7[%c0_201, %c0_202] : memref<32x32xf32, #tpu.memory_space<vmem>>, vector<32x32xf32>
    %cst_203 = arith.constant dense<0.000000e+00> : vector<2x32xf32>
    %257 = tpu.matmul %255, %256, %cst_203 {dimension_numbers = #tpu.dot_dimension_numbers<[1], [0], [0], [1], [0, 0, 1, 1], [], []>} : vector<2x32xf32>, vector<32x32xf32>, vector<2x32xf32> -> vector<2x32xf32>
    %c0_204 = arith.constant 0 : index
    %c0_205 = arith.constant 0 : index
    %258 = vector.load %arg8[%c0_204, %c0_205] : memref<1x32xf32, #tpu.memory_space<vmem>>, vector<1x32xf32>
    %259 = vector.broadcast %258 : vector<1x32xf32> to vector<2x32xf32>
    %260 = arith.addf %257, %259 : vector<2x32xf32>
    %cst_206 = arith.constant 0.000000e+00 : f32
    %261 = vector.broadcast %cst_206 : f32 to vector<2x32xf32>
    %262 = arith.maximumf %260, %261 : vector<2x32xf32>
    %c0_207 = arith.constant 0 : index
    %c0_208 = arith.constant 0 : index
    %263 = vector.load %arg9[%c0_207, %c0_208] : memref<32x16xf32, #tpu.memory_space<vmem>>, vector<32x16xf32>
    %cst_209 = arith.constant dense<0.000000e+00> : vector<2x16xf32>
    %264 = tpu.matmul %262, %263, %cst_209 {dimension_numbers = #tpu.dot_dimension_numbers<[1], [0], [0], [1], [0, 0, 1, 1], [], []>} : vector<2x32xf32>, vector<32x16xf32>, vector<2x16xf32> -> vector<2x16xf32>
    %c0_210 = arith.constant 0 : index
    %c0_211 = arith.constant 0 : index
    %265 = vector.load %arg10[%c0_210, %c0_211] : memref<1x16xf32, #tpu.memory_space<vmem>>, vector<1x16xf32>
    %266 = vector.broadcast %265 : vector<1x16xf32> to vector<2x16xf32>
    %267 = arith.addf %264, %266 : vector<2x16xf32>
    %268 = arith.mulf %267, %267 : vector<2x16xf32>
    %cst_212 = arith.constant dense<0.000000e+00> : vector<2xf32>
    %269 = vector.multi_reduction <add>, %268, %cst_212 [1] : vector<2x16xf32> to vector<2xf32>
    %270 = vector.shape_cast %269 : vector<2xf32> to vector<2x1xf32>
    %cst_213 = arith.constant 1.000000e-24 : f32
    %271 = vector.broadcast %cst_213 : f32 to vector<2x1xf32>
    %272 = arith.maximumf %270, %271 : vector<2x1xf32>
    %273 = math.rsqrt %272 : vector<2x1xf32>
    %274 = vector.broadcast %273 : vector<2x1xf32> to vector<2x16xf32>
    %275 = arith.mulf %267, %274 : vector<2x16xf32>
    %c0_214 = arith.constant 0 : index
    %c0_215 = arith.constant 0 : index
    %276 = vector.load %arg11[%c0_214, %c0_215] : memref<2x16xf32, #tpu.memory_space<vmem>>, vector<2x16xf32>
    tpu.vector_store %arg11[%c0_214, %c0_215], %275 {strides = array<i32>} : memref<2x16xf32, #tpu.memory_space<vmem>>, vector<2x16xf32>,
    return
  }
}

</mosaic_0001>

<llo_original>
// kernel: _forward_pair.2
$region0: #{_forward_pair.2}
  #allocation0 [shape = 'u32[]', space=smem, size = 0x4, offset = 0x4, fixed_abs, tag = 'smem constant byte address 0x4 - core index']
  #allocation1 [shape = 'u32[72,128]{1,0:T(1,128)}', space=vmem, size = 0x9000, scoped, tag = 'internal scratch']
  #allocation2 [shape = 'f32[2,18,64]{2,1,0:T(8,128)}', space=vmem, size = 0x6000, scoped, tag = 'scratch operand']
  #allocation3 [shape = 'f32[2,18,128]{2,1,0:T(8,128)}', space=vmem, size = 0x6000, scoped, tag = 'scratch operand']
  #allocation4 [shape = 'f32[2,16,128]{2,1,0:T(8,128)}', space=vmem, size = 0x4000, scoped, tag = 'scratch operand']
  %s0 = inlined_call_operand.vmem [shape: f32[2,16,64], index: 0, kind: input, shape index: {}]
  %s1 = inlined_call_operand.vmem [shape: f32[3,64,128], index: 1, kind: input, shape index: {}]
  %s2 = inlined_call_operand.vmem [shape: f32[1,128], index: 2, kind: input, shape index: {}]
  %s3 = inlined_call_operand.vmem [shape: f32[3,128,128], index: 3, kind: input, shape index: {}]
  %s4 = inlined_call_operand.vmem [shape: f32[1,128], index: 4, kind: input, shape index: {}]
  %s5 = inlined_call_operand.vmem [shape: f32[16,128,32], index: 5, kind: input, shape index: {}]
  %s6 = inlined_call_operand.vmem [shape: f32[1,32], index: 6, kind: input, shape index: {}]
  %s7 = inlined_call_operand.vmem [shape: f32[32,32], index: 7, kind: input, shape index: {}]
  %s8 = inlined_call_operand.vmem [shape: f32[1,32], index: 8, kind: input, shape index: {}]
  %s9 = inlined_call_operand.vmem [shape: f32[32,16], index: 9, kind: input, shape index: {}]
  %s10 = inlined_call_operand.vmem [shape: f32[1,16], index: 10, kind: input, shape index: {}]
  %s11 = inlined_call_operand.hbm [shape: f32[2,16], index: 11, kind: output, shape index: {}]
  %s12 = sld [smem:[#allocation0]]
  $region54: #{_forward_pair.2} parent=0
    _
  %s14 = ssub.s32 1, %s12
  %s15 = scalar_select 0, %s14, %s12
  $region1: #{_forward_pair.2} parent=0
    #allocation5 [shape = 'u8[1024]{0}', space=vmem, size = 0x400, scoped, tag = 'output window, operand 0, single buffered']
    #allocation6 [shape = 's32[1]{0}', space=sflag, size = 0x4, scoped, tag = 'scoped memory for _forward_pair.2']
    %16 = vsyncpa [#allocation6], 0
    // Predicated region
    $region2: #{_forward_pair.2} parent=1 // pred_check
      _
    $region3: #{_forward_pair.2} parent=1 // pred_check_branch
      %18 = sbr.rel (0) target = $region5
    $region4: #{_forward_pair.2} parent=1 // pred_region
      _
    $region5: #{_forward_pair.2} parent=1 // pred_fallthru
      _
    // Predicated region
    $region6: #{_forward_pair.2} parent=1 // pred_check
      _
    $region7: #{_forward_pair.2} parent=1 // pred_check_branch
      %20 = sbr.rel (0) target = $region9
    $region8: #{_forward_pair.2} parent=1 // pred_region
      _
    $region9: #{_forward_pair.2} parent=1 // pred_fallthru
      _
    // Predicated region
    $region10: #{_forward_pair.2} parent=1 // pred_check
      _
    $region11: #{_forward_pair.2} parent=1 // pred_check_branch
      %22 = sbr.rel (0) target = $region13
    $region12: #{_forward_pair.2} parent=1 // pred_region
      _
    $region13: #{_forward_pair.2} parent=1 // pred_fallthru
      _
    // Predicated region
    $region14: #{_forward_pair.2} parent=1 // pred_check
      _
    $region15: #{_forward_pair.2} parent=1 // pred_check_branch
      %24 = sbr.rel (0) target = $region17
    $region16: #{_forward_pair.2} parent=1 // pred_region
      _
    $region17: #{_forward_pair.2} parent=1 // pred_fallthru
      _
    // Predicated region
    $region18: #{_forward_pair.2} parent=1 // pred_check
      _
    $region19: #{_forward_pair.2} parent=1 // pred_check_branch
      %26 = sbr.rel (0) target = $region21
    $region20: #{_forward_pair.2} parent=1 // pred_region
      _
    $region21: #{_forward_pair.2} parent=1 // pred_fallthru
      _
    // Predicated region
    $region22: #{_forward_pair.2} parent=1 // pred_check
      _
    $region23: #{_forward_pair.2} parent=1 // pred_check_branch
      %28 = sbr.rel (0) target = $region25
    $region24: #{_forward_pair.2} parent=1 // pred_region
      _
    $region25: #{_forward_pair.2} parent=1 // pred_fallthru
      _
    // Predicated region
    $region26: #{_forward_pair.2} parent=1 // pred_check
      _
    $region27: #{_forward_pair.2} parent=1 // pred_check_branch
      %30 = sbr.rel (0) target = $region29
    $region28: #{_forward_pair.2} parent=1 // pred_region
      _
    $region29: #{_forward_pair.2} parent=1 // pred_fallthru
      _
    // Predicated region
    $region30: #{_forward_pair.2} parent=1 // pred_check
      _
    $region31: #{_forward_pair.2} parent=1 // pred_check_branch
      %32 = sbr.rel (0) target = $region33
    $region32: #{_forward_pair.2} parent=1 // pred_region
      _
    $region33: #{_forward_pair.2} parent=1 // pred_fallthru
      _
    // Predicated region
    $region34: #{_forward_pair.2} parent=1 // pred_check
      _
    $region35: #{_forward_pair.2} parent=1 // pred_check_branch
      %34 = sbr.rel (0) target = $region37
    $region36: #{_forward_pair.2} parent=1 // pred_region
      _
    $region37: #{_forward_pair.2} parent=1 // pred_fallthru
      _
    // Predicated region
    $region38: #{_forward_pair.2} parent=1 // pred_check
      _
    $region39: #{_forward_pair.2} parent=1 // pred_check_branch
      %36 = sbr.rel (0) target = $region41
    $region40: #{_forward_pair.2} parent=1 // pred_region
      _
    $region41: #{_forward_pair.2} parent=1 // pred_fallthru
      _
    // Predicated region
    $region42: #{_forward_pair.2} parent=1 // pred_check
      _
    $region43: #{_forward_pair.2} parent=1 // pred_check_branch
      %38 = sbr.rel (0) target = $region45
    $region44: #{_forward_pair.2} parent=1 // pred_region
      _
    $region45: #{_forward_pair.2} parent=1 // pred_fallthru
      _
    %vm39 = vcmask 523264
    %40 = vst.msk [vmem:[#allocation2] sm:$0xff] %vm39, 0.0
    %41 = vst.msk [vmem:[#allocation2 + $0x8] sm:$0xff] %vm39, 0.0
    %vm42 = vcmask 517120
    %43 = vst.msk [vmem:[#allocation2 + $0x10] sm:$0x3] %vm42, 0.0
    %44 = vst.msk [vmem:[#allocation2 + $0x18] sm:$0xff] %vm39, 0.0
    %45 = vst.msk [vmem:[#allocation2 + $0x20] sm:$0xff] %vm39, 0.0
    %46 = vst.msk [vmem:[#allocation2 + $0x28] sm:$0x3] %vm42, 0.0
    %v47 = vld [vmem:[%s0] sm:$0xff]
    %v48 = vld [vmem:[%s0 + $0x8] sm:$0xff]
    %v49 = vld [vmem:[%s0 + $0x10] sm:$0xff]
    %v50 = vld [vmem:[%s0 + $0x18] sm:$0xff]
    %51 = vst.msk [vmem:[#allocation2 + $0x1] sm:$0xff] %vm39, %v47
    %52 = vst.msk [vmem:[#allocation2 + $0x9] sm:$0xff] %vm39, %v48
    %53 = vst.msk [vmem:[#allocation2 + $0x19] sm:$0xff] %vm39, %v49
    %54 = vst.msk [vmem:[#allocation2 + $0x21] sm:$0xff] %vm39, %v50
    %v55 = vld [vmem:[#allocation2] sm:$0xff]
    %v56 = vld [vmem:[#allocation2 + $0x8] sm:$0xff]
    %v57 = vld [vmem:[#allocation2 + $0x18] sm:$0xff]
    %v58 = vld [vmem:[#allocation2 + $0x20] sm:$0xff]
    %v59 = vld [vmem:[%s1] sm:$0xff]
    %v60 = vld [vmem:[%s1 + $0x8] sm:$0xff]
    %v61 = vld [vmem:[%s1 + $0x10] sm:$0xff]
    %v62 = vld [vmem:[%s1 + $0x18] sm:$0xff]
    %v63 = vld [vmem:[%s1 + $0x20] sm:$0xff]
    %v64 = vld [vmem:[%s1 + $0x28] sm:$0xff]
    %v65 = vld [vmem:[%s1 + $0x30] sm:$0xff]
    %v66 = vld [vmem:[%s1 + $0x38] sm:$0xff]
    %v67 = vld [vmem:[#allocation2 + $0x1] sm:$0xff]
    %v68 = vld [vmem:[#allocation2 + $0x9] sm:$0xff]
    %v69 = vld [vmem:[#allocation2 + $0x19] sm:$0xff]
    %v70 = vld [vmem:[#allocation2 + $0x21] sm:$0xff]
    %s71 = scalar_lea.vmem %s1, 64
    %v72 = vld [vmem:[%s71] sm:$0xff]
    %v73 = vld [vmem:[%s71 + $0x8] sm:$0xff]
    %v74 = vld [vmem:[%s71 + $0x10] sm:$0xff]
    %v75 = vld [vmem:[%s71 + $0x18] sm:$0xff]
    %v76 = vld [vmem:[%s71 + $0x20] sm:$0xff]
    %v77 = vld [vmem:[%s71 + $0x28] sm:$0xff]
    %v78 = vld [vmem:[%s71 + $0x30] sm:$0xff]
    %v79 = vld [vmem:[%s71 + $0x38] sm:$0xff]
    %v81 = vsel %vm39, %v67, 0
    %v84 = vsel %vm39, %v68, 0
    %v87 = vsel %vm39, %v69, 0
    %v90 = vsel %vm39, %v70, 0
    %92 = vmatpush.msra.mxu0 0.0
    %93 = vmatpush.msra.mxu0 0.0
    %94 = vmatpush.msra.mxu0 0.0
    %95 = vmatpush.msra.mxu0 0.0
    %96 = vmatpush.msra.mxu0 0.0
    %97 = vmatpush.msra.mxu0 0.0
    %98 = vmatpush.msra.mxu0 0.0
    %99 = vmatpush.msra.mxu0 0.0
    %100 = vmatpush.msra.mxu0 %v79
    %101 = vmatpush.msra.mxu0 %v78
    %102 = vmatpush.msra.mxu0 %v77
    %103 = vmatpush.msra.mxu0 %v76
    %104 = vmatpush.msra.mxu0 %v75
    %105 = vmatpush.msra.mxu0 %v74
    %106 = vmatpush.msra.mxu0 %v73
    %107 = vmatpush.msra.mxu0 %v72
    %108 = vmatmul.f32.gmra.mxu0 %v81
    %v109 = vpop.f32.mrf.mxu0
    %v110 = vadd.f32 0.0, %v109
    %111 = vmatmul.f32.gmra.mxu0 %v84
    %v112 = vpop.f32.mrf.mxu0
    %v113 = vadd.f32 0.0, %v112
    %114 = vmatmul.f32.gmra.mxu0 %v87
    %v115 = vpop.f32.mrf.mxu0
    %v116 = vadd.f32 0.0, %v115
    %117 = vmatmul.f32.gmra.mxu0 %v90
    %v118 = vpop.f32.mrf.mxu0
    %v119 = vadd.f32 0.0, %v118
    %120 = vdwg.mxu0
    %v122 = vsel %vm39, %v55, 0
    %v125 = vsel %vm39, %v56, 0
    %v128 = vsel %vm39, %v57, 0
    %v131 = vsel %vm39, %v58, 0
    %133 = vmatpush.msra.mxu0 0.0
    %134 = vmatpush.msra.mxu0 0.0
    %135 = vmatpush.msra.mxu0 0.0
    %136 = vmatpush.msra.mxu0 0.0
    %137 = vmatpush.msra.mxu0 0.0
    %138 = vmatpush.msra.mxu0 0.0
    %139 = vmatpush.msra.mxu0 0.0
    %140 = vmatpush.msra.mxu0 0.0
    %141 = vmatpush.msra.mxu0 %v66
    %142 = vmatpush.msra.mxu0 %v65
    %143 = vmatpush.msra.mxu0 %v64
    %144 = vmatpush.msra.mxu0 %v63
    %145 = vmatpush.msra.mxu0 %v62
    %146 = vmatpush.msra.mxu0 %v61
    %147 = vmatpush.msra.mxu0 %v60
    %148 = vmatpush.msra.mxu0 %v59
    %149 = vmatmul.f32.gmra.mxu0 %v122
    %v150 = vpop.f32.mrf.mxu0
    %v151 = vadd.f32 %v110, %v150
    %152 = vmatmul.f32.gmra.mxu0 %v125
    %v153 = vpop.f32.mrf.mxu0
    %v154 = vadd.f32 %v113, %v153
    %155 = vmatmul.f32.gmra.mxu0 %v128
    %v156 = vpop.f32.mrf.mxu0
    %v157 = vadd.f32 %v116, %v156
    %158 = vmatmul.f32.gmra.mxu0 %v131
    %v159 = vpop.f32.mrf.mxu0
    %v160 = vadd.f32 %v119, %v159
    %161 = vdwg.mxu0
    %v162 = vld [vmem:[#allocation2 + $0x2] sm:$0xff]
    %v163 = vld [vmem:[#allocation2 + $0xa] sm:$0xff]
    %v164 = vld [vmem:[#allocation2 + $0x1a] sm:$0xff]
    %v165 = vld [vmem:[#allocation2 + $0x22] sm:$0xff]
    %s166 = scalar_lea.vmem %s1, 128
    %v167 = vld [vmem:[%s166] sm:$0xff]
    %v168 = vld [vmem:[%s166 + $0x8] sm:$0xff]
    %v169 = vld [vmem:[%s166 + $0x10] sm:$0xff]
    %v170 = vld [vmem:[%s166 + $0x18] sm:$0xff]
    %v171 = vld [vmem:[%s166 + $0x20] sm:$0xff]
    %v172 = vld [vmem:[%s166 + $0x28] sm:$0xff]
    %v173 = vld [vmem:[%s166 + $0x30] sm:$0xff]
    %v174 = vld [vmem:[%s166 + $0x38] sm:$0xff]
    %v176 = vsel %vm39, %v162, 0
    %v179 = vsel %vm39, %v163, 0
    %v182 = vsel %vm39, %v164, 0
    %v185 = vsel %vm39, %v165, 0
    %187 = vmatpush.msra.mxu0 0.0
    %188 = vmatpush.msra.mxu0 0.0
    %189 = vmatpush.msra.mxu0 0.0
    %190 = vmatpush.msra.mxu0 0.0
    %191 = vmatpush.msra.mxu0 0.0
    %192 = vmatpush.msra.mxu0 0.0
    %193 = vmatpush.msra.mxu0 0.0
    %194 = vmatpush.msra.mxu0 0.0
    %195 = vmatpush.msra.mxu0 %v174
    %196 = vmatpush.msra.mxu0 %v173
    %197 = vmatpush.msra.mxu0 %v172
    %198 = vmatpush.msra.mxu0 %v171
    %199 = vmatpush.msra.mxu0 %v170
    %200 = vmatpush.msra.mxu0 %v169
    %201 = vmatpush.msra.mxu0 %v168
    %202 = vmatpush.msra.mxu0 %v167
    %203 = vmatmul.f32.gmra.mxu0 %v176
    %v204 = vpop.f32.mrf.mxu0
    %v205 = vadd.f32 0.0, %v204
    %206 = vmatmul.f32.gmra.mxu0 %v179
    %v207 = vpop.f32.mrf.mxu0
    %v208 = vadd.f32 0.0, %v207
    %209 = vmatmul.f32.gmra.mxu0 %v182
    %v210 = vpop.f32.mrf.mxu0
    %v211 = vadd.f32 0.0, %v210
    %212 = vmatmul.f32.gmra.mxu0 %v185
    %v213 = vpop.f32.mrf.mxu0
    %v214 = vadd.f32 0.0, %v213
    %215 = vdwg.mxu0
    %v216 = vadd.f32 %v151, %v205
    %v217 = vadd.f32 %v154, %v208
    %v218 = vadd.f32 %v157, %v211
    %v219 = vadd.f32 %v160, %v214
    %v220 = vld [vmem:[%s2] sm:$0x1]
    %v222 = vperm.slane %v220, 0
    %v224 = vadd.f32 %v216, %v222
    %v225 = vadd.f32 %v217, %v222
    %v226 = vadd.f32 %v218, %v222
    %v227 = vadd.f32 %v219, %v222
    %v228 = vmax.f32 %v224, 0.0
    %v229 = vmax.f32 %v225, 0.0
    %v230 = vmax.f32 %v226, 0.0
    %v231 = vmax.f32 %v227, 0.0
    %232 = vst [vmem:[#allocation3] sm:$0xff] 0.0
    %233 = vst [vmem:[#allocation3 + $0x8] sm:$0xff] 0.0
    %234 = vst [vmem:[#allocation3 + $0x10] sm:$0x3] 0.0
    %235 = vst [vmem:[#allocation3 + $0x18] sm:$0xff] 0.0
    %236 = vst [vmem:[#allocation3 + $0x20] sm:$0xff] 0.0
    %237 = vst [vmem:[#allocation3 + $0x28] sm:$0x3] 0.0
    %238 = vst [vmem:[#allocation3 + $0x1] sm:$0xff] %v228
    %239 = vst [vmem:[#allocation3 + $0x9] sm:$0xff] %v229
    %240 = vst [vmem:[#allocation3 + $0x19] sm:$0xff] %v230
    %241 = vst [vmem:[#allocation3 + $0x21] sm:$0xff] %v231
    %v242 = vld [vmem:[#allocation3] sm:$0xff]
    %v243 = vld [vmem:[#allocation3 + $0x8] sm:$0xff]
    %v244 = vld [vmem:[#allocation3 + $0x18] sm:$0xff]
    %v245 = vld [vmem:[#allocation3 + $0x20] sm:$0xff]
    %v246 = vld [vmem:[%s3] sm:$0xff]
    %v247 = vld [vmem:[%s3 + $0x8] sm:$0xff]
    %v248 = vld [vmem:[%s3 + $0x10] sm:$0xff]
    %v249 = vld [vmem:[%s3 + $0x18] sm:$0xff]
    %v250 = vld [vmem:[%s3 + $0x20] sm:$0xff]
    %v251 = vld [vmem:[%s3 + $0x28] sm:$0xff]
    %v252 = vld [vmem:[%s3 + $0x30] sm:$0xff]
    %v253 = vld [vmem:[%s3 + $0x38] sm:$0xff]
    %v254 = vld [vmem:[%s3 + $0x40] sm:$0xff]
    %v255 = vld [vmem:[%s3 + $0x48] sm:$0xff]
    %v256 = vld [vmem:[%s3 + $0x50] sm:$0xff]
    %v257 = vld [vmem:[%s3 + $0x58] sm:$0xff]
    %v258 = vld [vmem:[%s3 + $0x60] sm:$0xff]
    %v259 = vld [vmem:[%s3 + $0x68] sm:$0xff]
    %v260 = vld [vmem:[%s3 + $0x70] sm:$0xff]
    %v261 = vld [vmem:[%s3 + $0x78] sm:$0xff]
    %v262 = vld [vmem:[#allocation3 + $0x1] sm:$0xff]
    %v263 = vld [vmem:[#allocation3 + $0x9] sm:$0xff]
    %v264 = vld [vmem:[#allocation3 + $0x19] sm:$0xff]
    %v265 = vld [vmem:[#allocation3 + $0x21] sm:$0xff]
    %s266 = scalar_lea.vmem %s3, 128
    %v267 = vld [vmem:[%s266] sm:$0xff]
    %v268 = vld [vmem:[%s266 + $0x8] sm:$0xff]
    %v269 = vld [vmem:[%s266 + $0x10] sm:$0xff]
    %v270 = vld [vmem:[%s266 + $0x18] sm:$0xff]
    %v271 = vld [vmem:[%s266 + $0x20] sm:$0xff]
    %v272 = vld [vmem:[%s266 + $0x28] sm:$0xff]
    %v273 = vld [vmem:[%s266 + $0x30] sm:$0xff]
    %v274 = vld [vmem:[%s266 + $0x38] sm:$0xff]
    %v275 = vld [vmem:[%s266 + $0x40] sm:$0xff]
    %v276 = vld [vmem:[%s266 + $0x48] sm:$0xff]
    %v277 = vld [vmem:[%s266 + $0x50] sm:$0xff]
    %v278 = vld [vmem:[%s266 + $0x58] sm:$0xff]
    %v279 = vld [vmem:[%s266 + $0x60] sm:$0xff]
    %v280 = vld [vmem:[%s266 + $0x68] sm:$0xff]
    %v281 = vld [vmem:[%s266 + $0x70] sm:$0xff]
    %v282 = vld [vmem:[%s266 + $0x78] sm:$0xff]
    %283 = vmatpush.msra.mxu0 %v282
    %284 = vmatpush.msra.mxu0 %v281
    %285 = vmatpush.msra.mxu0 %v280
    %286 = vmatpush.msra.mxu0 %v279
    %287 = vmatpush.msra.mxu0 %v278
    %288 = vmatpush.msra.mxu0 %v277
    %289 = vmatpush.msra.mxu0 %v276
    %290 = vmatpush.msra.mxu0 %v275
    %291 = vmatpush.msra.mxu0 %v274
    %292 = vmatpush.msra.mxu0 %v273
    %293 = vmatpush.msra.mxu0 %v272
    %294 = vmatpush.msra.mxu0 %v271
    %295 = vmatpush.msra.mxu0 %v270
    %296 = vmatpush.msra.mxu0 %v269
    %297 = vmatpush.msra.mxu0 %v268
    %298 = vmatpush.msra.mxu0 %v267
    %299 = vmatmul.f32.gmra.mxu0 %v262
    %v300 = vpop.f32.mrf.mxu0
    %v301 = vadd.f32 0.0, %v300
    %302 = vmatmul.f32.gmra.mxu0 %v263
    %v303 = vpop.f32.mrf.mxu0
    %v304 = vadd.f32 0.0, %v303
    %305 = vmatmul.f32.gmra.mxu0 %v264
    %v306 = vpop.f32.mrf.mxu0
    %v307 = vadd.f32 0.0, %v306
    %308 = vmatmul.f32.gmra.mxu0 %v265
    %v309 = vpop.f32.mrf.mxu0
    %v310 = vadd.f32 0.0, %v309
    %311 = vdwg.mxu0
    %312 = vmatpush.msra.mxu0 %v261
    %313 = vmatpush.msra.mxu0 %v260
    %314 = vmatpush.msra.mxu0 %v259
    %315 = vmatpush.msra.mxu0 %v258
    %316 = vmatpush.msra.mxu0 %v257
    %317 = vmatpush.msra.mxu0 %v256
    %318 = vmatpush.msra.mxu0 %v255
    %319 = vmatpush.msra.mxu0 %v254
    %320 = vmatpush.msra.mxu0 %v253
    %321 = vmatpush.msra.mxu0 %v252
    %322 = vmatpush.msra.mxu0 %v251
    %323 = vmatpush.msra.mxu0 %v250
    %324 = vmatpush.msra.mxu0 %v249
    %325 = vmatpush.msra.mxu0 %v248
    %326 = vmatpush.msra.mxu0 %v247
    %327 = vmatpush.msra.mxu0 %v246
    %328 = vmatmul.f32.gmra.mxu0 %v242
    %v329 = vpop.f32.mrf.mxu0
    %v330 = vadd.f32 %v301, %v329
    %331 = vmatmul.f32.gmra.mxu0 %v243
    %v332 = vpop.f32.mrf.mxu0
    %v333 = vadd.f32 %v304, %v332
    %334 = vmatmul.f32.gmra.mxu0 %v244
    %v335 = vpop.f32.mrf.mxu0
    %v336 = vadd.f32 %v307, %v335
    %337 = vmatmul.f32.gmra.mxu0 %v245
    %v338 = vpop.f32.mrf.mxu0
    %v339 = vadd.f32 %v310, %v338
    %340 = vdwg.mxu0
    %v341 = vld [vmem:[#allocation3 + $0x2] sm:$0xff]
    %v342 = vld [vmem:[#allocation3 + $0xa] sm:$0xff]
    %v343 = vld [vmem:[#allocation3 + $0x1a] sm:$0xff]
    %v344 = vld [vmem:[#allocation3 + $0x22] sm:$0xff]
    %s345 = scalar_lea.vmem %s3, 256
    %v346 = vld [vmem:[%s345] sm:$0xff]
    %v347 = vld [vmem:[%s345 + $0x8] sm:$0xff]
    %v348 = vld [vmem:[%s345 + $0x10] sm:$0xff]
    %v349 = vld [vmem:[%s345 + $0x18] sm:$0xff]
    %v350 = vld [vmem:[%s345 + $0x20] sm:$0xff]
    %v351 = vld [vmem:[%s345 + $0x28] sm:$0xff]
    %v352 = vld [vmem:[%s345 + $0x30] sm:$0xff]
    %v353 = vld [vmem:[%s345 + $0x38] sm:$0xff]
    %v354 = vld [vmem:[%s345 + $0x40] sm:$0xff]
    %v355 = vld [vmem:[%s345 + $0x48] sm:$0xff]
    %v356 = vld [vmem:[%s345 + $0x50] sm:$0xff]
    %v357 = vld [vmem:[%s345 + $0x58] sm:$0xff]
    %v358 = vld [vmem:[%s345 + $0x60] sm:$0xff]
    %v359 = vld [vmem:[%s345 + $0x68] sm:$0xff]
    %v360 = vld [vmem:[%s345 + $0x70] sm:$0xff]
    %v361 = vld [vmem:[%s345 + $0x78] sm:$0xff]
    %362 = vmatpush.msra.mxu0 %v361
    %363 = vmatpush.msra.mxu0 %v360
    %364 = vmatpush.msra.mxu0 %v359
    %365 = vmatpush.msra.mxu0 %v358
    %366 = vmatpush.msra.mxu0 %v357
    %367 = vmatpush.msra.mxu0 %v356
    %368 = vmatpush.msra.mxu0 %v355
    %369 = vmatpush.msra.mxu0 %v354
    %370 = vmatpush.msra.mxu0 %v353
    %371 = vmatpush.msra.mxu0 %v352
    %372 = vmatpush.msra.mxu0 %v351
    %373 = vmatpush.msra.mxu0 %v350
    %374 = vmatpush.msra.mxu0 %v349
    %375 = vmatpush.msra.mxu0 %v348
    %376 = vmatpush.msra.mxu0 %v347
    %377 = vmatpush.msra.mxu0 %v346
    %378 = vmatmul.f32.gmra.mxu0 %v341
    %v379 = vpop.f32.mrf.mxu0
    %v380 = vadd.f32 0.0, %v379
    %381 = vmatmul.f32.gmra.mxu0 %v342
    %v382 = vpop.f32.mrf.mxu0
    %v383 = vadd.f32 0.0, %v382
    %384 = vmatmul.f32.gmra.mxu0 %v343
    %v385 = vpop.f32.mrf.mxu0
    %v386 = vadd.f32 0.0, %v385
    %387 = vmatmul.f32.gmra.mxu0 %v344
    %v388 = vpop.f32.mrf.mxu0
    %v389 = vadd.f32 0.0, %v388
    %390 = vdwg.mxu0
    %v391 = vadd.f32 %v330, %v380
    %v392 = vadd.f32 %v333, %v383
    %v393 = vadd.f32 %v336, %v386
    %v394 = vadd.f32 %v339, %v389
    %v395 = vld [vmem:[%s4] sm:$0x1]
    %v397 = vperm.slane %v395, 0
    %v399 = vadd.f32 %v391, %v397
    %v400 = vadd.f32 %v392, %v397
    %v401 = vadd.f32 %v393, %v397
    %v402 = vadd.f32 %v394, %v397
    %v403 = vmax.f32 %v399, 0.0
    %v404 = vmax.f32 %v400, 0.0
    %v405 = vmax.f32 %v401, 0.0
    %v406 = vmax.f32 %v402, 0.0
    %407 = vst [vmem:[#allocation4] sm:$0xff] %v403
    %408 = vst [vmem:[#allocation4 + $0x8] sm:$0xff] %v404
    %409 = vst [vmem:[#allocation4 + $0x10] sm:$0xff] %v405
    %410 = vst [vmem:[#allocation4 + $0x18] sm:$0xff] %v406
    %v411 = vld [vmem:[#allocation4] sm:$0x1]
    %v412 = vld [vmem:[#allocation4 + $0x10] sm:$0x1]
    %v413 = vld [vmem:[%s5] sm:$0xff]
    %v414 = vld [vmem:[%s5 + $0x8] sm:$0xff]
    %v415 = vld [vmem:[%s5 + $0x10] sm:$0xff]
    %v416 = vld [vmem:[%s5 + $0x18] sm:$0xff]
    %v417 = vld [vmem:[%s5 + $0x20] sm:$0xff]
    %v418 = vld [vmem:[%s5 + $0x28] sm:$0xff]
    %v419 = vld [vmem:[%s5 + $0x30] sm:$0xff]
    %v420 = vld [vmem:[%s5 + $0x38] sm:$0xff]
    %v421 = vld [vmem:[%s5 + $0x40] sm:$0xff]
    %v422 = vld [vmem:[%s5 + $0x48] sm:$0xff]
    %v423 = vld [vmem:[%s5 + $0x50] sm:$0xff]
    %v424 = vld [vmem:[%s5 + $0x58] sm:$0xff]
    %v425 = vld [vmem:[%s5 + $0x60] sm:$0xff]
    %v426 = vld [vmem:[%s5 + $0x68] sm:$0xff]
    %v427 = vld [vmem:[%s5 + $0x70] sm:$0xff]
    %v428 = vld [vmem:[%s5 + $0x78] sm:$0xff]
    %v429 = vld [vmem:[#allocation4 + $0x1] sm:$0x1]
    %v430 = vld [vmem:[#allocation4 + $0x11] sm:$0x1]
    %s431 = scalar_lea.vmem %s5, 128
    %v432 = vld [vmem:[%s431] sm:$0xff]
    %v433 = vld [vmem:[%s431 + $0x8] sm:$0xff]
    %v434 = vld [vmem:[%s431 + $0x10] sm:$0xff]
    %v435 = vld [vmem:[%s431 + $0x18] sm:$0xff]
    %v436 = vld [vmem:[%s431 + $0x20] sm:$0xff]
    %v437 = vld [vmem:[%s431 + $0x28] sm:$0xff]
    %v438 = vld [vmem:[%s431 + $0x30] sm:$0xff]
    %v439 = vld [vmem:[%s431 + $0x38] sm:$0xff]
    %v440 = vld [vmem:[%s431 + $0x40] sm:$0xff]
    %v441 = vld [vmem:[%s431 + $0x48] sm:$0xff]
    %v442 = vld [vmem:[%s431 + $0x50] sm:$0xff]
    %v443 = vld [vmem:[%s431 + $0x58] sm:$0xff]
    %v444 = vld [vmem:[%s431 + $0x60] sm:$0xff]
    %v445 = vld [vmem:[%s431 + $0x68] sm:$0xff]
    %v446 = vld [vmem:[%s431 + $0x70] sm:$0xff]
    %v447 = vld [vmem:[%s431 + $0x78] sm:$0xff]
    %v450 = vrot.slane %v430, 7
    %vm451 = vcmask 1041409
    %v452 = vsel %vm451, %v450, %v429
    %454 = vmatpush.msra.mxu0 %v447
    %455 = vmatpush.msra.mxu0 %v446
    %456 = vmatpush.msra.mxu0 %v445
    %457 = vmatpush.msra.mxu0 %v444
    %458 = vmatpush.msra.mxu0 %v443
    %459 = vmatpush.msra.mxu0 %v442
    %460 = vmatpush.msra.mxu0 %v441
    %461 = vmatpush.msra.mxu0 %v440
    %462 = vmatpush.msra.mxu0 %v439
    %463 = vmatpush.msra.mxu0 %v438
    %464 = vmatpush.msra.mxu0 %v437
    %465 = vmatpush.msra.mxu0 %v436
    %466 = vmatpush.msra.mxu0 %v435
    %467 = vmatpush.msra.mxu0 %v434
    %468 = vmatpush.msra.mxu0 %v433
    %469 = vmatpush.msra.mxu0 %v432
    %470 = vmatmul.f32.gmra.mxu0 %v452
    %v471 = vpop.f32.mrf.mxu0
    %v472 = vadd.f32 0.0, %v471
    %473 = vdwg.mxu0
    %v476 = vrot.slane %v412, 7
    %v477 = vsel %vm451, %v476, %v411
    %479 = vmatpush.msra.mxu0 %v428
    %480 = vmatpush.msra.mxu0 %v427
    %481 = vmatpush.msra.mxu0 %v426
    %482 = vmatpush.msra.mxu0 %v425
    %483 = vmatpush.msra.mxu0 %v424
    %484 = vmatpush.msra.mxu0 %v423
    %485 = vmatpush.msra.mxu0 %v422
    %486 = vmatpush.msra.mxu0 %v421
    %487 = vmatpush.msra.mxu0 %v420
    %488 = vmatpush.msra.mxu0 %v419
    %489 = vmatpush.msra.mxu0 %v418
    %490 = vmatpush.msra.mxu0 %v417
    %491 = vmatpush.msra.mxu0 %v416
    %492 = vmatpush.msra.mxu0 %v415
    %493 = vmatpush.msra.mxu0 %v414
    %494 = vmatpush.msra.mxu0 %v413
    %495 = vmatmul.f32.gmra.mxu0 %v477
    %v496 = vpop.f32.mrf.mxu0
    %v497 = vadd.f32 %v472, %v496
    %498 = vdwg.mxu0
    %v499 = vld [vmem:[#allocation4 + $0x2] sm:$0x1]
    %v500 = vld [vmem:[#allocation4 + $0x12] sm:$0x1]
    %s501 = scalar_lea.vmem %s5, 256
    %v502 = vld [vmem:[%s501] sm:$0xff]
    %v503 = vld [vmem:[%s501 + $0x8] sm:$0xff]
    %v504 = vld [vmem:[%s501 + $0x10] sm:$0xff]
    %v505 = vld [vmem:[%s501 + $0x18] sm:$0xff]
    %v506 = vld [vmem:[%s501 + $0x20] sm:$0xff]
    %v507 = vld [vmem:[%s501 + $0x28] sm:$0xff]
    %v508 = vld [vmem:[%s501 + $0x30] sm:$0xff]
    %v509 = vld [vmem:[%s501 + $0x38] sm:$0xff]
    %v510 = vld [vmem:[%s501 + $0x40] sm:$0xff]
    %v511 = vld [vmem:[%s501 + $0x48] sm:$0xff]
    %v512 = vld [vmem:[%s501 + $0x50] sm:$0xff]
    %v513 = vld [vmem:[%s501 + $0x58] sm:$0xff]
    %v514 = vld [vmem:[%s501 + $0x60] sm:$0xff]
    %v515 = vld [vmem:[%s501 + $0x68] sm:$0xff]
    %v516 = vld [vmem:[%s501 + $0x70] sm:$0xff]
    %v517 = vld [vmem:[%s501 + $0x78] sm:$0xff]
    %v520 = vrot.slane %v500, 7
    %v521 = vsel %vm451, %v520, %v499
    %523 = vmatpush.msra.mxu0 %v517
    %524 = vmatpush.msra.mxu0 %v516
    %525 = vmatpush.msra.mxu0 %v515
    %526 = vmatpush.msra.mxu0 %v514
    %527 = vmatpush.msra.mxu0 %v513
    %528 = vmatpush.msra.mxu0 %v512
    %529 = vmatpush.msra.mxu0 %v511
    %530 = vmatpush.msra.mxu0 %v510
    %531 = vmatpush.msra.mxu0 %v509
    %532 = vmatpush.msra.mxu0 %v508
    %533 = vmatpush.msra.mxu0 %v507
    %534 = vmatpush.msra.mxu0 %v506
    %535 = vmatpush.msra.mxu0 %v505
    %536 = vmatpush.msra.mxu0 %v504
    %537 = vmatpush.msra.mxu0 %v503
    %538 = vmatpush.msra.mxu0 %v502
    %539 = vmatmul.f32.gmra.mxu0 %v521
    %v540 = vpop.f32.mrf.mxu0
    %v541 = vadd.f32 0.0, %v540
    %542 = vdwg.mxu0
    %v543 = vadd.f32 %v497, %v541
    %v544 = vld [vmem:[#allocation4 + $0x3] sm:$0x1]
    %v545 = vld [vmem:[#allocation4 + $0x13] sm:$0x1]
    %s546 = scalar_lea.vmem %s5, 384
    %v547 = vld [vmem:[%s546] sm:$0xff]
    %v548 = vld [vmem:[%s546 + $0x8] sm:$0xff]
    %v549 = vld [vmem:[%s546 + $0x10] sm:$0xff]
    %v550 = vld [vmem:[%s546 + $0x18] sm:$0xff]
    %v551 = vld [vmem:[%s546 + $0x20] sm:$0xff]
    %v552 = vld [vmem:[%s546 + $0x28] sm:$0xff]
    %v553 = vld [vmem:[%s546 + $0x30] sm:$0xff]
    %v554 = vld [vmem:[%s546 + $0x38] sm:$0xff]
    %v555 = vld [vmem:[%s546 + $0x40] sm:$0xff]
    %v556 = vld [vmem:[%s546 + $0x48] sm:$0xff]
    %v557 = vld [vmem:[%s546 + $0x50] sm:$0xff]
    %v558 = vld [vmem:[%s546 + $0x58] sm:$0xff]
    %v559 = vld [vmem:[%s546 + $0x60] sm:$0xff]
    %v560 = vld [vmem:[%s546 + $0x68] sm:$0xff]
    %v561 = vld [vmem:[%s546 + $0x70] sm:$0xff]
    %v562 = vld [vmem:[%s546 + $0x78] sm:$0xff]
    %v565 = vrot.slane %v545, 7
    %v566 = vsel %vm451, %v565, %v544
    %568 = vmatpush.msra.mxu0 %v562
    %569 = vmatpush.msra.mxu0 %v561
    %570 = vmatpush.msra.mxu0 %v560
    %571 = vmatpush.msra.mxu0 %v559
    %572 = vmatpush.msra.mxu0 %v558
    %573 = vmatpush.msra.mxu0 %v557
    %574 = vmatpush.msra.mxu0 %v556
    %575 = vmatpush.msra.mxu0 %v555
    %576 = vmatpush.msra.mxu0 %v554
    %577 = vmatpush.msra.mxu0 %v553
    %578 = vmatpush.msra.mxu0 %v552
    %579 = vmatpush.msra.mxu0 %v551
    %580 = vmatpush.msra.mxu0 %v550
    %581 = vmatpush.msra.mxu0 %v549
    %582 = vmatpush.msra.mxu0 %v548
    %583 = vmatpush.msra.mxu0 %v547
    %584 = vmatmul.f32.gmra.mxu0 %v566
    %v585 = vpop.f32.mrf.mxu0
    %v586 = vadd.f32 0.0, %v585
    %587 = vdwg.mxu0
    %v588 = vadd.f32 %v543, %v586
    %v589 = vld [vmem:[#allocation4 + $0x4] sm:$0x1]
    %v590 = vld [vmem:[#allocation4 + $0x14] sm:$0x1]
    %s591 = scalar_lea.vmem %s5, 512
    %v592 = vld [vmem:[%s591] sm:$0xff]
    %v593 = vld [vmem:[%s591 + $0x8] sm:$0xff]
    %v594 = vld [vmem:[%s591 + $0x10] sm:$0xff]
    %v595 = vld [vmem:[%s591 + $0x18] sm:$0xff]
    %v596 = vld [vmem:[%s591 + $0x20] sm:$0xff]
    %v597 = vld [vmem:[%s591 + $0x28] sm:$0xff]
    %v598 = vld [vmem:[%s591 + $0x30] sm:$0xff]
    %v599 = vld [vmem:[%s591 + $0x38] sm:$0xff]
    %v600 = vld [vmem:[%s591 + $0x40] sm:$0xff]
    %v601 = vld [vmem:[%s591 + $0x48] sm:$0xff]
    %v602 = vld [vmem:[%s591 + $0x50] sm:$0xff]
    %v603 = vld [vmem:[%s591 + $0x58] sm:$0xff]
    %v604 = vld [vmem:[%s591 + $0x60] sm:$0xff]
    %v605 = vld [vmem:[%s591 + $0x68] sm:$0xff]
    %v606 = vld [vmem:[%s591 + $0x70] sm:$0xff]
    %v607 = vld [vmem:[%s591 + $0x78] sm:$0xff]
    %v610 = vrot.slane %v590, 7
    %v611 = vsel %vm451, %v610, %v589
    %613 = vmatpush.msra.mxu0 %v607
    %614 = vmatpush.msra.mxu0 %v606
    %615 = vmatpush.msra.mxu0 %v605
    %616 = vmatpush.msra.mxu0 %v604
    %617 = vmatpush.msra.mxu0 %v603
    %618 = vmatpush.msra.mxu0 %v602
    %619 = vmatpush.msra.mxu0 %v601
    %620 = vmatpush.msra.mxu0 %v600
    %621 = vmatpush.msra.mxu0 %v599
    %622 = vmatpush.msra.mxu0 %v598
    %623 = vmatpush.msra.mxu0 %v597
    %624 = vmatpush.msra.mxu0 %v596
    %625 = vmatpush.msra.mxu0 %v595
    %626 = vmatpush.msra.mxu0 %v594
    %627 = vmatpush.msra.mxu0 %v593
    %628 = vmatpush.msra.mxu0 %v592
    %629 = vmatmul.f32.gmra.mxu0 %v611
    %v630 = vpop.f32.mrf.mxu0
    %v631 = vadd.f32 0.0, %v630
    %632 = vdwg.mxu0
    %v633 = vadd.f32 %v588, %v631
    %v634 = vld [vmem:[#allocation4 + $0x5] sm:$0x1]
    %v635 = vld [vmem:[#allocation4 + $0x15] sm:$0x1]
    %s636 = scalar_lea.vmem %s5, 640
    %v637 = vld [vmem:[%s636] sm:$0xff]
    %v638 = vld [vmem:[%s636 + $0x8] sm:$0xff]
    %v639 = vld [vmem:[%s636 + $0x10] sm:$0xff]
    %v640 = vld [vmem:[%s636 + $0x18] sm:$0xff]
    %v641 = vld [vmem:[%s636 + $0x20] sm:$0xff]
    %v642 = vld [vmem:[%s636 + $0x28] sm:$0xff]
    %v643 = vld [vmem:[%s636 + $0x30] sm:$0xff]
    %v644 = vld [vmem:[%s636 + $0x38] sm:$0xff]
    %v645 = vld [vmem:[%s636 + $0x40] sm:$0xff]
    %v646 = vld [vmem:[%s636 + $0x48] sm:$0xff]
    %v647 = vld [vmem:[%s636 + $0x50] sm:$0xff]
    %v648 = vld [vmem:[%s636 + $0x58] sm:$0xff]
    %v649 = vld [vmem:[%s636 + $0x60] sm:$0xff]
    %v650 = vld [vmem:[%s636 + $0x68] sm:$0xff]
    %v651 = vld [vmem:[%s636 + $0x70] sm:$0xff]
    %v652 = vld [vmem:[%s636 + $0x78] sm:$0xff]
    %v655 = vrot.slane %v635, 7
    %v656 = vsel %vm451, %v655, %v634
    %658 = vmatpush.msra.mxu0 %v652
    %659 = vmatpush.msra.mxu0 %v651
    %660 = vmatpush.msra.mxu0 %v650
    %661 = vmatpush.msra.mxu0 %v649
    %662 = vmatpush.msra.mxu0 %v648
    %663 = vmatpush.msra.mxu0 %v647
    %664 = vmatpush.msra.mxu0 %v646
    %665 = vmatpush.msra.mxu0 %v645
    %666 = vmatpush.msra.mxu0 %v644
    %667 = vmatpush.msra.mxu0 %v643
    %668 = vmatpush.msra.mxu0 %v642
    %669 = vmatpush.msra.mxu0 %v641
    %670 = vmatpush.msra.mxu0 %v640
    %671 = vmatpush.msra.mxu0 %v639
    %672 = vmatpush.msra.mxu0 %v638
    %673 = vmatpush.msra.mxu0 %v637
    %674 = vmatmul.f32.gmra.mxu0 %v656
    %v675 = vpop.f32.mrf.mxu0
    %v676 = vadd.f32 0.0, %v675
    %677 = vdwg.mxu0
    %v678 = vadd.f32 %v633, %v676
    %v679 = vld [vmem:[#allocation4 + $0x6] sm:$0x1]
    %v680 = vld [vmem:[#allocation4 + $0x16] sm:$0x1]
    %s681 = scalar_lea.vmem %s5, 768
    %v682 = vld [vmem:[%s681] sm:$0xff]
    %v683 = vld [vmem:[%s681 + $0x8] sm:$0xff]
    %v684 = vld [vmem:[%s681 + $0x10] sm:$0xff]
    %v685 = vld [vmem:[%s681 + $0x18] sm:$0xff]
    %v686 = vld [vmem:[%s681 + $0x20] sm:$0xff]
    %v687 = vld [vmem:[%s681 + $0x28] sm:$0xff]
    %v688 = vld [vmem:[%s681 + $0x30] sm:$0xff]
    %v689 = vld [vmem:[%s681 + $0x38] sm:$0xff]
    %v690 = vld [vmem:[%s681 + $0x40] sm:$0xff]
    %v691 = vld [vmem:[%s681 + $0x48] sm:$0xff]
    %v692 = vld [vmem:[%s681 + $0x50] sm:$0xff]
    %v693 = vld [vmem:[%s681 + $0x58] sm:$0xff]
    %v694 = vld [vmem:[%s681 + $0x60] sm:$0xff]
    %v695 = vld [vmem:[%s681 + $0x68] sm:$0xff]
    %v696 = vld [vmem:[%s681 + $0x70] sm:$0xff]
    %v697 = vld [vmem:[%s681 + $0x78] sm:$0xff]
    %v700 = vrot.slane %v680, 7
    %v701 = vsel %vm451, %v700, %v679
    %703 = vmatpush.msra.mxu0 %v697
    %704 = vmatpush.msra.mxu0 %v696
    %705 = vmatpush.msra.mxu0 %v695
    %706 = vmatpush.msra.mxu0 %v694
    %707 = vmatpush.msra.mxu0 %v693
    %708 = vmatpush.msra.mxu0 %v692
    %709 = vmatpush.msra.mxu0 %v691
    %710 = vmatpush.msra.mxu0 %v690
    %711 = vmatpush.msra.mxu0 %v689
    %712 = vmatpush.msra.mxu0 %v688
    %713 = vmatpush.msra.mxu0 %v687
    %714 = vmatpush.msra.mxu0 %v686
    %715 = vmatpush.msra.mxu0 %v685
    %716 = vmatpush.msra.mxu0 %v684
    %717 = vmatpush.msra.mxu0 %v683
    %718 = vmatpush.msra.mxu0 %v682
    %719 = vmatmul.f32.gmra.mxu0 %v701
    %v720 = vpop.f32.mrf.mxu0
    %v721 = vadd.f32 0.0, %v720
    %722 = vdwg.mxu0
    %v723 = vadd.f32 %v678, %v721
    %v724 = vld [vmem:[#allocation4 + $0x7] sm:$0x1]
    %v725 = vld [vmem:[#allocation4 + $0x17] sm:$0x1]
    %s726 = scalar_lea.vmem %s5, 896
    %v727 = vld [vmem:[%s726] sm:$0xff]
    %v728 = vld [vmem:[%s726 + $0x8] sm:$0xff]
    %v729 = vld [vmem:[%s726 + $0x10] sm:$0xff]
    %v730 = vld [vmem:[%s726 + $0x18] sm:$0xff]
    %v731 = vld [vmem:[%s726 + $0x20] sm:$0xff]
    %v732 = vld [vmem:[%s726 + $0x28] sm:$0xff]
    %v733 = vld [vmem:[%s726 + $0x30] sm:$0xff]
    %v734 = vld [vmem:[%s726 + $0x38] sm:$0xff]
    %v735 = vld [vmem:[%s726 + $0x40] sm:$0xff]
    %v736 = vld [vmem:[%s726 + $0x48] sm:$0xff]
    %v737 = vld [vmem:[%s726 + $0x50] sm:$0xff]
    %v738 = vld [vmem:[%s726 + $0x58] sm:$0xff]
    %v739 = vld [vmem:[%s726 + $0x60] sm:$0xff]
    %v740 = vld [vmem:[%s726 + $0x68] sm:$0xff]
    %v741 = vld [vmem:[%s726 + $0x70] sm:$0xff]
    %v742 = vld [vmem:[%s726 + $0x78] sm:$0xff]
    %v745 = vrot.slane %v725, 7
    %v746 = vsel %vm451, %v745, %v724
    %748 = vmatpush.msra.mxu0 %v742
    %749 = vmatpush.msra.mxu0 %v741
    %750 = vmatpush.msra.mxu0 %v740
    %751 = vmatpush.msra.mxu0 %v739
    %752 = vmatpush.msra.mxu0 %v738
    %753 = vmatpush.msra.mxu0 %v737
    %754 = vmatpush.msra.mxu0 %v736
    %755 = vmatpush.msra.mxu0 %v735
    %756 = vmatpush.msra.mxu0 %v734
    %757 = vmatpush.msra.mxu0 %v733
    %758 = vmatpush.msra.mxu0 %v732
    %759 = vmatpush.msra.mxu0 %v731
    %760 = vmatpush.msra.mxu0 %v730
    %761 = vmatpush.msra.mxu0 %v729
    %762 = vmatpush.msra.mxu0 %v728
    %763 = vmatpush.msra.mxu0 %v727
    %764 = vmatmul.f32.gmra.mxu0 %v746
    %v765 = vpop.f32.mrf.mxu0
    %v766 = vadd.f32 0.0, %v765
    %767 = vdwg.mxu0
    %v768 = vadd.f32 %v723, %v766
    %v769 = vld [vmem:[#allocation4 + $0x8] sm:$0x1]
    %v770 = vld [vmem:[#allocation4 + $0x18] sm:$0x1]
    %s771 = scalar_lea.vmem %s5, 1024
    %v772 = vld [vmem:[%s771] sm:$0xff]
    %v773 = vld [vmem:[%s771 + $0x8] sm:$0xff]
    %v774 = vld [vmem:[%s771 + $0x10] sm:$0xff]
    %v775 = vld [vmem:[%s771 + $0x18] sm:$0xff]
    %v776 = vld [vmem:[%s771 + $0x20] sm:$0xff]
    %v777 = vld [vmem:[%s771 + $0x28] sm:$0xff]
    %v778 = vld [vmem:[%s771 + $0x30] sm:$0xff]
    %v779 = vld [vmem:[%s771 + $0x38] sm:$0xff]
    %v780 = vld [vmem:[%s771 + $0x40] sm:$0xff]
    %v781 = vld [vmem:[%s771 + $0x48] sm:$0xff]
    %v782 = vld [vmem:[%s771 + $0x50] sm:$0xff]
    %v783 = vld [vmem:[%s771 + $0x58] sm:$0xff]
    %v784 = vld [vmem:[%s771 + $0x60] sm:$0xff]
    %v785 = vld [vmem:[%s771 + $0x68] sm:$0xff]
    %v786 = vld [vmem:[%s771 + $0x70] sm:$0xff]
    %v787 = vld [vmem:[%s771 + $0x78] sm:$0xff]
    %v790 = vrot.slane %v770, 7
    %v791 = vsel %vm451, %v790, %v769
    %793 = vmatpush.msra.mxu0 %v787
    %794 = vmatpush.msra.mxu0 %v786
    %795 = vmatpush.msra.mxu0 %v785
    %796 = vmatpush.msra.mxu0 %v784
    %797 = vmatpush.msra.mxu0 %v783
    %798 = vmatpush.msra.mxu0 %v782
    %799 = vmatpush.msra.mxu0 %v781
    %800 = vmatpush.msra.mxu0 %v780
    %801 = vmatpush.msra.mxu0 %v779
    %802 = vmatpush.msra.mxu0 %v778
    %803 = vmatpush.msra.mxu0 %v777
    %804 = vmatpush.msra.mxu0 %v776
    %805 = vmatpush.msra.mxu0 %v775
    %806 = vmatpush.msra.mxu0 %v774
    %807 = vmatpush.msra.mxu0 %v773
    %808 = vmatpush.msra.mxu0 %v772
    %809 = vmatmul.f32.gmra.mxu0 %v791
    %v810 = vpop.f32.mrf.mxu0
    %v811 = vadd.f32 0.0, %v810
    %812 = vdwg.mxu0
    %v813 = vadd.f32 %v768, %v811
    %v814 = vld [vmem:[#allocation4 + $0x9] sm:$0x1]
    %v815 = vld [vmem:[#allocation4 + $0x19] sm:$0x1]
    %s816 = scalar_lea.vmem %s5, 1152
    %v817 = vld [vmem:[%s816] sm:$0xff]
    %v818 = vld [vmem:[%s816 + $0x8] sm:$0xff]
    %v819 = vld [vmem:[%s816 + $0x10] sm:$0xff]
    %v820 = vld [vmem:[%s816 + $0x18] sm:$0xff]
    %v821 = vld [vmem:[%s816 + $0x20] sm:$0xff]
    %v822 = vld [vmem:[%s816 + $0x28] sm:$0xff]
    %v823 = vld [vmem:[%s816 + $0x30] sm:$0xff]
    %v824 = vld [vmem:[%s816 + $0x38] sm:$0xff]
    %v825 = vld [vmem:[%s816 + $0x40] sm:$0xff]
    %v826 = vld [vmem:[%s816 + $0x48] sm:$0xff]
    %v827 = vld [vmem:[%s816 + $0x50] sm:$0xff]
    %v828 = vld [vmem:[%s816 + $0x58] sm:$0xff]
    %v829 = vld [vmem:[%s816 + $0x60] sm:$0xff]
    %v830 = vld [vmem:[%s816 + $0x68] sm:$0xff]
    %v831 = vld [vmem:[%s816 + $0x70] sm:$0xff]
    %v832 = vld [vmem:[%s816 + $0x78] sm:$0xff]
    %v835 = vrot.slane %v815, 7
    %v836 = vsel %vm451, %v835, %v814
    %838 = vmatpush.msra.mxu0 %v832
    %839 = vmatpush.msra.mxu0 %v831
    %840 = vmatpush.msra.mxu0 %v830
    %841 = vmatpush.msra.mxu0 %v829
    %842 = vmatpush.msra.mxu0 %v828
    %843 = vmatpush.msra.mxu0 %v827
    %844 = vmatpush.msra.mxu0 %v826
    %845 = vmatpush.msra.mxu0 %v825
    %846 = vmatpush.msra.mxu0 %v824
    %847 = vmatpush.msra.mxu0 %v823
    %848 = vmatpush.msra.mxu0 %v822
    %849 = vmatpush.msra.mxu0 %v821
    %850 = vmatpush.msra.mxu0 %v820
    %851 = vmatpush.msra.mxu0 %v819
    %852 = vmatpush.msra.mxu0 %v818
    %853 = vmatpush.msra.mxu0 %v817
    %854 = vmatmul.f32.gmra.mxu0 %v836
    %v855 = vpop.f32.mrf.mxu0
    %v856 = vadd.f32 0.0, %v855
    %857 = vdwg.mxu0
    %v858 = vadd.f32 %v813, %v856
    %v859 = vld [vmem:[#allocation4 + $0xa] sm:$0x1]
    %v860 = vld [vmem:[#allocation4 + $0x1a] sm:$0x1]
    %s861 = scalar_lea.vmem %s5, 1280
    %v862 = vld [vmem:[%s861] sm:$0xff]
    %v863 = vld [vmem:[%s861 + $0x8] sm:$0xff]
    %v864 = vld [vmem:[%s861 + $0x10] sm:$0xff]
    %v865 = vld [vmem:[%s861 + $0x18] sm:$0xff]
    %v866 = vld [vmem:[%s861 + $0x20] sm:$0xff]
    %v867 = vld [vmem:[%s861 + $0x28] sm:$0xff]
    %v868 = vld [vmem:[%s861 + $0x30] sm:$0xff]
    %v869 = vld [vmem:[%s861 + $0x38] sm:$0xff]
    %v870 = vld [vmem:[%s861 + $0x40] sm:$0xff]
    %v871 = vld [vmem:[%s861 + $0x48] sm:$0xff]
    %v872 = vld [vmem:[%s861 + $0x50] sm:$0xff]
    %v873 = vld [vmem:[%s861 + $0x58] sm:$0xff]
    %v874 = vld [vmem:[%s861 + $0x60] sm:$0xff]
    %v875 = vld [vmem:[%s861 + $0x68] sm:$0xff]
    %v876 = vld [vmem:[%s861 + $0x70] sm:$0xff]
    %v877 = vld [vmem:[%s861 + $0x78] sm:$0xff]
    %v880 = vrot.slane %v860, 7
    %v881 = vsel %vm451, %v880, %v859
    %883 = vmatpush.msra.mxu0 %v877
    %884 = vmatpush.msra.mxu0 %v876
    %885 = vmatpush.msra.mxu0 %v875
    %886 = vmatpush.msra.mxu0 %v874
    %887 = vmatpush.msra.mxu0 %v873
    %888 = vmatpush.msra.mxu0 %v872
    %889 = vmatpush.msra.mxu0 %v871
    %890 = vmatpush.msra.mxu0 %v870
    %891 = vmatpush.msra.mxu0 %v869
    %892 = vmatpush.msra.mxu0 %v868
    %893 = vmatpush.msra.mxu0 %v867
    %894 = vmatpush.msra.mxu0 %v866
    %895 = vmatpush.msra.mxu0 %v865
    %896 = vmatpush.msra.mxu0 %v864
    %897 = vmatpush.msra.mxu0 %v863
    %898 = vmatpush.msra.mxu0 %v862
    %899 = vmatmul.f32.gmra.mxu0 %v881
    %v900 = vpop.f32.mrf.mxu0
    %v901 = vadd.f32 0.0, %v900
    %902 = vdwg.mxu0
    %v903 = vadd.f32 %v858, %v901
    %v904 = vld [vmem:[#allocation4 + $0xb] sm:$0x1]
    %v905 = vld [vmem:[#allocation4 + $0x1b] sm:$0x1]
    %s906 = scalar_lea.vmem %s5, 1408
    %v907 = vld [vmem:[%s906] sm:$0xff]
    %v908 = vld [vmem:[%s906 + $0x8] sm:$0xff]
    %v909 = vld [vmem:[%s906 + $0x10] sm:$0xff]
    %v910 = vld [vmem:[%s906 + $0x18] sm:$0xff]
    %v911 = vld [vmem:[%s906 + $0x20] sm:$0xff]
    %v912 = vld [vmem:[%s906 + $0x28] sm:$0xff]
    %v913 = vld [vmem:[%s906 + $0x30] sm:$0xff]
    %v914 = vld [vmem:[%s906 + $0x38] sm:$0xff]
    %v915 = vld [vmem:[%s906 + $0x40] sm:$0xff]
    %v916 = vld [vmem:[%s906 + $0x48] sm:$0xff]
    %v917 = vld [vmem:[%s906 + $0x50] sm:$0xff]
    %v918 = vld [vmem:[%s906 + $0x58] sm:$0xff]
    %v919 = vld [vmem:[%s906 + $0x60] sm:$0xff]
    %v920 = vld [vmem:[%s906 + $0x68] sm:$0xff]
    %v921 = vld [vmem:[%s906 + $0x70] sm:$0xff]
    %v922 = vld [vmem:[%s906 + $0x78] sm:$0xff]
    %v925 = vrot.slane %v905, 7
    %v926 = vsel %vm451, %v925, %v904
    %928 = vmatpush.msra.mxu0 %v922
    %929 = vmatpush.msra.mxu0 %v921
    %930 = vmatpush.msra.mxu0 %v920
    %931 = vmatpush.msra.mxu0 %v919
    %932 = vmatpush.msra.mxu0 %v918
    %933 = vmatpush.msra.mxu0 %v917
    %934 = vmatpush.msra.mxu0 %v916
    %935 = vmatpush.msra.mxu0 %v915
    %936 = vmatpush.msra.mxu0 %v914
    %937 = vmatpush.msra.mxu0 %v913
    %938 = vmatpush.msra.mxu0 %v912
    %939 = vmatpush.msra.mxu0 %v911
    %940 = vmatpush.msra.mxu0 %v910
    %941 = vmatpush.msra.mxu0 %v909
    %942 = vmatpush.msra.mxu0 %v908
    %943 = vmatpush.msra.mxu0 %v907
    %944 = vmatmul.f32.gmra.mxu0 %v926
    %v945 = vpop.f32.mrf.mxu0
    %v946 = vadd.f32 0.0, %v945
    %947 = vdwg.mxu0
    %v948 = vadd.f32 %v903, %v946
    %v949 = vld [vmem:[#allocation4 + $0xc] sm:$0x1]
    %v950 = vld [vmem:[#allocation4 + $0x1c] sm:$0x1]
    %s951 = scalar_lea.vmem %s5, 1536
    %v952 = vld [vmem:[%s951] sm:$0xff]
    %v953 = vld [vmem:[%s951 + $0x8] sm:$0xff]
    %v954 = vld [vmem:[%s951 + $0x10] sm:$0xff]
    %v955 = vld [vmem:[%s951 + $0x18] sm:$0xff]
    %v956 = vld [vmem:[%s951 + $0x20] sm:$0xff]
    %v957 = vld [vmem:[%s951 + $0x28] sm:$0xff]
    %v958 = vld [vmem:[%s951 + $0x30] sm:$0xff]
    %v959 = vld [vmem:[%s951 + $0x38] sm:$0xff]
    %v960 = vld [vmem:[%s951 + $0x40] sm:$0xff]
    %v961 = vld [vmem:[%s951 + $0x48] sm:$0xff]
    %v962 = vld [vmem:[%s951 + $0x50] sm:$0xff]
    %v963 = vld [vmem:[%s951 + $0x58] sm:$0xff]
    %v964 = vld [vmem:[%s951 + $0x60] sm:$0xff]
    %v965 = vld [vmem:[%s951 + $0x68] sm:$0xff]
    %v966 = vld [vmem:[%s951 + $0x70] sm:$0xff]
    %v967 = vld [vmem:[%s951 + $0x78] sm:$0xff]
    %v970 = vrot.slane %v950, 7
    %v971 = vsel %vm451, %v970, %v949
    %973 = vmatpush.msra.mxu0 %v967
    %974 = vmatpush.msra.mxu0 %v966
    %975 = vmatpush.msra.mxu0 %v965
    %976 = vmatpush.msra.mxu0 %v964
    %977 = vmatpush.msra.mxu0 %v963
    %978 = vmatpush.msra.mxu0 %v962
    %979 = vmatpush.msra.mxu0 %v961
    %980 = vmatpush.msra.mxu0 %v960
    %981 = vmatpush.msra.mxu0 %v959
    %982 = vmatpush.msra.mxu0 %v958
    %983 = vmatpush.msra.mxu0 %v957
    %984 = vmatpush.msra.mxu0 %v956
    %985 = vmatpush.msra.mxu0 %v955
    %986 = vmatpush.msra.mxu0 %v954
    %987 = vmatpush.msra.mxu0 %v953
    %988 = vmatpush.msra.mxu0 %v952
    %989 = vmatmul.f32.gmra.mxu0 %v971
    %v990 = vpop.f32.mrf.mxu0
    %v991 = vadd.f32 0.0, %v990
    %992 = vdwg.mxu0
    %v993 = vadd.f32 %v948, %v991
    %v994 = vld [vmem:[#allocation4 + $0xd] sm:$0x1]
    %v995 = vld [vmem:[#allocation4 + $0x1d] sm:$0x1]
    %s996 = scalar_lea.vmem %s5, 1664
    %v997 = vld [vmem:[%s996] sm:$0xff]
    %v998 = vld [vmem:[%s996 + $0x8] sm:$0xff]
    %v999 = vld [vmem:[%s996 + $0x10] sm:$0xff]
    %v1000 = vld [vmem:[%s996 + $0x18] sm:$0xff]
    %v1001 = vld [vmem:[%s996 + $0x20] sm:$0xff]
    %v1002 = vld [vmem:[%s996 + $0x28] sm:$0xff]
    %v1003 = vld [vmem:[%s996 + $0x30] sm:$0xff]
    %v1004 = vld [vmem:[%s996 + $0x38] sm:$0xff]
    %v1005 = vld [vmem:[%s996 + $0x40] sm:$0xff]
    %v1006 = vld [vmem:[%s996 + $0x48] sm:$0xff]
    %v1007 = vld [vmem:[%s996 + $0x50] sm:$0xff]
    %v1008 = vld [vmem:[%s996 + $0x58] sm:$0xff]
    %v1009 = vld [vmem:[%s996 + $0x60] sm:$0xff]
    %v1010 = vld [vmem:[%s996 + $0x68] sm:$0xff]
    %v1011 = vld [vmem:[%s996 + $0x70] sm:$0xff]
    %v1012 = vld [vmem:[%s996 + $0x78] sm:$0xff]
    %v1015 = vrot.slane %v995, 7
    %v1016 = vsel %vm451, %v1015, %v994
    %1018 = vmatpush.msra.mxu0 %v1012
    %1019 = vmatpush.msra.mxu0 %v1011
    %1020 = vmatpush.msra.mxu0 %v1010
    %1021 = vmatpush.msra.mxu0 %v1009
    %1022 = vmatpush.msra.mxu0 %v1008
    %1023 = vmatpush.msra.mxu0 %v1007
    %1024 = vmatpush.msra.mxu0 %v1006
    %1025 = vmatpush.msra.mxu0 %v1005
    %1026 = vmatpush.msra.mxu0 %v1004
    %1027 = vmatpush.msra.mxu0 %v1003
    %1028 = vmatpush.msra.mxu0 %v1002
    %1029 = vmatpush.msra.mxu0 %v1001
    %1030 = vmatpush.msra.mxu0 %v1000
    %1031 = vmatpush.msra.mxu0 %v999
    %1032 = vmatpush.msra.mxu0 %v998
    %1033 = vmatpush.msra.mxu0 %v997
    %1034 = vmatmul.f32.gmra.mxu0 %v1016
    %v1035 = vpop.f32.mrf.mxu0
    %v1036 = vadd.f32 0.0, %v1035
    %1037 = vdwg.mxu0
    %v1038 = vadd.f32 %v993, %v1036
    %v1039 = vld [vmem:[#allocation4 + $0xe] sm:$0x1]
    %v1040 = vld [vmem:[#allocation4 + $0x1e] sm:$0x1]
    %s1041 = scalar_lea.vmem %s5, 1792
    %v1042 = vld [vmem:[%s1041] sm:$0xff]
    %v1043 = vld [vmem:[%s1041 + $0x8] sm:$0xff]
    %v1044 = vld [vmem:[%s1041 + $0x10] sm:$0xff]
    %v1045 = vld [vmem:[%s1041 + $0x18] sm:$0xff]
    %v1046 = vld [vmem:[%s1041 + $0x20] sm:$0xff]
    %v1047 = vld [vmem:[%s1041 + $0x28] sm:$0xff]
    %v1048 = vld [vmem:[%s1041 + $0x30] sm:$0xff]
    %v1049 = vld [vmem:[%s1041 + $0x38] sm:$0xff]
    %v1050 = vld [vmem:[%s1041 + $0x40] sm:$0xff]
    %v1051 = vld [vmem:[%s1041 + $0x48] sm:$0xff]
    %v1052 = vld [vmem:[%s1041 + $0x50] sm:$0xff]
    %v1053 = vld [vmem:[%s1041 + $0x58] sm:$0xff]
    %v1054 = vld [vmem:[%s1041 + $0x60] sm:$0xff]
    %v1055 = vld [vmem:[%s1041 + $0x68] sm:$0xff]
    %v1056 = vld [vmem:[%s1041 + $0x70] sm:$0xff]
    %v1057 = vld [vmem:[%s1041 + $0x78] sm:$0xff]
    %v1060 = vrot.slane %v1040, 7
    %v1061 = vsel %vm451, %v1060, %v1039
    %1063 = vmatpush.msra.mxu0 %v1057
    %1064 = vmatpush.msra.mxu0 %v1056
    %1065 = vmatpush.msra.mxu0 %v1055
    %1066 = vmatpush.msra.mxu0 %v1054
    %1067 = vmatpush.msra.mxu0 %v1053
    %1068 = vmatpush.msra.mxu0 %v1052
    %1069 = vmatpush.msra.mxu0 %v1051
    %1070 = vmatpush.msra.mxu0 %v1050
    %1071 = vmatpush.msra.mxu0 %v1049
    %1072 = vmatpush.msra.mxu0 %v1048
    %1073 = vmatpush.msra.mxu0 %v1047
    %1074 = vmatpush.msra.mxu0 %v1046
    %1075 = vmatpush.msra.mxu0 %v1045
    %1076 = vmatpush.msra.mxu0 %v1044
    %1077 = vmatpush.msra.mxu0 %v1043
    %1078 = vmatpush.msra.mxu0 %v1042
    %1079 = vmatmul.f32.gmra.mxu0 %v1061
    %v1080 = vpop.f32.mrf.mxu0
    %v1081 = vadd.f32 0.0, %v1080
    %1082 = vdwg.mxu0
    %v1083 = vadd.f32 %v1038, %v1081
    %v1084 = vld [vmem:[#allocation4 + $0xf] sm:$0x1]
    %v1085 = vld [vmem:[#allocation4 + $0x1f] sm:$0x1]
    %s1086 = scalar_lea.vmem %s5, 1920
    %v1087 = vld [vmem:[%s1086] sm:$0xff]
    %v1088 = vld [vmem:[%s1086 + $0x8] sm:$0xff]
    %v1089 = vld [vmem:[%s1086 + $0x10] sm:$0xff]
    %v1090 = vld [vmem:[%s1086 + $0x18] sm:$0xff]
    %v1091 = vld [vmem:[%s1086 + $0x20] sm:$0xff]
    %v1092 = vld [vmem:[%s1086 + $0x28] sm:$0xff]
    %v1093 = vld [vmem:[%s1086 + $0x30] sm:$0xff]
    %v1094 = vld [vmem:[%s1086 + $0x38] sm:$0xff]
    %v1095 = vld [vmem:[%s1086 + $0x40] sm:$0xff]
    %v1096 = vld [vmem:[%s1086 + $0x48] sm:$0xff]
    %v1097 = vld [vmem:[%s1086 + $0x50] sm:$0xff]
    %v1098 = vld [vmem:[%s1086 + $0x58] sm:$0xff]
    %v1099 = vld [vmem:[%s1086 + $0x60] sm:$0xff]
    %v1100 = vld [vmem:[%s1086 + $0x68] sm:$0xff]
    %v1101 = vld [vmem:[%s1086 + $0x70] sm:$0xff]
    %v1102 = vld [vmem:[%s1086 + $0x78] sm:$0xff]
    %v1105 = vrot.slane %v1085, 7
    %v1106 = vsel %vm451, %v1105, %v1084
    %1108 = vmatpush.msra.mxu0 %v1102
    %1109 = vmatpush.msra.mxu0 %v1101
    %1110 = vmatpush.msra.mxu0 %v1100
    %1111 = vmatpush.msra.mxu0 %v1099
    %1112 = vmatpush.msra.mxu0 %v1098
    %1113 = vmatpush.msra.mxu0 %v1097
    %1114 = vmatpush.msra.mxu0 %v1096
    %1115 = vmatpush.msra.mxu0 %v1095
    %1116 = vmatpush.msra.mxu0 %v1094
    %1117 = vmatpush.msra.mxu0 %v1093
    %1118 = vmatpush.msra.mxu0 %v1092
    %1119 = vmatpush.msra.mxu0 %v1091
    %1120 = vmatpush.msra.mxu0 %v1090
    %1121 = vmatpush.msra.mxu0 %v1089
    %1122 = vmatpush.msra.mxu0 %v1088
    %1123 = vmatpush.msra.mxu0 %v1087
    %1124 = vmatmul.f32.gmra.mxu0 %v1106
    %v1125 = vpop.f32.mrf.mxu0
    %v1126 = vadd.f32 0.0, %v1125
    %1127 = vdwg.mxu0
    %v1128 = vadd.f32 %v1083, %v1126
    %v1129 = vld [vmem:[%s6] sm:$0x1]
    %v1131 = vperm.slane %v1129, 0
    %v1133 = vadd.f32 %v1128, %v1131
    %v1134 = vmax.f32 %v1133, 0.0
    %v1135 = vld [vmem:[%s7] sm:$0xff]
    %v1136 = vld [vmem:[%s7 + $0x8] sm:$0xff]
    %v1137 = vld [vmem:[%s7 + $0x10] sm:$0xff]
    %v1138 = vld [vmem:[%s7 + $0x18] sm:$0xff]
    %v1139 = vld [vmem:[%s8] sm:$0x1]
    %v1141 = vperm.slane %v1139, 0
    %vm1143 = vcmask 261120
    %v1145 = vsel %vm1143, %v1134, 0
    %1147 = vmatpush.msra.mxu0 0.0
    %1148 = vmatpush.msra.mxu0 0.0
    %1149 = vmatpush.msra.mxu0 0.0
    %1150 = vmatpush.msra.mxu0 0.0
    %1151 = vmatpush.msra.mxu0 0.0
    %1152 = vmatpush.msra.mxu0 0.0
    %1153 = vmatpush.msra.mxu0 0.0
    %1154 = vmatpush.msra.mxu0 0.0
    %1155 = vmatpush.msra.mxu0 0.0
    %1156 = vmatpush.msra.mxu0 0.0
    %1157 = vmatpush.msra.mxu0 0.0
    %1158 = vmatpush.msra.mxu0 0.0
    %1159 = vmatpush.msra.mxu0 %v1138
    %1160 = vmatpush.msra.mxu0 %v1137
    %1161 = vmatpush.msra.mxu0 %v1136
    %1162 = vmatpush.msra.mxu0 %v1135
    %1163 = vmatmul.f32.gmra.mxu0 %v1145
    %v1164 = vpop.f32.mrf.mxu0
    %v1165 = vadd.f32 %v1141, %v1164
    %1166 = vdwg.mxu0
    %v1167 = vmax.f32 %v1165, 0.0
    %v1168 = vld [vmem:[%s9] sm:$0xff]
    %v1169 = vld [vmem:[%s9 + $0x8] sm:$0xff]
    %v1170 = vld [vmem:[%s9 + $0x10] sm:$0xff]
    %v1171 = vld [vmem:[%s9 + $0x18] sm:$0xff]
    %v1172 = vld [vmem:[%s10] sm:$0x1]
    %v1174 = vperm.slane %v1172, 0
    %v1177 = vsel %vm1143, %v1167, 0
    %1179 = vmatpush.msra.mxu0 0.0
    %1180 = vmatpush.msra.mxu0 0.0
    %1181 = vmatpush.msra.mxu0 0.0
    %1182 = vmatpush.msra.mxu0 0.0
    %1183 = vmatpush.msra.mxu0 0.0
    %1184 = vmatpush.msra.mxu0 0.0
    %1185 = vmatpush.msra.mxu0 0.0
    %1186 = vmatpush.msra.mxu0 0.0
    %1187 = vmatpush.msra.mxu0 0.0
    %1188 = vmatpush.msra.mxu0 0.0
    %1189 = vmatpush.msra.mxu0 0.0
    %1190 = vmatpush.msra.mxu0 0.0
    %1191 = vmatpush.msra.mxu0 %v1171
    %1192 = vmatpush.msra.mxu0 %v1170
    %1193 = vmatpush.msra.mxu0 %v1169
    %1194 = vmatpush.msra.mxu0 %v1168
    %1195 = vmatmul.f32.gmra.mxu0 %v1177
    %v1196 = vpop.f32.mrf.mxu0
    %v1197 = vadd.f32 %v1174, %v1196
    %1198 = vdwg.mxu0
    %v1199 = vmul.f32 %v1197, %v1197
    %vm1200 = vcmask 123904
    %v1201 = vsel %vm1200, %v1199, 0.0
    %1202 = vadd.xlane.f32.xlu0 %v1201
    %v1203 = vpop.xlane.xlu0 %1202
    %v1204 = vmax.f32 %v1203, 1e-24
    %v1205 = vrsqrt.pop %v1204
    %v1206 = vmul.f32 %v1205, %v1204
    %v1207 = vmul.f32 %v1206, %v1205
    %v1208 = vmul.f32 0.5, %v1207
    %v1209 = vsub.f32 1.5, %v1208
    %v1210 = vmul.f32 %v1205, %v1209
    %vm1211 = vweird.f32 %v1204
    %vm1212 = vweird.f32 %v1205
    %vm1213 = vmor %vm1211, %vm1212
    %v1214 = vsel %vm1213, %v1205, %v1210
    %v1215 = vmul.f32 %v1197, %v1214
    %1216 = vst.msk [vmem:[#allocation5] sm:$0x3] %vm1200, %v1215
    // Predicated region
    $region46: #{_forward_pair.2} parent=1 // pred_check
      _
    $region47: #{_forward_pair.2} parent=1 // pred_check_branch
      %1218 = sbr.rel (0) target = $region49
    $region48: #{_forward_pair.2} parent=1 // pred_region
      %1220 = vsyncadd [#allocation6], 0
      %s1222 = sshll.u32 [#allocation5], 4
      %s1223 = int_to_ptr.vmem [resolvable:$true] %s1222
      %s1224 = sshll.u32 %s11, 4
      %s1225 = int_to_ptr.hbm [resolvable:$true] %s1224
      %1227 = dma.vmem_to_hbm [thread:$0]  %s1223, 32, %s1225, [#allocation6]
    $region49: #{_forward_pair.2} parent=1 // pred_fallthru
      _
    // Predicated region
    $region50: #{_forward_pair.2} parent=1 // pred_check
      _
    $region51: #{_forward_pair.2} parent=1 // pred_check_branch
      %1229 = sbr.rel (0) target = $region53
    $region52: #{_forward_pair.2} parent=1 // pred_region
      %1231 = dma.done [#allocation6], 32
    $region53: #{_forward_pair.2} parent=1 // pred_fallthru
      _
    %1232 = vsyncpa [#allocation6], 1

// kernel: _forward_pair.3
$region0: #{_forward_pair.3}
  #allocation0 [shape = 'u32[]', space=smem, size = 0x4, offset = 0x4, fixed_abs, tag = 'smem constant byte address 0x4 - core index']
  #allocation1 [shape = 'u32[72,128]{1,0:T(1,128)}', space=vmem, size = 0x9000, scoped, tag = 'internal scratch']
  #allocation2 [shape = 'f32[2,34,128]{2,1,0:T(8,128)}', space=vmem, size = 0xa000, scoped, tag = 'scratch operand']
  #allocation3 [shape = 'f32[2,34,256]{2,1,0:T(8,128)}', space=vmem, size = 0x14000, scoped, tag = 'scratch operand']
  #allocation4 [shape = 'f32[2,32,256]{2,1,0:T(8,128)}', space=vmem, size = 0x10000, scoped, tag = 'scratch operand']
  %s0 = inlined_call_operand.vmem [shape: f32[2,32,128], index: 0, kind: input, shape index: {}]
  %s1 = inlined_call_operand.vmem [shape: f32[3,128,256], index: 1, kind: input, shape index: {}]
  %s2 = inlined_call_operand.vmem [shape: f32[1,256], index: 2, kind: input, shape index: {}]
  %s3 = inlined_call_operand.vmem [shape: f32[3,256,256], index: 3, kind: input, shape index: {}]
  %s4 = inlined_call_operand.vmem [shape: f32[1,256], index: 4, kind: input, shape index: {}]
  %s5 = inlined_call_operand.vmem [shape: f32[16,128,32], index: 5, kind: input, shape index: {}]
  %s6 = inlined_call_operand.vmem [shape: f32[1,32], index: 6, kind: input, shape index: {}]
  %s7 = inlined_call_operand.vmem [shape: f32[32,32], index: 7, kind: input, shape index: {}]
  %s8 = inlined_call_operand.vmem [shape: f32[1,32], index: 8, kind: input, shape index: {}]
  %s9 = inlined_call_operand.vmem [shape: f32[32,16], index: 9, kind: input, shape index: {}]
  %s10 = inlined_call_operand.vmem [shape: f32[1,16], index: 10, kind: input, shape index: {}]
  %s11 = inlined_call_operand.hbm [shape: f32[2,16], index: 11, kind: output, shape index: {}]
  %s12 = sld [smem:[#allocation0]]
  $region54: #{_forward_pair.3} parent=0
    _
  %s14 = ssub.s32 1, %s12
  %s15 = scalar_select 0, %s14, %s12
  $region1: #{_forward_pair.3} parent=0
    #allocation5 [shape = 'u8[1024]{0}', space=vmem, size = 0x400, scoped, tag = 'output window, operand 0, single buffered']
    #allocation6 [shape = 's32[1]{0}', space=sflag, size = 0x4, scoped, tag = 'scoped memory for _forward_pair.3']
    %16 = vsyncpa [#allocation6], 0
    // Predicated region
    $region2: #{_forward_pair.3} parent=1 // pred_check
      _
    $region3: #{_forward_pair.3} parent=1 // pred_check_branch
      %18 = sbr.rel (0) target = $region5
    $region4: #{_forward_pair.3} parent=1 // pred_region
      _
    $region5: #{_forward_pair.3} parent=1 // pred_fallthru
      _
    // Predicated region
    $region6: #{_forward_pair.3} parent=1 // pred_check
      _
    $region7: #{_forward_pair.3} parent=1 // pred_check_branch
      %20 = sbr.rel (0) target = $region9
    $region8: #{_forward_pair.3} parent=1 // pred_region
      _
    $region9: #{_forward_pair.3} parent=1 // pred_fallthru
      _
    // Predicated region
    $region10: #{_forward_pair.3} parent=1 // pred_check
      _
    $region11: #{_forward_pair.3} parent=1 // pred_check_branch
      %22 = sbr.rel (0) target = $region13
    $region12: #{_forward_pair.3} parent=1 // pred_region
      _
    $region13: #{_forward_pair.3} parent=1 // pred_fallthru
      _
    // Predicated region
    $region14: #{_forward_pair.3} parent=1 // pred_check
      _
    $region15: #{_forward_pair.3} parent=1 // pred_check_branch
      %24 = sbr.rel (0) target = $region17
    $region16: #{_forward_pair.3} parent=1 // pred_region
      _
    $region17: #{_forward_pair.3} parent=1 // pred_fallthru
      _
    // Predicated region
    $region18: #{_forward_pair.3} parent=1 // pred_check
      _
    $region19: #{_forward_pair.3} parent=1 // pred_check_branch
      %26 = sbr.rel (0) target = $region21
    $region20: #{_forward_pair.3} parent=1 // pred_region
      _
    $region21: #{_forward_pair.3} parent=1 // pred_fallthru
      _
    // Predicated region
    $region22: #{_forward_pair.3} parent=1 // pred_check
      _
    $region23: #{_forward_pair.3} parent=1 // pred_check_branch
      %28 = sbr.rel (0) target = $region25
    $region24: #{_forward_pair.3} parent=1 // pred_region
      _
    $region25: #{_forward_pair.3} parent=1 // pred_fallthru
      _
    // Predicated region
    $region26: #{_forward_pair.3} parent=1 // pred_check
      _
    $region27: #{_forward_pair.3} parent=1 // pred_check_branch
      %30 = sbr.rel (0) target = $region29
    $region28: #{_forward_pair.3} parent=1 // pred_region
      _
    $region29: #{_forward_pair.3} parent=1 // pred_fallthru
      _
    // Predicated region
    $region30: #{_forward_pair.3} parent=1 // pred_check
      _
    $region31: #{_forward_pair.3} parent=1 // pred_check_branch
      %32 = sbr.rel (0) target = $region33
    $region32: #{_forward_pair.3} parent=1 // pred_region
      _
    $region33: #{_forward_pair.3} parent=1 // pred_fallthru
      _
    // Predicated region
    $region34: #{_forward_pair.3} parent=1 // pred_check
      _
    $region35: #{_forward_pair.3} parent=1 // pred_check_branch
      %34 = sbr.rel (0) target = $region37
    $region36: #{_forward_pair.3} parent=1 // pred_region
      _
    $region37: #{_forward_pair.3} parent=1 // pred_fallthru
      _
    // Predicated region
    $region38: #{_forward_pair.3} parent=1 // pred_check
      _
    $region39: #{_forward_pair.3} parent=1 // pred_check_branch
      %36 = sbr.rel (0) target = $region41
    $region40: #{_forward_pair.3} parent=1 // pred_region
      _
    $region41: #{_forward_pair.3} parent=1 // pred_fallthru
      _
    // Predicated region
    $region42: #{_forward_pair.3} parent=1 // pred_check
      _
    $region43: #{_forward_pair.3} parent=1 // pred_check_branch
      %38 = sbr.rel (0) target = $region45
    $region44: #{_forward_pair.3} parent=1 // pred_region
      _
    $region45: #{_forward_pair.3} parent=1 // pred_fallthru
      _
    %39 = vst [vmem:[#allocation2] sm:$0xff] 0.0
    %40 = vst [vmem:[#allocation2 + $0x8] sm:$0xff] 0.0
    %41 = vst [vmem:[#allocation2 + $0x10] sm:$0xff] 0.0
    %42 = vst [vmem:[#allocation2 + $0x18] sm:$0xff] 0.0
    %43 = vst [vmem:[#allocation2 + $0x20] sm:$0x3] 0.0
    %44 = vst [vmem:[#allocation2 + $0x28] sm:$0xff] 0.0
    %45 = vst [vmem:[#allocation2 + $0x30] sm:$0xff] 0.0
    %46 = vst [vmem:[#allocation2 + $0x38] sm:$0xff] 0.0
    %47 = vst [vmem:[#allocation2 + $0x40] sm:$0xff] 0.0
    %48 = vst [vmem:[#allocation2 + $0x48] sm:$0x3] 0.0
    %v49 = vld [vmem:[%s0] sm:$0xff]
    %v50 = vld [vmem:[%s0 + $0x8] sm:$0xff]
    %v51 = vld [vmem:[%s0 + $0x10] sm:$0xff]
    %v52 = vld [vmem:[%s0 + $0x18] sm:$0xff]
    %v53 = vld [vmem:[%s0 + $0x20] sm:$0xff]
    %v54 = vld [vmem:[%s0 + $0x28] sm:$0xff]
    %v55 = vld [vmem:[%s0 + $0x30] sm:$0xff]
    %v56 = vld [vmem:[%s0 + $0x38] sm:$0xff]
    %57 = vst [vmem:[#allocation2 + $0x1] sm:$0xff] %v49
    %58 = vst [vmem:[#allocation2 + $0x9] sm:$0xff] %v50
    %59 = vst [vmem:[#allocation2 + $0x11] sm:$0xff] %v51
    %60 = vst [vmem:[#allocation2 + $0x19] sm:$0xff] %v52
    %61 = vst [vmem:[#allocation2 + $0x29] sm:$0xff] %v53
    %62 = vst [vmem:[#allocation2 + $0x31] sm:$0xff] %v54
    %63 = vst [vmem:[#allocation2 + $0x39] sm:$0xff] %v55
    %64 = vst [vmem:[#allocation2 + $0x41] sm:$0xff] %v56
    %v65 = vld [vmem:[#allocation2] sm:$0xff]
    %v66 = vld [vmem:[#allocation2 + $0x8] sm:$0xff]
    %v67 = vld [vmem:[#allocation2 + $0x10] sm:$0xff]
    %v68 = vld [vmem:[#allocation2 + $0x18] sm:$0xff]
    %v69 = vld [vmem:[#allocation2 + $0x28] sm:$0xff]
    %v70 = vld [vmem:[#allocation2 + $0x30] sm:$0xff]
    %v71 = vld [vmem:[#allocation2 + $0x38] sm:$0xff]
    %v72 = vld [vmem:[#allocation2 + $0x40] sm:$0xff]
    %v73 = vld [vmem:[%s1] sm:$0xff]
    %v74 = vld [vmem:[%s1 + $0x8] sm:$0xff]
    %v75 = vld [vmem:[%s1 + $0x10] sm:$0xff]
    %v76 = vld [vmem:[%s1 + $0x18] sm:$0xff]
    %v77 = vld [vmem:[%s1 + $0x20] sm:$0xff]
    %v78 = vld [vmem:[%s1 + $0x28] sm:$0xff]
    %v79 = vld [vmem:[%s1 + $0x30] sm:$0xff]
    %v80 = vld [vmem:[%s1 + $0x38] sm:$0xff]
    %v81 = vld [vmem:[%s1 + $0x40] sm:$0xff]
    %v82 = vld [vmem:[%s1 + $0x48] sm:$0xff]
    %v83 = vld [vmem:[%s1 + $0x50] sm:$0xff]
    %v84 = vld [vmem:[%s1 + $0x58] sm:$0xff]
    %v85 = vld [vmem:[%s1 + $0x60] sm:$0xff]
    %v86 = vld [vmem:[%s1 + $0x68] sm:$0xff]
    %v87 = vld [vmem:[%s1 + $0x70] sm:$0xff]
    %v88 = vld [vmem:[%s1 + $0x78] sm:$0xff]
    %v89 = vld [vmem:[%s1 + $0x80] sm:$0xff]
    %v90 = vld [vmem:[%s1 + $0x88] sm:$0xff]
    %v91 = vld [vmem:[%s1 + $0x90] sm:$0xff]
    %v92 = vld [vmem:[%s1 + $0x98] sm:$0xff]
    %v93 = vld [vmem:[%s1 + $0xa0] sm:$0xff]
    %v94 = vld [vmem:[%s1 + $0xa8] sm:$0xff]
    %v95 = vld [vmem:[%s1 + $0xb0] sm:$0xff]
    %v96 = vld [vmem:[%s1 + $0xb8] sm:$0xff]
    %v97 = vld [vmem:[%s1 + $0xc0] sm:$0xff]
    %v98 = vld [vmem:[%s1 + $0xc8] sm:$0xff]
    %v99 = vld [vmem:[%s1 + $0xd0] sm:$0xff]
    %v100 = vld [vmem:[%s1 + $0xd8] sm:$0xff]
    %v101 = vld [vmem:[%s1 + $0xe0] sm:$0xff]
    %v102 = vld [vmem:[%s1 + $0xe8] sm:$0xff]
    %v103 = vld [vmem:[%s1 + $0xf0] sm:$0xff]
    %v104 = vld [vmem:[%s1 + $0xf8] sm:$0xff]
    %v105 = vld [vmem:[#allocation2 + $0x1] sm:$0xff]
    %v106 = vld [vmem:[#allocation2 + $0x9] sm:$0xff]
    %v107 = vld [vmem:[#allocation2 + $0x11] sm:$0xff]
    %v108 = vld [vmem:[#allocation2 + $0x19] sm:$0xff]
    %v109 = vld [vmem:[#allocation2 + $0x29] sm:$0xff]
    %v110 = vld [vmem:[#allocation2 + $0x31] sm:$0xff]
    %v111 = vld [vmem:[#allocation2 + $0x39] sm:$0xff]
    %v112 = vld [vmem:[#allocation2 + $0x41] sm:$0xff]
    %s113 = scalar_lea.vmem %s1, 256
    %v114 = vld [vmem:[%s113] sm:$0xff]
    %v115 = vld [vmem:[%s113 + $0x8] sm:$0xff]
    %v116 = vld [vmem:[%s113 + $0x10] sm:$0xff]
    %v117 = vld [vmem:[%s113 + $0x18] sm:$0xff]
    %v118 = vld [vmem:[%s113 + $0x20] sm:$0xff]
    %v119 = vld [vmem:[%s113 + $0x28] sm:$0xff]
    %v120 = vld [vmem:[%s113 + $0x30] sm:$0xff]
    %v121 = vld [vmem:[%s113 + $0x38] sm:$0xff]
    %v122 = vld [vmem:[%s113 + $0x40] sm:$0xff]
    %v123 = vld [vmem:[%s113 + $0x48] sm:$0xff]
    %v124 = vld [vmem:[%s113 + $0x50] sm:$0xff]
    %v125 = vld [vmem:[%s113 + $0x58] sm:$0xff]
    %v126 = vld [vmem:[%s113 + $0x60] sm:$0xff]
    %v127 = vld [vmem:[%s113 + $0x68] sm:$0xff]
    %v128 = vld [vmem:[%s113 + $0x70] sm:$0xff]
    %v129 = vld [vmem:[%s113 + $0x78] sm:$0xff]
    %v130 = vld [vmem:[%s113 + $0x80] sm:$0xff]
    %v131 = vld [vmem:[%s113 + $0x88] sm:$0xff]
    %v132 = vld [vmem:[%s113 + $0x90] sm:$0xff]
    %v133 = vld [vmem:[%s113 + $0x98] sm:$0xff]
    %v134 = vld [vmem:[%s113 + $0xa0] sm:$0xff]
    %v135 = vld [vmem:[%s113 + $0xa8] sm:$0xff]
    %v136 = vld [vmem:[%s113 + $0xb0] sm:$0xff]
    %v137 = vld [vmem:[%s113 + $0xb8] sm:$0xff]
    %v138 = vld [vmem:[%s113 + $0xc0] sm:$0xff]
    %v139 = vld [vmem:[%s113 + $0xc8] sm:$0xff]
    %v140 = vld [vmem:[%s113 + $0xd0] sm:$0xff]
    %v141 = vld [vmem:[%s113 + $0xd8] sm:$0xff]
    %v142 = vld [vmem:[%s113 + $0xe0] sm:$0xff]
    %v143 = vld [vmem:[%s113 + $0xe8] sm:$0xff]
    %v144 = vld [vmem:[%s113 + $0xf0] sm:$0xff]
    %v145 = vld [vmem:[%s113 + $0xf8] sm:$0xff]
    %146 = vmatpush.msra.mxu0 %v144
    %147 = vmatpush.msra.mxu0 %v142
    %148 = vmatpush.msra.mxu0 %v140
    %149 = vmatpush.msra.mxu0 %v138
    %150 = vmatpush.msra.mxu0 %v136
    %151 = vmatpush.msra.mxu0 %v134
    %152 = vmatpush.msra.mxu0 %v132
    %153 = vmatpush.msra.mxu0 %v130
    %154 = vmatpush.msra.mxu0 %v128
    %155 = vmatpush.msra.mxu0 %v126
    %156 = vmatpush.msra.mxu0 %v124
    %157 = vmatpush.msra.mxu0 %v122
    %158 = vmatpush.msra.mxu0 %v120
    %159 = vmatpush.msra.mxu0 %v118
    %160 = vmatpush.msra.mxu0 %v116
    %161 = vmatpush.msra.mxu0 %v114
    %162 = vmatmul.f32.gmra.mxu0 %v105
    %v163 = vpop.f32.mrf.mxu0
    %v164 = vadd.f32 0.0, %v163
    %165 = vmatmul.f32.gmra.mxu0 %v106
    %v166 = vpop.f32.mrf.mxu0
    %v167 = vadd.f32 0.0, %v166
    %168 = vmatmul.f32.gmra.mxu0 %v107
    %v169 = vpop.f32.mrf.mxu0
    %v170 = vadd.f32 0.0, %v169
    %171 = vmatmul.f32.gmra.mxu0 %v108
    %v172 = vpop.f32.mrf.mxu0
    %v173 = vadd.f32 0.0, %v172
    %174 = vmatmul.f32.gmra.mxu0 %v109
    %v175 = vpop.f32.mrf.mxu0
    %v176 = vadd.f32 0.0, %v175
    %177 = vmatmul.f32.gmra.mxu0 %v110
    %v178 = vpop.f32.mrf.mxu0
    %v179 = vadd.f32 0.0, %v178
    %180 = vmatmul.f32.gmra.mxu0 %v111
    %v181 = vpop.f32.mrf.mxu0
    %v182 = vadd.f32 0.0, %v181
    %183 = vmatmul.f32.gmra.mxu0 %v112
    %v184 = vpop.f32.mrf.mxu0
    %v185 = vadd.f32 0.0, %v184
    %186 = vdwg.mxu0
    %187 = vmatpush.msra.mxu0 %v145
    %188 = vmatpush.msra.mxu0 %v143
    %189 = vmatpush.msra.mxu0 %v141
    %190 = vmatpush.msra.mxu0 %v139
    %191 = vmatpush.msra.mxu0 %v137
    %192 = vmatpush.msra.mxu0 %v135
    %193 = vmatpush.msra.mxu0 %v133
    %194 = vmatpush.msra.mxu0 %v131
    %195 = vmatpush.msra.mxu0 %v129
    %196 = vmatpush.msra.mxu0 %v127
    %197 = vmatpush.msra.mxu0 %v125
    %198 = vmatpush.msra.mxu0 %v123
    %199 = vmatpush.msra.mxu0 %v121
    %200 = vmatpush.msra.mxu0 %v119
    %201 = vmatpush.msra.mxu0 %v117
    %202 = vmatpush.msra.mxu0 %v115
    %203 = vmatmul.f32.gmra.mxu0 %v105
    %v204 = vpop.f32.mrf.mxu0
    %v205 = vadd.f32 0.0, %v204
    %206 = vmatmul.f32.gmra.mxu0 %v106
    %v207 = vpop.f32.mrf.mxu0
    %v208 = vadd.f32 0.0, %v207
    %209 = vmatmul.f32.gmra.mxu0 %v107
    %v210 = vpop.f32.mrf.mxu0
    %v211 = vadd.f32 0.0, %v210
    %212 = vmatmul.f32.gmra.mxu0 %v108
    %v213 = vpop.f32.mrf.mxu0
    %v214 = vadd.f32 0.0, %v213
    %215 = vmatmul.f32.gmra.mxu0 %v109
    %v216 = vpop.f32.mrf.mxu0
    %v217 = vadd.f32 0.0, %v216
    %218 = vmatmul.f32.gmra.mxu0 %v110
    %v219 = vpop.f32.mrf.mxu0
    %v220 = vadd.f32 0.0, %v219
    %221 = vmatmul.f32.gmra.mxu0 %v111
    %v222 = vpop.f32.mrf.mxu0
    %v223 = vadd.f32 0.0, %v222
    %224 = vmatmul.f32.gmra.mxu0 %v112
    %v225 = vpop.f32.mrf.mxu0
    %v226 = vadd.f32 0.0, %v225
    %227 = vdwg.mxu0
    %228 = vmatpush.msra.mxu0 %v103
    %229 = vmatpush.msra.mxu0 %v101
    %230 = vmatpush.msra.mxu0 %v99
    %231 = vmatpush.msra.mxu0 %v97
    %232 = vmatpush.msra.mxu0 %v95
    %233 = vmatpush.msra.mxu0 %v93
    %234 = vmatpush.msra.mxu0 %v91
    %235 = vmatpush.msra.mxu0 %v89
    %236 = vmatpush.msra.mxu0 %v87
    %237 = vmatpush.msra.mxu0 %v85
    %238 = vmatpush.msra.mxu0 %v83
    %239 = vmatpush.msra.mxu0 %v81
    %240 = vmatpush.msra.mxu0 %v79
    %241 = vmatpush.msra.mxu0 %v77
    %242 = vmatpush.msra.mxu0 %v75
    %243 = vmatpush.msra.mxu0 %v73
    %244 = vmatmul.f32.gmra.mxu0 %v65
    %v245 = vpop.f32.mrf.mxu0
    %v246 = vadd.f32 %v164, %v245
    %247 = vmatmul.f32.gmra.mxu0 %v66
    %v248 = vpop.f32.mrf.mxu0
    %v249 = vadd.f32 %v167, %v248
    %250 = vmatmul.f32.gmra.mxu0 %v67
    %v251 = vpop.f32.mrf.mxu0
    %v252 = vadd.f32 %v170, %v251
    %253 = vmatmul.f32.gmra.mxu0 %v68
    %v254 = vpop.f32.mrf.mxu0
    %v255 = vadd.f32 %v173, %v254
    %256 = vmatmul.f32.gmra.mxu0 %v69
    %v257 = vpop.f32.mrf.mxu0
    %v258 = vadd.f32 %v176, %v257
    %259 = vmatmul.f32.gmra.mxu0 %v70
    %v260 = vpop.f32.mrf.mxu0
    %v261 = vadd.f32 %v179, %v260
    %262 = vmatmul.f32.gmra.mxu0 %v71
    %v263 = vpop.f32.mrf.mxu0
    %v264 = vadd.f32 %v182, %v263
    %265 = vmatmul.f32.gmra.mxu0 %v72
    %v266 = vpop.f32.mrf.mxu0
    %v267 = vadd.f32 %v185, %v266
    %268 = vdwg.mxu0
    %269 = vmatpush.msra.mxu0 %v104
    %270 = vmatpush.msra.mxu0 %v102
    %271 = vmatpush.msra.mxu0 %v100
    %272 = vmatpush.msra.mxu0 %v98
    %273 = vmatpush.msra.mxu0 %v96
    %274 = vmatpush.msra.mxu0 %v94
    %275 = vmatpush.msra.mxu0 %v92
    %276 = vmatpush.msra.mxu0 %v90
    %277 = vmatpush.msra.mxu0 %v88
    %278 = vmatpush.msra.mxu0 %v86
    %279 = vmatpush.msra.mxu0 %v84
    %280 = vmatpush.msra.mxu0 %v82
    %281 = vmatpush.msra.mxu0 %v80
    %282 = vmatpush.msra.mxu0 %v78
    %283 = vmatpush.msra.mxu0 %v76
    %284 = vmatpush.msra.mxu0 %v74
    %285 = vmatmul.f32.gmra.mxu0 %v65
    %v286 = vpop.f32.mrf.mxu0
    %v287 = vadd.f32 %v205, %v286
    %288 = vmatmul.f32.gmra.mxu0 %v66
    %v289 = vpop.f32.mrf.mxu0
    %v290 = vadd.f32 %v208, %v289
    %291 = vmatmul.f32.gmra.mxu0 %v67
    %v292 = vpop.f32.mrf.mxu0
    %v293 = vadd.f32 %v211, %v292
    %294 = vmatmul.f32.gmra.mxu0 %v68
    %v295 = vpop.f32.mrf.mxu0
    %v296 = vadd.f32 %v214, %v295
    %297 = vmatmul.f32.gmra.mxu0 %v69
    %v298 = vpop.f32.mrf.mxu0
    %v299 = vadd.f32 %v217, %v298
    %300 = vmatmul.f32.gmra.mxu0 %v70
    %v301 = vpop.f32.mrf.mxu0
    %v302 = vadd.f32 %v220, %v301
    %303 = vmatmul.f32.gmra.mxu0 %v71
    %v304 = vpop.f32.mrf.mxu0
    %v305 = vadd.f32 %v223, %v304
    %306 = vmatmul.f32.gmra.mxu0 %v72
    %v307 = vpop.f32.mrf.mxu0
    %v308 = vadd.f32 %v226, %v307
    %309 = vdwg.mxu0
    %v310 = vld [vmem:[#allocation2 + $0x2] sm:$0xff]
    %v311 = vld [vmem:[#allocation2 + $0xa] sm:$0xff]
    %v312 = vld [vmem:[#allocation2 + $0x12] sm:$0xff]
    %v313 = vld [vmem:[#allocation2 + $0x1a] sm:$0xff]
    %v314 = vld [vmem:[#allocation2 + $0x2a] sm:$0xff]
    %v315 = vld [vmem:[#allocation2 + $0x32] sm:$0xff]
    %v316 = vld [vmem:[#allocation2 + $0x3a] sm:$0xff]
    %v317 = vld [vmem:[#allocation2 + $0x42] sm:$0xff]
    %s318 = scalar_lea.vmem %s1, 512
    %v319 = vld [vmem:[%s318] sm:$0xff]
    %v320 = vld [vmem:[%s318 + $0x8] sm:$0xff]
    %v321 = vld [vmem:[%s318 + $0x10] sm:$0xff]
    %v322 = vld [vmem:[%s318 + $0x18] sm:$0xff]
    %v323 = vld [vmem:[%s318 + $0x20] sm:$0xff]
    %v324 = vld [vmem:[%s318 + $0x28] sm:$0xff]
    %v325 = vld [vmem:[%s318 + $0x30] sm:$0xff]
    %v326 = vld [vmem:[%s318 + $0x38] sm:$0xff]
    %v327 = vld [vmem:[%s318 + $0x40] sm:$0xff]
    %v328 = vld [vmem:[%s318 + $0x48] sm:$0xff]
    %v329 = vld [vmem:[%s318 + $0x50] sm:$0xff]
    %v330 = vld [vmem:[%s318 + $0x58] sm:$0xff]
    %v331 = vld [vmem:[%s318 + $0x60] sm:$0xff]
    %v332 = vld [vmem:[%s318 + $0x68] sm:$0xff]
    %v333 = vld [vmem:[%s318 + $0x70] sm:$0xff]
    %v334 = vld [vmem:[%s318 + $0x78] sm:$0xff]
    %v335 = vld [vmem:[%s318 + $0x80] sm:$0xff]
    %v336 = vld [vmem:[%s318 + $0x88] sm:$0xff]
    %v337 = vld [vmem:[%s318 + $0x90] sm:$0xff]
    %v338 = vld [vmem:[%s318 + $0x98] sm:$0xff]
    %v339 = vld [vmem:[%s318 + $0xa0] sm:$0xff]
    %v340 = vld [vmem:[%s318 + $0xa8] sm:$0xff]
    %v341 = vld [vmem:[%s318 + $0xb0] sm:$0xff]
    %v342 = vld [vmem:[%s318 + $0xb8] sm:$0xff]
    %v343 = vld [vmem:[%s318 + $0xc0] sm:$0xff]
    %v344 = vld [vmem:[%s318 + $0xc8] sm:$0xff]
    %v345 = vld [vmem:[%s318 + $0xd0] sm:$0xff]
    %v346 = vld [vmem:[%s318 + $0xd8] sm:$0xff]
    %v347 = vld [vmem:[%s318 + $0xe0] sm:$0xff]
    %v348 = vld [vmem:[%s318 + $0xe8] sm:$0xff]
    %v349 = vld [vmem:[%s318 + $0xf0] sm:$0xff]
    %v350 = vld [vmem:[%s318 + $0xf8] sm:$0xff]
    %351 = vmatpush.msra.mxu0 %v349
    %352 = vmatpush.msra.mxu0 %v347
    %353 = vmatpush.msra.mxu0 %v345
    %354 = vmatpush.msra.mxu0 %v343
    %355 = vmatpush.msra.mxu0 %v341
    %356 = vmatpush.msra.mxu0 %v339
    %357 = vmatpush.msra.mxu0 %v337
    %358 = vmatpush.msra.mxu0 %v335
    %359 = vmatpush.msra.mxu0 %v333
    %360 = vmatpush.msra.mxu0 %v331
    %361 = vmatpush.msra.mxu0 %v329
    %362 = vmatpush.msra.mxu0 %v327
    %363 = vmatpush.msra.mxu0 %v325
    %364 = vmatpush.msra.mxu0 %v323
    %365 = vmatpush.msra.mxu0 %v321
    %366 = vmatpush.msra.mxu0 %v319
    %367 = vmatmul.f32.gmra.mxu0 %v310
    %v368 = vpop.f32.mrf.mxu0
    %v369 = vadd.f32 0.0, %v368
    %370 = vmatmul.f32.gmra.mxu0 %v311
    %v371 = vpop.f32.mrf.mxu0
    %v372 = vadd.f32 0.0, %v371
    %373 = vmatmul.f32.gmra.mxu0 %v312
    %v374 = vpop.f32.mrf.mxu0
    %v375 = vadd.f32 0.0, %v374
    %376 = vmatmul.f32.gmra.mxu0 %v313
    %v377 = vpop.f32.mrf.mxu0
    %v378 = vadd.f32 0.0, %v377
    %379 = vmatmul.f32.gmra.mxu0 %v314
    %v380 = vpop.f32.mrf.mxu0
    %v381 = vadd.f32 0.0, %v380
    %382 = vmatmul.f32.gmra.mxu0 %v315
    %v383 = vpop.f32.mrf.mxu0
    %v384 = vadd.f32 0.0, %v383
    %385 = vmatmul.f32.gmra.mxu0 %v316
    %v386 = vpop.f32.mrf.mxu0
    %v387 = vadd.f32 0.0, %v386
    %388 = vmatmul.f32.gmra.mxu0 %v317
    %v389 = vpop.f32.mrf.mxu0
    %v390 = vadd.f32 0.0, %v389
    %391 = vdwg.mxu0
    %392 = vmatpush.msra.mxu0 %v350
    %393 = vmatpush.msra.mxu0 %v348
    %394 = vmatpush.msra.mxu0 %v346
    %395 = vmatpush.msra.mxu0 %v344
    %396 = vmatpush.msra.mxu0 %v342
    %397 = vmatpush.msra.mxu0 %v340
    %398 = vmatpush.msra.mxu0 %v338
    %399 = vmatpush.msra.mxu0 %v336
    %400 = vmatpush.msra.mxu0 %v334
    %401 = vmatpush.msra.mxu0 %v332
    %402 = vmatpush.msra.mxu0 %v330
    %403 = vmatpush.msra.mxu0 %v328
    %404 = vmatpush.msra.mxu0 %v326
    %405 = vmatpush.msra.mxu0 %v324
    %406 = vmatpush.msra.mxu0 %v322
    %407 = vmatpush.msra.mxu0 %v320
    %408 = vmatmul.f32.gmra.mxu0 %v310
    %v409 = vpop.f32.mrf.mxu0
    %v410 = vadd.f32 0.0, %v409
    %411 = vmatmul.f32.gmra.mxu0 %v311
    %v412 = vpop.f32.mrf.mxu0
    %v413 = vadd.f32 0.0, %v412
    %414 = vmatmul.f32.gmra.mxu0 %v312
    %v415 = vpop.f32.mrf.mxu0
    %v416 = vadd.f32 0.0, %v415
    %417 = vmatmul.f32.gmra.mxu0 %v313
    %v418 = vpop.f32.mrf.mxu0
    %v419 = vadd.f32 0.0, %v418
    %420 = vmatmul.f32.gmra.mxu0 %v314
    %v421 = vpop.f32.mrf.mxu0
    %v422 = vadd.f32 0.0, %v421
    %423 = vmatmul.f32.gmra.mxu0 %v315
    %v424 = vpop.f32.mrf.mxu0
    %v425 = vadd.f32 0.0, %v424
    %426 = vmatmul.f32.gmra.mxu0 %v316
    %v427 = vpop.f32.mrf.mxu0
    %v428 = vadd.f32 0.0, %v427
    %429 = vmatmul.f32.gmra.mxu0 %v317
    %v430 = vpop.f32.mrf.mxu0
    %v431 = vadd.f32 0.0, %v430
    %432 = vdwg.mxu0
    %v433 = vadd.f32 %v246, %v369
    %v434 = vadd.f32 %v287, %v410
    %v435 = vadd.f32 %v249, %v372
    %v436 = vadd.f32 %v290, %v413
    %v437 = vadd.f32 %v252, %v375
    %v438 = vadd.f32 %v293, %v416
    %v439 = vadd.f32 %v255, %v378
    %v440 = vadd.f32 %v296, %v419
    %v441 = vadd.f32 %v258, %v381
    %v442 = vadd.f32 %v299, %v422
    %v443 = vadd.f32 %v261, %v384
    %v444 = vadd.f32 %v302, %v425
    %v445 = vadd.f32 %v264, %v387
    %v446 = vadd.f32 %v305, %v428
    %v447 = vadd.f32 %v267, %v390
    %v448 = vadd.f32 %v308, %v431
    %v449 = vld [vmem:[%s2] sm:$0x3]
    %v451 = vperm.slane %v449, 0
    %v452 = vperm.slane %v449, 1
    %v455 = vadd.f32 %v433, %v451
    %v456 = vadd.f32 %v434, %v452
    %v457 = vadd.f32 %v435, %v451
    %v458 = vadd.f32 %v436, %v452
    %v459 = vadd.f32 %v437, %v451
    %v460 = vadd.f32 %v438, %v452
    %v461 = vadd.f32 %v439, %v451
    %v462 = vadd.f32 %v440, %v452
    %v463 = vadd.f32 %v441, %v451
    %v464 = vadd.f32 %v442, %v452
    %v465 = vadd.f32 %v443, %v451
    %v466 = vadd.f32 %v444, %v452
    %v467 = vadd.f32 %v445, %v451
    %v468 = vadd.f32 %v446, %v452
    %v469 = vadd.f32 %v447, %v451
    %v470 = vadd.f32 %v448, %v452
    %v471 = vmax.f32 %v455, 0.0
    %v472 = vmax.f32 %v456, 0.0
    %v473 = vmax.f32 %v457, 0.0
    %v474 = vmax.f32 %v458, 0.0
    %v475 = vmax.f32 %v459, 0.0
    %v476 = vmax.f32 %v460, 0.0
    %v477 = vmax.f32 %v461, 0.0
    %v478 = vmax.f32 %v462, 0.0
    %v479 = vmax.f32 %v463, 0.0
    %v480 = vmax.f32 %v464, 0.0
    %v481 = vmax.f32 %v465, 0.0
    %v482 = vmax.f32 %v466, 0.0
    %v483 = vmax.f32 %v467, 0.0
    %v484 = vmax.f32 %v468, 0.0
    %v485 = vmax.f32 %v469, 0.0
    %v486 = vmax.f32 %v470, 0.0
    %487 = vst [vmem:[#allocation3] sm:$0xff] 0.0
    %488 = vst [vmem:[#allocation3 + $0x8] sm:$0xff] 0.0
    %489 = vst [vmem:[#allocation3 + $0x10] sm:$0xff] 0.0
    %490 = vst [vmem:[#allocation3 + $0x18] sm:$0xff] 0.0
    %491 = vst [vmem:[#allocation3 + $0x20] sm:$0xff] 0.0
    %492 = vst [vmem:[#allocation3 + $0x28] sm:$0xff] 0.0
    %493 = vst [vmem:[#allocation3 + $0x30] sm:$0xff] 0.0
    %494 = vst [vmem:[#allocation3 + $0x38] sm:$0xff] 0.0
    %495 = vst [vmem:[#allocation3 + $0x40] sm:$0x3] 0.0
    %496 = vst [vmem:[#allocation3 + $0x48] sm:$0x3] 0.0
    %497 = vst [vmem:[#allocation3 + $0x50] sm:$0xff] 0.0
    %498 = vst [vmem:[#allocation3 + $0x58] sm:$0xff] 0.0
    %499 = vst [vmem:[#allocation3 + $0x60] sm:$0xff] 0.0
    %500 = vst [vmem:[#allocation3 + $0x68] sm:$0xff] 0.0
    %501 = vst [vmem:[#allocation3 + $0x70] sm:$0xff] 0.0
    %502 = vst [vmem:[#allocation3 + $0x78] sm:$0xff] 0.0
    %503 = vst [vmem:[#allocation3 + $0x80] sm:$0xff] 0.0
    %504 = vst [vmem:[#allocation3 + $0x88] sm:$0xff] 0.0
    %505 = vst [vmem:[#allocation3 + $0x90] sm:$0x3] 0.0
    %506 = vst [vmem:[#allocation3 + $0x98] sm:$0x3] 0.0
    %vm523 = vcmask 1040384
    %v524 = vrot.slane %v471, 7
    %v525 = vrot.slane %v472, 7
    %v526 = vrot.slane %v473, 7
    %v527 = vsel %vm523, %v524, %v526
    %v528 = vrot.slane %v474, 7
    %v529 = vsel %vm523, %v525, %v528
    %v530 = vrot.slane %v475, 7
    %v531 = vsel %vm523, %v526, %v530
    %v532 = vrot.slane %v476, 7
    %v533 = vsel %vm523, %v528, %v532
    %v534 = vrot.slane %v477, 7
    %v535 = vsel %vm523, %v530, %v534
    %v536 = vrot.slane %v478, 7
    %v537 = vsel %vm523, %v532, %v536
    %v538 = vrot.slane %v479, 7
    %v539 = vrot.slane %v480, 7
    %v540 = vrot.slane %v481, 7
    %v541 = vsel %vm523, %v538, %v540
    %v542 = vrot.slane %v482, 7
    %v543 = vsel %vm523, %v539, %v542
    %v544 = vrot.slane %v483, 7
    %v545 = vsel %vm523, %v540, %v544
    %v546 = vrot.slane %v484, 7
    %v547 = vsel %vm523, %v542, %v546
    %v548 = vrot.slane %v485, 7
    %v549 = vsel %vm523, %v544, %v548
    %v550 = vrot.slane %v486, 7
    %v551 = vsel %vm523, %v546, %v550
    %572 = vst [vmem:[#allocation3] sm:$0xfe] %v524
    %573 = vst [vmem:[#allocation3 + $0x8] sm:$0xfe] %v525
    %574 = vst [vmem:[#allocation3 + $0x10] sm:$0xff] %v527
    %575 = vst [vmem:[#allocation3 + $0x18] sm:$0xff] %v529
    %576 = vst [vmem:[#allocation3 + $0x20] sm:$0xff] %v531
    %577 = vst [vmem:[#allocation3 + $0x28] sm:$0xff] %v533
    %578 = vst [vmem:[#allocation3 + $0x30] sm:$0xff] %v535
    %579 = vst [vmem:[#allocation3 + $0x38] sm:$0xff] %v537
    %580 = vst [vmem:[#allocation3 + $0x40] sm:$0x1] %v534
    %581 = vst [vmem:[#allocation3 + $0x48] sm:$0x1] %v536
    %582 = vst [vmem:[#allocation3 + $0x50] sm:$0xfe] %v538
    %583 = vst [vmem:[#allocation3 + $0x58] sm:$0xfe] %v539
    %584 = vst [vmem:[#allocation3 + $0x60] sm:$0xff] %v541
    %585 = vst [vmem:[#allocation3 + $0x68] sm:$0xff] %v543
    %586 = vst [vmem:[#allocation3 + $0x70] sm:$0xff] %v545
    %587 = vst [vmem:[#allocation3 + $0x78] sm:$0xff] %v547
    %588 = vst [vmem:[#allocation3 + $0x80] sm:$0xff] %v549
    %589 = vst [vmem:[#allocation3 + $0x88] sm:$0xff] %v551
    %590 = vst [vmem:[#allocation3 + $0x90] sm:$0x1] %v548
    %591 = vst [vmem:[#allocation3 + $0x98] sm:$0x1] %v550
    %v592 = vld [vmem:[#allocation3] sm:$0xff]
    %v593 = vld [vmem:[#allocation3 + $0x8] sm:$0xff]
    %v594 = vld [vmem:[#allocation3 + $0x10] sm:$0xff]
    %v595 = vld [vmem:[#allocation3 + $0x18] sm:$0xff]
    %v596 = vld [vmem:[#allocation3 + $0x20] sm:$0xff]
    %v597 = vld [vmem:[#allocation3 + $0x28] sm:$0xff]
    %v598 = vld [vmem:[#allocation3 + $0x30] sm:$0xff]
    %v599 = vld [vmem:[#allocation3 + $0x38] sm:$0xff]
    %v600 = vld [vmem:[#allocation3 + $0x50] sm:$0xff]
    %v601 = vld [vmem:[#allocation3 + $0x58] sm:$0xff]
    %v602 = vld [vmem:[#allocation3 + $0x60] sm:$0xff]
    %v603 = vld [vmem:[#allocation3 + $0x68] sm:$0xff]
    %v604 = vld [vmem:[#allocation3 + $0x70] sm:$0xff]
    %v605 = vld [vmem:[#allocation3 + $0x78] sm:$0xff]
    %v606 = vld [vmem:[#allocation3 + $0x80] sm:$0xff]
    %v607 = vld [vmem:[#allocation3 + $0x88] sm:$0xff]
    %v608 = vld [vmem:[%s3] sm:$0xff]
    %v609 = vld [vmem:[%s3 + $0x8] sm:$0xff]
    %v610 = vld [vmem:[%s3 + $0x10] sm:$0xff]
    %v611 = vld [vmem:[%s3 + $0x18] sm:$0xff]
    %v612 = vld [vmem:[%s3 + $0x20] sm:$0xff]
    %v613 = vld [vmem:[%s3 + $0x28] sm:$0xff]
    %v614 = vld [vmem:[%s3 + $0x30] sm:$0xff]
    %v615 = vld [vmem:[%s3 + $0x38] sm:$0xff]
    %v616 = vld [vmem:[%s3 + $0x40] sm:$0xff]
    %v617 = vld [vmem:[%s3 + $0x48] sm:$0xff]
    %v618 = vld [vmem:[%s3 + $0x50] sm:$0xff]
    %v619 = vld [vmem:[%s3 + $0x58] sm:$0xff]
    %v620 = vld [vmem:[%s3 + $0x60] sm:$0xff]
    %v621 = vld [vmem:[%s3 + $0x68] sm:$0xff]
    %v622 = vld [vmem:[%s3 + $0x70] sm:$0xff]
    %v623 = vld [vmem:[%s3 + $0x78] sm:$0xff]
    %v624 = vld [vmem:[%s3 + $0x80] sm:$0xff]
    %v625 = vld [vmem:[%s3 + $0x88] sm:$0xff]
    %v626 = vld [vmem:[%s3 + $0x90] sm:$0xff]
    %v627 = vld [vmem:[%s3 + $0x98] sm:$0xff]
    %v628 = vld [vmem:[%s3 + $0xa0] sm:$0xff]
    %v629 = vld [vmem:[%s3 + $0xa8] sm:$0xff]
    %v630 = vld [vmem:[%s3 + $0xb0] sm:$0xff]
    %v631 = vld [vmem:[%s3 + $0xb8] sm:$0xff]
    %v632 = vld [vmem:[%s3 + $0xc0] sm:$0xff]
    %v633 = vld [vmem:[%s3 + $0xc8] sm:$0xff]
    %v634 = vld [vmem:[%s3 + $0xd0] sm:$0xff]
    %v635 = vld [vmem:[%s3 + $0xd8] sm:$0xff]
    %v636 = vld [vmem:[%s3 + $0xe0] sm:$0xff]
    %v637 = vld [vmem:[%s3 + $0xe8] sm:$0xff]
    %v638 = vld [vmem:[%s3 + $0xf0] sm:$0xff]
    %v639 = vld [vmem:[%s3 + $0xf8] sm:$0xff]
    %v640 = vld [vmem:[%s3 + $0x100] sm:$0xff]
    %v641 = vld [vmem:[%s3 + $0x108] sm:$0xff]
    %v642 = vld [vmem:[%s3 + $0x110] sm:$0xff]
    %v643 = vld [vmem:[%s3 + $0x118] sm:$0xff]
    %v644 = vld [vmem:[%s3 + $0x120] sm:$0xff]
    %v645 = vld [vmem:[%s3 + $0x128] sm:$0xff]
    %v646 = vld [vmem:[%s3 + $0x130] sm:$0xff]
    %v647 = vld [vmem:[%s3 + $0x138] sm:$0xff]
    %v648 = vld [vmem:[%s3 + $0x140] sm:$0xff]
    %v649 = vld [vmem:[%s3 + $0x148] sm:$0xff]
    %v650 = vld [vmem:[%s3 + $0x150] sm:$0xff]
    %v651 = vld [vmem:[%s3 + $0x158] sm:$0xff]
    %v652 = vld [vmem:[%s3 + $0x160] sm:$0xff]
    %v653 = vld [vmem:[%s3 + $0x168] sm:$0xff]
    %v654 = vld [vmem:[%s3 + $0x170] sm:$0xff]
    %v655 = vld [vmem:[%s3 + $0x178] sm:$0xff]
    %v656 = vld [vmem:[%s3 + $0x180] sm:$0xff]
    %v657 = vld [vmem:[%s3 + $0x188] sm:$0xff]
    %v658 = vld [vmem:[%s3 + $0x190] sm:$0xff]
    %v659 = vld [vmem:[%s3 + $0x198] sm:$0xff]
    %v660 = vld [vmem:[%s3 + $0x1a0] sm:$0xff]
    %v661 = vld [vmem:[%s3 + $0x1a8] sm:$0xff]
    %v662 = vld [vmem:[%s3 + $0x1b0] sm:$0xff]
    %v663 = vld [vmem:[%s3 + $0x1b8] sm:$0xff]
    %v664 = vld [vmem:[%s3 + $0x1c0] sm:$0xff]
    %v665 = vld [vmem:[%s3 + $0x1c8] sm:$0xff]
    %v666 = vld [vmem:[%s3 + $0x1d0] sm:$0xff]
    %v667 = vld [vmem:[%s3 + $0x1d8] sm:$0xff]
    %v668 = vld [vmem:[%s3 + $0x1e0] sm:$0xff]
    %v669 = vld [vmem:[%s3 + $0x1e8] sm:$0xff]
    %v670 = vld [vmem:[%s3 + $0x1f0] sm:$0xff]
    %v671 = vld [vmem:[%s3 + $0x1f8] sm:$0xff]
    %v672 = vld [vmem:[#allocation3] sm:$0xfe]
    %v673 = vld [vmem:[#allocation3 + $0x8] sm:$0xfe]
    %v674 = vld [vmem:[#allocation3 + $0x40] sm:$0x1]
    %v675 = vld [vmem:[#allocation3 + $0x48] sm:$0x1]
    %v676 = vld [vmem:[#allocation3 + $0x50] sm:$0xfe]
    %v677 = vld [vmem:[#allocation3 + $0x58] sm:$0xfe]
    %v678 = vld [vmem:[#allocation3 + $0x90] sm:$0x1]
    %v679 = vld [vmem:[#allocation3 + $0x98] sm:$0x1]
    %vm700 = vcmask 1046528
    %v701 = vrot.slane %v672, 1
    %v702 = vrot.slane %v594, 1
    %v703 = vsel %vm700, %v701, %v702
    %v704 = vrot.slane %v673, 1
    %v705 = vrot.slane %v595, 1
    %v706 = vsel %vm700, %v704, %v705
    %v707 = vrot.slane %v596, 1
    %v708 = vsel %vm700, %v702, %v707
    %v709 = vrot.slane %v597, 1
    %v710 = vsel %vm700, %v705, %v709
    %v711 = vrot.slane %v598, 1
    %v712 = vsel %vm700, %v707, %v711
    %v713 = vrot.slane %v599, 1
    %v714 = vsel %vm700, %v709, %v713
    %v715 = vrot.slane %v674, 1
    %v716 = vsel %vm700, %v711, %v715
    %v717 = vrot.slane %v675, 1
    %v718 = vsel %vm700, %v713, %v717
    %v719 = vrot.slane %v676, 1
    %v720 = vrot.slane %v602, 1
    %v721 = vsel %vm700, %v719, %v720
    %v722 = vrot.slane %v677, 1
    %v723 = vrot.slane %v603, 1
    %v724 = vsel %vm700, %v722, %v723
    %v725 = vrot.slane %v604, 1
    %v726 = vsel %vm700, %v720, %v725
    %v727 = vrot.slane %v605, 1
    %v728 = vsel %vm700, %v723, %v727
    %v729 = vrot.slane %v606, 1
    %v730 = vsel %vm700, %v725, %v729
    %v731 = vrot.slane %v607, 1
    %v732 = vsel %vm700, %v727, %v731
    %v733 = vrot.slane %v678, 1
    %v734 = vsel %vm700, %v729, %v733
    %v735 = vrot.slane %v679, 1
    %v736 = vsel %vm700, %v731, %v735
    %s753 = scalar_lea.vmem %s3, 512
    %v754 = vld [vmem:[%s753] sm:$0xff]
    %v755 = vld [vmem:[%s753 + $0x8] sm:$0xff]
    %v756 = vld [vmem:[%s753 + $0x10] sm:$0xff]
    %v757 = vld [vmem:[%s753 + $0x18] sm:$0xff]
    %v758 = vld [vmem:[%s753 + $0x20] sm:$0xff]
    %v759 = vld [vmem:[%s753 + $0x28] sm:$0xff]
    %v760 = vld [vmem:[%s753 + $0x30] sm:$0xff]
    %v761 = vld [vmem:[%s753 + $0x38] sm:$0xff]
    %v762 = vld [vmem:[%s753 + $0x40] sm:$0xff]
    %v763 = vld [vmem:[%s753 + $0x48] sm:$0xff]
    %v764 = vld [vmem:[%s753 + $0x50] sm:$0xff]
    %v765 = vld [vmem:[%s753 + $0x58] sm:$0xff]
    %v766 = vld [vmem:[%s753 + $0x60] sm:$0xff]
    %v767 = vld [vmem:[%s753 + $0x68] sm:$0xff]
    %v768 = vld [vmem:[%s753 + $0x70] sm:$0xff]
    %v769 = vld [vmem:[%s753 + $0x78] sm:$0xff]
    %v770 = vld [vmem:[%s753 + $0x80] sm:$0xff]
    %v771 = vld [vmem:[%s753 + $0x88] sm:$0xff]
    %v772 = vld [vmem:[%s753 + $0x90] sm:$0xff]
    %v773 = vld [vmem:[%s753 + $0x98] sm:$0xff]
    %v774 = vld [vmem:[%s753 + $0xa0] sm:$0xff]
    %v775 = vld [vmem:[%s753 + $0xa8] sm:$0xff]
    %v776 = vld [vmem:[%s753 + $0xb0] sm:$0xff]
    %v777 = vld [vmem:[%s753 + $0xb8] sm:$0xff]
    %v778 = vld [vmem:[%s753 + $0xc0] sm:$0xff]
    %v779 = vld [vmem:[%s753 + $0xc8] sm:$0xff]
    %v780 = vld [vmem:[%s753 + $0xd0] sm:$0xff]
    %v781 = vld [vmem:[%s753 + $0xd8] sm:$0xff]
    %v782 = vld [vmem:[%s753 + $0xe0] sm:$0xff]
    %v783 = vld [vmem:[%s753 + $0xe8] sm:$0xff]
    %v784 = vld [vmem:[%s753 + $0xf0] sm:$0xff]
    %v785 = vld [vmem:[%s753 + $0xf8] sm:$0xff]
    %v786 = vld [vmem:[%s753 + $0x100] sm:$0xff]
    %v787 = vld [vmem:[%s753 + $0x108] sm:$0xff]
    %v788 = vld [vmem:[%s753 + $0x110] sm:$0xff]
    %v789 = vld [vmem:[%s753 + $0x118] sm:$0xff]
    %v790 = vld [vmem:[%s753 + $0x120] sm:$0xff]
    %v791 = vld [vmem:[%s753 + $0x128] sm:$0xff]
    %v792 = vld [vmem:[%s753 + $0x130] sm:$0xff]
    %v793 = vld [vmem:[%s753 + $0x138] sm:$0xff]
    %v794 = vld [vmem:[%s753 + $0x140] sm:$0xff]
    %v795 = vld [vmem:[%s753 + $0x148] sm:$0xff]
    %v796 = vld [vmem:[%s753 + $0x150] sm:$0xff]
    %v797 = vld [vmem:[%s753 + $0x158] sm:$0xff]
    %v798 = vld [vmem:[%s753 + $0x160] sm:$0xff]
    %v799 = vld [vmem:[%s753 + $0x168] sm:$0xff]
    %v800 = vld [vmem:[%s753 + $0x170] sm:$0xff]
    %v801 = vld [vmem:[%s753 + $0x178] sm:$0xff]
    %v802 = vld [vmem:[%s753 + $0x180] sm:$0xff]
    %v803 = vld [vmem:[%s753 + $0x188] sm:$0xff]
    %v804 = vld [vmem:[%s753 + $0x190] sm:$0xff]
    %v805 = vld [vmem:[%s753 + $0x198] sm:$0xff]
    %v806 = vld [vmem:[%s753 + $0x1a0] sm:$0xff]
    %v807 = vld [vmem:[%s753 + $0x1a8] sm:$0xff]
    %v808 = vld [vmem:[%s753 + $0x1b0] sm:$0xff]
    %v809 = vld [vmem:[%s753 + $0x1b8] sm:$0xff]
    %v810 = vld [vmem:[%s753 + $0x1c0] sm:$0xff]
    %v811 = vld [vmem:[%s753 + $0x1c8] sm:$0xff]
    %v812 = vld [vmem:[%s753 + $0x1d0] sm:$0xff]
    %v813 = vld [vmem:[%s753 + $0x1d8] sm:$0xff]
    %v814 = vld [vmem:[%s753 + $0x1e0] sm:$0xff]
    %v815 = vld [vmem:[%s753 + $0x1e8] sm:$0xff]
    %v816 = vld [vmem:[%s753 + $0x1f0] sm:$0xff]
    %v817 = vld [vmem:[%s753 + $0x1f8] sm:$0xff]
    %818 = vmatpush.msra.mxu0 %v784
    %819 = vmatpush.msra.mxu0 %v782
    %820 = vmatpush.msra.mxu0 %v780
    %821 = vmatpush.msra.mxu0 %v778
    %822 = vmatpush.msra.mxu0 %v776
    %823 = vmatpush.msra.mxu0 %v774
    %824 = vmatpush.msra.mxu0 %v772
    %825 = vmatpush.msra.mxu0 %v770
    %826 = vmatpush.msra.mxu0 %v768
    %827 = vmatpush.msra.mxu0 %v766
    %828 = vmatpush.msra.mxu0 %v764
    %829 = vmatpush.msra.mxu0 %v762
    %830 = vmatpush.msra.mxu0 %v760
    %831 = vmatpush.msra.mxu0 %v758
    %832 = vmatpush.msra.mxu0 %v756
    %833 = vmatpush.msra.mxu0 %v754
    %834 = vmatmul.f32.gmra.mxu0 %v703
    %v835 = vpop.f32.mrf.mxu0
    %v836 = vadd.f32 0.0, %v835
    %837 = vmatmul.f32.gmra.mxu0 %v708
    %v838 = vpop.f32.mrf.mxu0
    %v839 = vadd.f32 0.0, %v838
    %840 = vmatmul.f32.gmra.mxu0 %v712
    %v841 = vpop.f32.mrf.mxu0
    %v842 = vadd.f32 0.0, %v841
    %843 = vmatmul.f32.gmra.mxu0 %v716
    %v844 = vpop.f32.mrf.mxu0
    %v845 = vadd.f32 0.0, %v844
    %846 = vmatmul.f32.gmra.mxu0 %v721
    %v847 = vpop.f32.mrf.mxu0
    %v848 = vadd.f32 0.0, %v847
    %849 = vmatmul.f32.gmra.mxu0 %v726
    %v850 = vpop.f32.mrf.mxu0
    %v851 = vadd.f32 0.0, %v850
    %852 = vmatmul.f32.gmra.mxu0 %v730
    %v853 = vpop.f32.mrf.mxu0
    %v854 = vadd.f32 0.0, %v853
    %855 = vmatmul.f32.gmra.mxu0 %v734
    %v856 = vpop.f32.mrf.mxu0
    %v857 = vadd.f32 0.0, %v856
    %858 = vdwg.mxu0
    %859 = vmatpush.msra.mxu0 %v816
    %860 = vmatpush.msra.mxu0 %v814
    %861 = vmatpush.msra.mxu0 %v812
    %862 = vmatpush.msra.mxu0 %v810
    %863 = vmatpush.msra.mxu0 %v808
    %864 = vmatpush.msra.mxu0 %v806
    %865 = vmatpush.msra.mxu0 %v804
    %866 = vmatpush.msra.mxu0 %v802
    %867 = vmatpush.msra.mxu0 %v800
    %868 = vmatpush.msra.mxu0 %v798
    %869 = vmatpush.msra.mxu0 %v796
    %870 = vmatpush.msra.mxu0 %v794
    %871 = vmatpush.msra.mxu0 %v792
    %872 = vmatpush.msra.mxu0 %v790
    %873 = vmatpush.msra.mxu0 %v788
    %874 = vmatpush.msra.mxu0 %v786
    %875 = vmatmul.f32.gmra.mxu0 %v706
    %v876 = vpop.f32.mrf.mxu0
    %v877 = vadd.f32 %v836, %v876
    %878 = vmatmul.f32.gmra.mxu0 %v710
    %v879 = vpop.f32.mrf.mxu0
    %v880 = vadd.f32 %v839, %v879
    %881 = vmatmul.f32.gmra.mxu0 %v714
    %v882 = vpop.f32.mrf.mxu0
    %v883 = vadd.f32 %v842, %v882
    %884 = vmatmul.f32.gmra.mxu0 %v718
    %v885 = vpop.f32.mrf.mxu0
    %v886 = vadd.f32 %v845, %v885
    %887 = vmatmul.f32.gmra.mxu0 %v724
    %v888 = vpop.f32.mrf.mxu0
    %v889 = vadd.f32 %v848, %v888
    %890 = vmatmul.f32.gmra.mxu0 %v728
    %v891 = vpop.f32.mrf.mxu0
    %v892 = vadd.f32 %v851, %v891
    %893 = vmatmul.f32.gmra.mxu0 %v732
    %v894 = vpop.f32.mrf.mxu0
    %v895 = vadd.f32 %v854, %v894
    %896 = vmatmul.f32.gmra.mxu0 %v736
    %v897 = vpop.f32.mrf.mxu0
    %v898 = vadd.f32 %v857, %v897
    %899 = vdwg.mxu0
    %900 = vmatpush.msra.mxu0 %v785
    %901 = vmatpush.msra.mxu0 %v783
    %902 = vmatpush.msra.mxu0 %v781
    %903 = vmatpush.msra.mxu0 %v779
    %904 = vmatpush.msra.mxu0 %v777
    %905 = vmatpush.msra.mxu0 %v775
    %906 = vmatpush.msra.mxu0 %v773
    %907 = vmatpush.msra.mxu0 %v771
    %908 = vmatpush.msra.mxu0 %v769
    %909 = vmatpush.msra.mxu0 %v767
    %910 = vmatpush.msra.mxu0 %v765
    %911 = vmatpush.msra.mxu0 %v763
    %912 = vmatpush.msra.mxu0 %v761
    %913 = vmatpush.msra.mxu0 %v759
    %914 = vmatpush.msra.mxu0 %v757
    %915 = vmatpush.msra.mxu0 %v755
    %916 = vmatmul.f32.gmra.mxu0 %v703
    %v917 = vpop.f32.mrf.mxu0
    %v918 = vadd.f32 0.0, %v917
    %919 = vmatmul.f32.gmra.mxu0 %v708
    %v920 = vpop.f32.mrf.mxu0
    %v921 = vadd.f32 0.0, %v920
    %922 = vmatmul.f32.gmra.mxu0 %v712
    %v923 = vpop.f32.mrf.mxu0
    %v924 = vadd.f32 0.0, %v923
    %925 = vmatmul.f32.gmra.mxu0 %v716
    %v926 = vpop.f32.mrf.mxu0
    %v927 = vadd.f32 0.0, %v926
    %928 = vmatmul.f32.gmra.mxu0 %v721
    %v929 = vpop.f32.mrf.mxu0
    %v930 = vadd.f32 0.0, %v929
    %931 = vmatmul.f32.gmra.mxu0 %v726
    %v932 = vpop.f32.mrf.mxu0
    %v933 = vadd.f32 0.0, %v932
    %934 = vmatmul.f32.gmra.mxu0 %v730
    %v935 = vpop.f32.mrf.mxu0
    %v936 = vadd.f32 0.0, %v935
    %937 = vmatmul.f32.gmra.mxu0 %v734
    %v938 = vpop.f32.mrf.mxu0
    %v939 = vadd.f32 0.0, %v938
    %940 = vdwg.mxu0
    %941 = vmatpush.msra.mxu0 %v817
    %942 = vmatpush.msra.mxu0 %v815
    %943 = vmatpush.msra.mxu0 %v813
    %944 = vmatpush.msra.mxu0 %v811
    %945 = vmatpush.msra.mxu0 %v809
    %946 = vmatpush.msra.mxu0 %v807
    %947 = vmatpush.msra.mxu0 %v805
    %948 = vmatpush.msra.mxu0 %v803
    %949 = vmatpush.msra.mxu0 %v801
    %950 = vmatpush.msra.mxu0 %v799
    %951 = vmatpush.msra.mxu0 %v797
    %952 = vmatpush.msra.mxu0 %v795
    %953 = vmatpush.msra.mxu0 %v793
    %954 = vmatpush.msra.mxu0 %v791
    %955 = vmatpush.msra.mxu0 %v789
    %956 = vmatpush.msra.mxu0 %v787
    %957 = vmatmul.f32.gmra.mxu0 %v706
    %v958 = vpop.f32.mrf.mxu0
    %v959 = vadd.f32 %v918, %v958
    %960 = vmatmul.f32.gmra.mxu0 %v710
    %v961 = vpop.f32.mrf.mxu0
    %v962 = vadd.f32 %v921, %v961
    %963 = vmatmul.f32.gmra.mxu0 %v714
    %v964 = vpop.f32.mrf.mxu0
    %v965 = vadd.f32 %v924, %v964
    %966 = vmatmul.f32.gmra.mxu0 %v718
    %v967 = vpop.f32.mrf.mxu0
    %v968 = vadd.f32 %v927, %v967
    %969 = vmatmul.f32.gmra.mxu0 %v724
    %v970 = vpop.f32.mrf.mxu0
    %v971 = vadd.f32 %v930, %v970
    %972 = vmatmul.f32.gmra.mxu0 %v728
    %v973 = vpop.f32.mrf.mxu0
    %v974 = vadd.f32 %v933, %v973
    %975 = vmatmul.f32.gmra.mxu0 %v732
    %v976 = vpop.f32.mrf.mxu0
    %v977 = vadd.f32 %v936, %v976
    %978 = vmatmul.f32.gmra.mxu0 %v736
    %v979 = vpop.f32.mrf.mxu0
    %v980 = vadd.f32 %v939, %v979
    %981 = vdwg.mxu0
    %982 = vmatpush.msra.mxu0 %v638
    %983 = vmatpush.msra.mxu0 %v636
    %984 = vmatpush.msra.mxu0 %v634
    %985 = vmatpush.msra.mxu0 %v632
    %986 = vmatpush.msra.mxu0 %v630
    %987 = vmatpush.msra.mxu0 %v628
    %988 = vmatpush.msra.mxu0 %v626
    %989 = vmatpush.msra.mxu0 %v624
    %990 = vmatpush.msra.mxu0 %v622
    %991 = vmatpush.msra.mxu0 %v620
    %992 = vmatpush.msra.mxu0 %v618
    %993 = vmatpush.msra.mxu0 %v616
    %994 = vmatpush.msra.mxu0 %v614
    %995 = vmatpush.msra.mxu0 %v612
    %996 = vmatpush.msra.mxu0 %v610
    %997 = vmatpush.msra.mxu0 %v608
    %998 = vmatmul.f32.gmra.mxu0 %v592
    %v999 = vpop.f32.mrf.mxu0
    %v1000 = vadd.f32 %v877, %v999
    %1001 = vmatmul.f32.gmra.mxu0 %v594
    %v1002 = vpop.f32.mrf.mxu0
    %v1003 = vadd.f32 %v880, %v1002
    %1004 = vmatmul.f32.gmra.mxu0 %v596
    %v1005 = vpop.f32.mrf.mxu0
    %v1006 = vadd.f32 %v883, %v1005
    %1007 = vmatmul.f32.gmra.mxu0 %v598
    %v1008 = vpop.f32.mrf.mxu0
    %v1009 = vadd.f32 %v886, %v1008
    %1010 = vmatmul.f32.gmra.mxu0 %v600
    %v1011 = vpop.f32.mrf.mxu0
    %v1012 = vadd.f32 %v889, %v1011
    %1013 = vmatmul.f32.gmra.mxu0 %v602
    %v1014 = vpop.f32.mrf.mxu0
    %v1015 = vadd.f32 %v892, %v1014
    %1016 = vmatmul.f32.gmra.mxu0 %v604
    %v1017 = vpop.f32.mrf.mxu0
    %v1018 = vadd.f32 %v895, %v1017
    %1019 = vmatmul.f32.gmra.mxu0 %v606
    %v1020 = vpop.f32.mrf.mxu0
    %v1021 = vadd.f32 %v898, %v1020
    %1022 = vdwg.mxu0
    %1023 = vmatpush.msra.mxu0 %v670
    %1024 = vmatpush.msra.mxu0 %v668
    %1025 = vmatpush.msra.mxu0 %v666
    %1026 = vmatpush.msra.mxu0 %v664
    %1027 = vmatpush.msra.mxu0 %v662
    %1028 = vmatpush.msra.mxu0 %v660
    %1029 = vmatpush.msra.mxu0 %v658
    %1030 = vmatpush.msra.mxu0 %v656
    %1031 = vmatpush.msra.mxu0 %v654
    %1032 = vmatpush.msra.mxu0 %v652
    %1033 = vmatpush.msra.mxu0 %v650
    %1034 = vmatpush.msra.mxu0 %v648
    %1035 = vmatpush.msra.mxu0 %v646
    %1036 = vmatpush.msra.mxu0 %v644
    %1037 = vmatpush.msra.mxu0 %v642
    %1038 = vmatpush.msra.mxu0 %v640
    %1039 = vmatmul.f32.gmra.mxu0 %v593
    %v1040 = vpop.f32.mrf.mxu0
    %v1041 = vadd.f32 %v1000, %v1040
    %1042 = vmatmul.f32.gmra.mxu0 %v595
    %v1043 = vpop.f32.mrf.mxu0
    %v1044 = vadd.f32 %v1003, %v1043
    %1045 = vmatmul.f32.gmra.mxu0 %v597
    %v1046 = vpop.f32.mrf.mxu0
    %v1047 = vadd.f32 %v1006, %v1046
    %1048 = vmatmul.f32.gmra.mxu0 %v599
    %v1049 = vpop.f32.mrf.mxu0
    %v1050 = vadd.f32 %v1009, %v1049
    %1051 = vmatmul.f32.gmra.mxu0 %v601
    %v1052 = vpop.f32.mrf.mxu0
    %v1053 = vadd.f32 %v1012, %v1052
    %1054 = vmatmul.f32.gmra.mxu0 %v603
    %v1055 = vpop.f32.mrf.mxu0
    %v1056 = vadd.f32 %v1015, %v1055
    %1057 = vmatmul.f32.gmra.mxu0 %v605
    %v1058 = vpop.f32.mrf.mxu0
    %v1059 = vadd.f32 %v1018, %v1058
    %1060 = vmatmul.f32.gmra.mxu0 %v607
    %v1061 = vpop.f32.mrf.mxu0
    %v1062 = vadd.f32 %v1021, %v1061
    %1063 = vdwg.mxu0
    %1064 = vmatpush.msra.mxu0 %v639
    %1065 = vmatpush.msra.mxu0 %v637
    %1066 = vmatpush.msra.mxu0 %v635
    %1067 = vmatpush.msra.mxu0 %v633
    %1068 = vmatpush.msra.mxu0 %v631
    %1069 = vmatpush.msra.mxu0 %v629
    %1070 = vmatpush.msra.mxu0 %v627
    %1071 = vmatpush.msra.mxu0 %v625
    %1072 = vmatpush.msra.mxu0 %v623
    %1073 = vmatpush.msra.mxu0 %v621
    %1074 = vmatpush.msra.mxu0 %v619
    %1075 = vmatpush.msra.mxu0 %v617
    %1076 = vmatpush.msra.mxu0 %v615
    %1077 = vmatpush.msra.mxu0 %v613
    %1078 = vmatpush.msra.mxu0 %v611
    %1079 = vmatpush.msra.mxu0 %v609
    %1080 = vmatmul.f32.gmra.mxu0 %v592
    %v1081 = vpop.f32.mrf.mxu0
    %v1082 = vadd.f32 %v959, %v1081
    %1083 = vmatmul.f32.gmra.mxu0 %v594
    %v1084 = vpop.f32.mrf.mxu0
    %v1085 = vadd.f32 %v962, %v1084
    %1086 = vmatmul.f32.gmra.mxu0 %v596
    %v1087 = vpop.f32.mrf.mxu0
    %v1088 = vadd.f32 %v965, %v1087
    %1089 = vmatmul.f32.gmra.mxu0 %v598
    %v1090 = vpop.f32.mrf.mxu0
    %v1091 = vadd.f32 %v968, %v1090
    %1092 = vmatmul.f32.gmra.mxu0 %v600
    %v1093 = vpop.f32.mrf.mxu0
    %v1094 = vadd.f32 %v971, %v1093
    %1095 = vmatmul.f32.gmra.mxu0 %v602
    %v1096 = vpop.f32.mrf.mxu0
    %v1097 = vadd.f32 %v974, %v1096
    %1098 = vmatmul.f32.gmra.mxu0 %v604
    %v1099 = vpop.f32.mrf.mxu0
    %v1100 = vadd.f32 %v977, %v1099
    %1101 = vmatmul.f32.gmra.mxu0 %v606
    %v1102 = vpop.f32.mrf.mxu0
    %v1103 = vadd.f32 %v980, %v1102
    %1104 = vdwg.mxu0
    %1105 = vmatpush.msra.mxu0 %v671
    %1106 = vmatpush.msra.mxu0 %v669
    %1107 = vmatpush.msra.mxu0 %v667
    %1108 = vmatpush.msra.mxu0 %v665
    %1109 = vmatpush.msra.mxu0 %v663
    %1110 = vmatpush.msra.mxu0 %v661
    %1111 = vmatpush.msra.mxu0 %v659
    %1112 = vmatpush.msra.mxu0 %v657
    %1113 = vmatpush.msra.mxu0 %v655
    %1114 = vmatpush.msra.mxu0 %v653
    %1115 = vmatpush.msra.mxu0 %v651
    %1116 = vmatpush.msra.mxu0 %v649
    %1117 = vmatpush.msra.mxu0 %v647
    %1118 = vmatpush.msra.mxu0 %v645
    %1119 = vmatpush.msra.mxu0 %v643
    %1120 = vmatpush.msra.mxu0 %v641
    %1121 = vmatmul.f32.gmra.mxu0 %v593
    %v1122 = vpop.f32.mrf.mxu0
    %v1123 = vadd.f32 %v1082, %v1122
    %1124 = vmatmul.f32.gmra.mxu0 %v595
    %v1125 = vpop.f32.mrf.mxu0
    %v1126 = vadd.f32 %v1085, %v1125
    %1127 = vmatmul.f32.gmra.mxu0 %v597
    %v1128 = vpop.f32.mrf.mxu0
    %v1129 = vadd.f32 %v1088, %v1128
    %1130 = vmatmul.f32.gmra.mxu0 %v599
    %v1131 = vpop.f32.mrf.mxu0
    %v1132 = vadd.f32 %v1091, %v1131
    %1133 = vmatmul.f32.gmra.mxu0 %v601
    %v1134 = vpop.f32.mrf.mxu0
    %v1135 = vadd.f32 %v1094, %v1134
    %1136 = vmatmul.f32.gmra.mxu0 %v603
    %v1137 = vpop.f32.mrf.mxu0
    %v1138 = vadd.f32 %v1097, %v1137
    %1139 = vmatmul.f32.gmra.mxu0 %v605
    %v1140 = vpop.f32.mrf.mxu0
    %v1141 = vadd.f32 %v1100, %v1140
    %1142 = vmatmul.f32.gmra.mxu0 %v607
    %v1143 = vpop.f32.mrf.mxu0
    %v1144 = vadd.f32 %v1103, %v1143
    %1145 = vdwg.mxu0
    %v1146 = vld [vmem:[#allocation3] sm:$0xfc]
    %v1147 = vld [vmem:[#allocation3 + $0x8] sm:$0xfc]
    %v1148 = vld [vmem:[#allocation3 + $0x40] sm:$0x3]
    %v1149 = vld [vmem:[#allocation3 + $0x48] sm:$0x3]
    %v1150 = vld [vmem:[#allocation3 + $0x50] sm:$0xfc]
    %v1151 = vld [vmem:[#allocation3 + $0x58] sm:$0xfc]
    %v1152 = vld [vmem:[#allocation3 + $0x90] sm:$0x3]
    %v1153 = vld [vmem:[#allocation3 + $0x98] sm:$0x3]
    %vm1162 = vcmask 1045504
    %v1163 = vrot.slane %v1146, 2
    %v1164 = vrot.slane %v594, 2
    %v1165 = vsel %vm1162, %v1163, %v1164
    %v1166 = vrot.slane %v1147, 2
    %v1167 = vrot.slane %v595, 2
    %v1168 = vsel %vm1162, %v1166, %v1167
    %v1169 = vrot.slane %v596, 2
    %v1170 = vsel %vm1162, %v1164, %v1169
    %v1171 = vrot.slane %v597, 2
    %v1172 = vsel %vm1162, %v1167, %v1171
    %v1173 = vrot.slane %v598, 2
    %v1174 = vsel %vm1162, %v1169, %v1173
    %v1175 = vrot.slane %v599, 2
    %v1176 = vsel %vm1162, %v1171, %v1175
    %v1177 = vrot.slane %v1148, 2
    %v1178 = vsel %vm1162, %v1173, %v1177
    %v1179 = vrot.slane %v1149, 2
    %v1180 = vsel %vm1162, %v1175, %v1179
    %v1181 = vrot.slane %v1150, 2
    %v1182 = vrot.slane %v602, 2
    %v1183 = vsel %vm1162, %v1181, %v1182
    %v1184 = vrot.slane %v1151, 2
    %v1185 = vrot.slane %v603, 2
    %v1186 = vsel %vm1162, %v1184, %v1185
    %v1187 = vrot.slane %v604, 2
    %v1188 = vsel %vm1162, %v1182, %v1187
    %v1189 = vrot.slane %v605, 2
    %v1190 = vsel %vm1162, %v1185, %v1189
    %v1191 = vrot.slane %v606, 2
    %v1192 = vsel %vm1162, %v1187, %v1191
    %v1193 = vrot.slane %v607, 2
    %v1194 = vsel %vm1162, %v1189, %v1193
    %v1195 = vrot.slane %v1152, 2
    %v1196 = vsel %vm1162, %v1191, %v1195
    %v1197 = vrot.slane %v1153, 2
    %v1198 = vsel %vm1162, %v1193, %v1197
    %s1215 = scalar_lea.vmem %s3, 1024
    %v1216 = vld [vmem:[%s1215] sm:$0xff]
    %v1217 = vld [vmem:[%s1215 + $0x8] sm:$0xff]
    %v1218 = vld [vmem:[%s1215 + $0x10] sm:$0xff]
    %v1219 = vld [vmem:[%s1215 + $0x18] sm:$0xff]
    %v1220 = vld [vmem:[%s1215 + $0x20] sm:$0xff]
    %v1221 = vld [vmem:[%s1215 + $0x28] sm:$0xff]
    %v1222 = vld [vmem:[%s1215 + $0x30] sm:$0xff]
    %v1223 = vld [vmem:[%s1215 + $0x38] sm:$0xff]
    %v1224 = vld [vmem:[%s1215 + $0x40] sm:$0xff]
    %v1225 = vld [vmem:[%s1215 + $0x48] sm:$0xff]
    %v1226 = vld [vmem:[%s1215 + $0x50] sm:$0xff]
    %v1227 = vld [vmem:[%s1215 + $0x58] sm:$0xff]
    %v1228 = vld [vmem:[%s1215 + $0x60] sm:$0xff]
    %v1229 = vld [vmem:[%s1215 + $0x68] sm:$0xff]
    %v1230 = vld [vmem:[%s1215 + $0x70] sm:$0xff]
    %v1231 = vld [vmem:[%s1215 + $0x78] sm:$0xff]
    %v1232 = vld [vmem:[%s1215 + $0x80] sm:$0xff]
    %v1233 = vld [vmem:[%s1215 + $0x88] sm:$0xff]
    %v1234 = vld [vmem:[%s1215 + $0x90] sm:$0xff]
    %v1235 = vld [vmem:[%s1215 + $0x98] sm:$0xff]
    %v1236 = vld [vmem:[%s1215 + $0xa0] sm:$0xff]
    %v1237 = vld [vmem:[%s1215 + $0xa8] sm:$0xff]
    %v1238 = vld [vmem:[%s1215 + $0xb0] sm:$0xff]
    %v1239 = vld [vmem:[%s1215 + $0xb8] sm:$0xff]
    %v1240 = vld [vmem:[%s1215 + $0xc0] sm:$0xff]
    %v1241 = vld [vmem:[%s1215 + $0xc8] sm:$0xff]
    %v1242 = vld [vmem:[%s1215 + $0xd0] sm:$0xff]
    %v1243 = vld [vmem:[%s1215 + $0xd8] sm:$0xff]
    %v1244 = vld [vmem:[%s1215 + $0xe0] sm:$0xff]
    %v1245 = vld [vmem:[%s1215 + $0xe8] sm:$0xff]
    %v1246 = vld [vmem:[%s1215 + $0xf0] sm:$0xff]
    %v1247 = vld [vmem:[%s1215 + $0xf8] sm:$0xff]
    %v1248 = vld [vmem:[%s1215 + $0x100] sm:$0xff]
    %v1249 = vld [vmem:[%s1215 + $0x108] sm:$0xff]
    %v1250 = vld [vmem:[%s1215 + $0x110] sm:$0xff]
    %v1251 = vld [vmem:[%s1215 + $0x118] sm:$0xff]
    %v1252 = vld [vmem:[%s1215 + $0x120] sm:$0xff]
    %v1253 = vld [vmem:[%s1215 + $0x128] sm:$0xff]
    %v1254 = vld [vmem:[%s1215 + $0x130] sm:$0xff]
    %v1255 = vld [vmem:[%s1215 + $0x138] sm:$0xff]
    %v1256 = vld [vmem:[%s1215 + $0x140] sm:$0xff]
    %v1257 = vld [vmem:[%s1215 + $0x148] sm:$0xff]
    %v1258 = vld [vmem:[%s1215 + $0x150] sm:$0xff]
    %v1259 = vld [vmem:[%s1215 + $0x158] sm:$0xff]
    %v1260 = vld [vmem:[%s1215 + $0x160] sm:$0xff]
    %v1261 = vld [vmem:[%s1215 + $0x168] sm:$0xff]
    %v1262 = vld [vmem:[%s1215 + $0x170] sm:$0xff]
    %v1263 = vld [vmem:[%s1215 + $0x178] sm:$0xff]
    %v1264 = vld [vmem:[%s1215 + $0x180] sm:$0xff]
    %v1265 = vld [vmem:[%s1215 + $0x188] sm:$0xff]
    %v1266 = vld [vmem:[%s1215 + $0x190] sm:$0xff]
    %v1267 = vld [vmem:[%s1215 + $0x198] sm:$0xff]
    %v1268 = vld [vmem:[%s1215 + $0x1a0] sm:$0xff]
    %v1269 = vld [vmem:[%s1215 + $0x1a8] sm:$0xff]
    %v1270 = vld [vmem:[%s1215 + $0x1b0] sm:$0xff]
    %v1271 = vld [vmem:[%s1215 + $0x1b8] sm:$0xff]
    %v1272 = vld [vmem:[%s1215 + $0x1c0] sm:$0xff]
    %v1273 = vld [vmem:[%s1215 + $0x1c8] sm:$0xff]
    %v1274 = vld [vmem:[%s1215 + $0x1d0] sm:$0xff]
    %v1275 = vld [vmem:[%s1215 + $0x1d8] sm:$0xff]
    %v1276 = vld [vmem:[%s1215 + $0x1e0] sm:$0xff]
    %v1277 = vld [vmem:[%s1215 + $0x1e8] sm:$0xff]
    %v1278 = vld [vmem:[%s1215 + $0x1f0] sm:$0xff]
    %v1279 = vld [vmem:[%s1215 + $0x1f8] sm:$0xff]
    %1280 = vmatpush.msra.mxu0 %v1246
    %1281 = vmatpush.msra.mxu0 %v1244
    %1282 = vmatpush.msra.mxu0 %v1242
    %1283 = vmatpush.msra.mxu0 %v1240
    %1284 = vmatpush.msra.mxu0 %v1238
    %1285 = vmatpush.msra.mxu0 %v1236
    %1286 = vmatpush.msra.mxu0 %v1234
    %1287 = vmatpush.msra.mxu0 %v1232
    %1288 = vmatpush.msra.mxu0 %v1230
    %1289 = vmatpush.msra.mxu0 %v1228
    %1290 = vmatpush.msra.mxu0 %v1226
    %1291 = vmatpush.msra.mxu0 %v1224
    %1292 = vmatpush.msra.mxu0 %v1222
    %1293 = vmatpush.msra.mxu0 %v1220
    %1294 = vmatpush.msra.mxu0 %v1218
    %1295 = vmatpush.msra.mxu0 %v1216
    %1296 = vmatmul.f32.gmra.mxu0 %v1165
    %v1297 = vpop.f32.mrf.mxu0
    %v1298 = vadd.f32 0.0, %v1297
    %1299 = vmatmul.f32.gmra.mxu0 %v1170
    %v1300 = vpop.f32.mrf.mxu0
    %v1301 = vadd.f32 0.0, %v1300
    %1302 = vmatmul.f32.gmra.mxu0 %v1174
    %v1303 = vpop.f32.mrf.mxu0
    %v1304 = vadd.f32 0.0, %v1303
    %1305 = vmatmul.f32.gmra.mxu0 %v1178
    %v1306 = vpop.f32.mrf.mxu0
    %v1307 = vadd.f32 0.0, %v1306
    %1308 = vmatmul.f32.gmra.mxu0 %v1183
    %v1309 = vpop.f32.mrf.mxu0
    %v1310 = vadd.f32 0.0, %v1309
    %1311 = vmatmul.f32.gmra.mxu0 %v1188
    %v1312 = vpop.f32.mrf.mxu0
    %v1313 = vadd.f32 0.0, %v1312
    %1314 = vmatmul.f32.gmra.mxu0 %v1192
    %v1315 = vpop.f32.mrf.mxu0
    %v1316 = vadd.f32 0.0, %v1315
    %1317 = vmatmul.f32.gmra.mxu0 %v1196
    %v1318 = vpop.f32.mrf.mxu0
    %v1319 = vadd.f32 0.0, %v1318
    %1320 = vdwg.mxu0
    %1321 = vmatpush.msra.mxu0 %v1278
    %1322 = vmatpush.msra.mxu0 %v1276
    %1323 = vmatpush.msra.mxu0 %v1274
    %1324 = vmatpush.msra.mxu0 %v1272
    %1325 = vmatpush.msra.mxu0 %v1270
    %1326 = vmatpush.msra.mxu0 %v1268
    %1327 = vmatpush.msra.mxu0 %v1266
    %1328 = vmatpush.msra.mxu0 %v1264
    %1329 = vmatpush.msra.mxu0 %v1262
    %1330 = vmatpush.msra.mxu0 %v1260
    %1331 = vmatpush.msra.mxu0 %v1258
    %1332 = vmatpush.msra.mxu0 %v1256
    %1333 = vmatpush.msra.mxu0 %v1254
    %1334 = vmatpush.msra.mxu0 %v1252
    %1335 = vmatpush.msra.mxu0 %v1250
    %1336 = vmatpush.msra.mxu0 %v1248
    %1337 = vmatmul.f32.gmra.mxu0 %v1168
    %v1338 = vpop.f32.mrf.mxu0
    %v1339 = vadd.f32 %v1298, %v1338
    %1340 = vmatmul.f32.gmra.mxu0 %v1172
    %v1341 = vpop.f32.mrf.mxu0
    %v1342 = vadd.f32 %v1301, %v1341
    %1343 = vmatmul.f32.gmra.mxu0 %v1176
    %v1344 = vpop.f32.mrf.mxu0
    %v1345 = vadd.f32 %v1304, %v1344
    %1346 = vmatmul.f32.gmra.mxu0 %v1180
    %v1347 = vpop.f32.mrf.mxu0
    %v1348 = vadd.f32 %v1307, %v1347
    %1349 = vmatmul.f32.gmra.mxu0 %v1186
    %v1350 = vpop.f32.mrf.mxu0
    %v1351 = vadd.f32 %v1310, %v1350
    %1352 = vmatmul.f32.gmra.mxu0 %v1190
    %v1353 = vpop.f32.mrf.mxu0
    %v1354 = vadd.f32 %v1313, %v1353
    %1355 = vmatmul.f32.gmra.mxu0 %v1194
    %v1356 = vpop.f32.mrf.mxu0
    %v1357 = vadd.f32 %v1316, %v1356
    %1358 = vmatmul.f32.gmra.mxu0 %v1198
    %v1359 = vpop.f32.mrf.mxu0
    %v1360 = vadd.f32 %v1319, %v1359
    %1361 = vdwg.mxu0
    %1362 = vmatpush.msra.mxu0 %v1247
    %1363 = vmatpush.msra.mxu0 %v1245
    %1364 = vmatpush.msra.mxu0 %v1243
    %1365 = vmatpush.msra.mxu0 %v1241
    %1366 = vmatpush.msra.mxu0 %v1239
    %1367 = vmatpush.msra.mxu0 %v1237
    %1368 = vmatpush.msra.mxu0 %v1235
    %1369 = vmatpush.msra.mxu0 %v1233
    %1370 = vmatpush.msra.mxu0 %v1231
    %1371 = vmatpush.msra.mxu0 %v1229
    %1372 = vmatpush.msra.mxu0 %v1227
    %1373 = vmatpush.msra.mxu0 %v1225
    %1374 = vmatpush.msra.mxu0 %v1223
    %1375 = vmatpush.msra.mxu0 %v1221
    %1376 = vmatpush.msra.mxu0 %v1219
    %1377 = vmatpush.msra.mxu0 %v1217
    %1378 = vmatmul.f32.gmra.mxu0 %v1165
    %v1379 = vpop.f32.mrf.mxu0
    %v1380 = vadd.f32 0.0, %v1379
    %1381 = vmatmul.f32.gmra.mxu0 %v1170
    %v1382 = vpop.f32.mrf.mxu0
    %v1383 = vadd.f32 0.0, %v1382
    %1384 = vmatmul.f32.gmra.mxu0 %v1174
    %v1385 = vpop.f32.mrf.mxu0
    %v1386 = vadd.f32 0.0, %v1385
    %1387 = vmatmul.f32.gmra.mxu0 %v1178
    %v1388 = vpop.f32.mrf.mxu0
    %v1389 = vadd.f32 0.0, %v1388
    %1390 = vmatmul.f32.gmra.mxu0 %v1183
    %v1391 = vpop.f32.mrf.mxu0
    %v1392 = vadd.f32 0.0, %v1391
    %1393 = vmatmul.f32.gmra.mxu0 %v1188
    %v1394 = vpop.f32.mrf.mxu0
    %v1395 = vadd.f32 0.0, %v1394
    %1396 = vmatmul.f32.gmra.mxu0 %v1192
    %v1397 = vpop.f32.mrf.mxu0
    %v1398 = vadd.f32 0.0, %v1397
    %1399 = vmatmul.f32.gmra.mxu0 %v1196
    %v1400 = vpop.f32.mrf.mxu0
    %v1401 = vadd.f32 0.0, %v1400
    %1402 = vdwg.mxu0
    %1403 = vmatpush.msra.mxu0 %v1279
    %1404 = vmatpush.msra.mxu0 %v1277
    %1405 = vmatpush.msra.mxu0 %v1275
    %1406 = vmatpush.msra.mxu0 %v1273
    %1407 = vmatpush.msra.mxu0 %v1271
    %1408 = vmatpush.msra.mxu0 %v1269
    %1409 = vmatpush.msra.mxu0 %v1267
    %1410 = vmatpush.msra.mxu0 %v1265
    %1411 = vmatpush.msra.mxu0 %v1263
    %1412 = vmatpush.msra.mxu0 %v1261
    %1413 = vmatpush.msra.mxu0 %v1259
    %1414 = vmatpush.msra.mxu0 %v1257
    %1415 = vmatpush.msra.mxu0 %v1255
    %1416 = vmatpush.msra.mxu0 %v1253
    %1417 = vmatpush.msra.mxu0 %v1251
    %1418 = vmatpush.msra.mxu0 %v1249
    %1419 = vmatmul.f32.gmra.mxu0 %v1168
    %v1420 = vpop.f32.mrf.mxu0
    %v1421 = vadd.f32 %v1380, %v1420
    %1422 = vmatmul.f32.gmra.mxu0 %v1172
    %v1423 = vpop.f32.mrf.mxu0
    %v1424 = vadd.f32 %v1383, %v1423
    %1425 = vmatmul.f32.gmra.mxu0 %v1176
    %v1426 = vpop.f32.mrf.mxu0
    %v1427 = vadd.f32 %v1386, %v1426
    %1428 = vmatmul.f32.gmra.mxu0 %v1180
    %v1429 = vpop.f32.mrf.mxu0
    %v1430 = vadd.f32 %v1389, %v1429
    %1431 = vmatmul.f32.gmra.mxu0 %v1186
    %v1432 = vpop.f32.mrf.mxu0
    %v1433 = vadd.f32 %v1392, %v1432
    %1434 = vmatmul.f32.gmra.mxu0 %v1190
    %v1435 = vpop.f32.mrf.mxu0
    %v1436 = vadd.f32 %v1395, %v1435
    %1437 = vmatmul.f32.gmra.mxu0 %v1194
    %v1438 = vpop.f32.mrf.mxu0
    %v1439 = vadd.f32 %v1398, %v1438
    %1440 = vmatmul.f32.gmra.mxu0 %v1198
    %v1441 = vpop.f32.mrf.mxu0
    %v1442 = vadd.f32 %v1401, %v1441
    %1443 = vdwg.mxu0
    %v1444 = vadd.f32 %v1041, %v1339
    %v1445 = vadd.f32 %v1123, %v1421
    %v1446 = vadd.f32 %v1044, %v1342
    %v1447 = vadd.f32 %v1126, %v1424
    %v1448 = vadd.f32 %v1047, %v1345
    %v1449 = vadd.f32 %v1129, %v1427
    %v1450 = vadd.f32 %v1050, %v1348
    %v1451 = vadd.f32 %v1132, %v1430
    %v1452 = vadd.f32 %v1053, %v1351
    %v1453 = vadd.f32 %v1135, %v1433
    %v1454 = vadd.f32 %v1056, %v1354
    %v1455 = vadd.f32 %v1138, %v1436
    %v1456 = vadd.f32 %v1059, %v1357
    %v1457 = vadd.f32 %v1141, %v1439
    %v1458 = vadd.f32 %v1062, %v1360
    %v1459 = vadd.f32 %v1144, %v1442
    %v1460 = vld [vmem:[%s4] sm:$0x3]
    %v1462 = vperm.slane %v1460, 0
    %v1463 = vperm.slane %v1460, 1
    %v1466 = vadd.f32 %v1444, %v1462
    %v1467 = vadd.f32 %v1445, %v1463
    %v1468 = vadd.f32 %v1446, %v1462
    %v1469 = vadd.f32 %v1447, %v1463
    %v1470 = vadd.f32 %v1448, %v1462
    %v1471 = vadd.f32 %v1449, %v1463
    %v1472 = vadd.f32 %v1450, %v1462
    %v1473 = vadd.f32 %v1451, %v1463
    %v1474 = vadd.f32 %v1452, %v1462
    %v1475 = vadd.f32 %v1453, %v1463
    %v1476 = vadd.f32 %v1454, %v1462
    %v1477 = vadd.f32 %v1455, %v1463
    %v1478 = vadd.f32 %v1456, %v1462
    %v1479 = vadd.f32 %v1457, %v1463
    %v1480 = vadd.f32 %v1458, %v1462
    %v1481 = vadd.f32 %v1459, %v1463
    %v1482 = vmax.f32 %v1466, 0.0
    %v1483 = vmax.f32 %v1467, 0.0
    %v1484 = vmax.f32 %v1468, 0.0
    %v1485 = vmax.f32 %v1469, 0.0
    %v1486 = vmax.f32 %v1470, 0.0
    %v1487 = vmax.f32 %v1471, 0.0
    %v1488 = vmax.f32 %v1472, 0.0
    %v1489 = vmax.f32 %v1473, 0.0
    %v1490 = vmax.f32 %v1474, 0.0
    %v1491 = vmax.f32 %v1475, 0.0
    %v1492 = vmax.f32 %v1476, 0.0
    %v1493 = vmax.f32 %v1477, 0.0
    %v1494 = vmax.f32 %v1478, 0.0
    %v1495 = vmax.f32 %v1479, 0.0
    %v1496 = vmax.f32 %v1480, 0.0
    %v1497 = vmax.f32 %v1481, 0.0
    %1498 = vst [vmem:[#allocation4] sm:$0xff] %v1482
    %1499 = vst [vmem:[#allocation4 + $0x8] sm:$0xff] %v1483
    %1500 = vst [vmem:[#allocation4 + $0x10] sm:$0xff] %v1484
    %1501 = vst [vmem:[#allocation4 + $0x18] sm:$0xff] %v1485
    %1502 = vst [vmem:[#allocation4 + $0x20] sm:$0xff] %v1486
    %1503 = vst [vmem:[#allocation4 + $0x28] sm:$0xff] %v1487
    %1504 = vst [vmem:[#allocation4 + $0x30] sm:$0xff] %v1488
    %1505 = vst [vmem:[#allocation4 + $0x38] sm:$0xff] %v1489
    %1506 = vst [vmem:[#allocation4 + $0x40] sm:$0xff] %v1490
    %1507 = vst [vmem:[#allocation4 + $0x48] sm:$0xff] %v1491
    %1508 = vst [vmem:[#allocation4 + $0x50] sm:$0xff] %v1492
    %1509 = vst [vmem:[#allocation4 + $0x58] sm:$0xff] %v1493
    %1510 = vst [vmem:[#allocation4 + $0x60] sm:$0xff] %v1494
    %1511 = vst [vmem:[#allocation4 + $0x68] sm:$0xff] %v1495
    %1512 = vst [vmem:[#allocation4 + $0x70] sm:$0xff] %v1496
    %1513 = vst [vmem:[#allocation4 + $0x78] sm:$0xff] %v1497
    %v1514 = vld [vmem:[#allocation4] ss:$8 sm:$0x3]
    %s1515 = scalar_lea.vmem [#allocation4], 64
    %v1516 = vld [vmem:[%s1515] ss:$8 sm:$0x3]
    %s1517 = scalar_lea.vmem [#allocation4], 1
    %v1518 = vld [vmem:[%s1517] ss:$8 sm:$0x3]
    %s1519 = scalar_lea.vmem [#allocation4], 65
    %v1520 = vld [vmem:[%s1519] ss:$8 sm:$0x3]
    %v1521 = vmax.f32 %v1514, %v1518
    %v1522 = vmax.f32 %v1516, %v1520
    %v1525 = vrot.slane %v1521, 1
    %v1526 = vrot.slane %v1522, 1
    %v1529 = vmax.f32 %v1521, %v1525
    %v1530 = vmax.f32 %v1522, %v1526
    %v1531 = vld [vmem:[%s5] sm:$0xff]
    %v1532 = vld [vmem:[%s5 + $0x8] sm:$0xff]
    %v1533 = vld [vmem:[%s5 + $0x10] sm:$0xff]
    %v1534 = vld [vmem:[%s5 + $0x18] sm:$0xff]
    %v1535 = vld [vmem:[%s5 + $0x20] sm:$0xff]
    %v1536 = vld [vmem:[%s5 + $0x28] sm:$0xff]
    %v1537 = vld [vmem:[%s5 + $0x30] sm:$0xff]
    %v1538 = vld [vmem:[%s5 + $0x38] sm:$0xff]
    %v1539 = vld [vmem:[%s5 + $0x40] sm:$0xff]
    %v1540 = vld [vmem:[%s5 + $0x48] sm:$0xff]
    %v1541 = vld [vmem:[%s5 + $0x50] sm:$0xff]
    %v1542 = vld [vmem:[%s5 + $0x58] sm:$0xff]
    %v1543 = vld [vmem:[%s5 + $0x60] sm:$0xff]
    %v1544 = vld [vmem:[%s5 + $0x68] sm:$0xff]
    %v1545 = vld [vmem:[%s5 + $0x70] sm:$0xff]
    %v1546 = vld [vmem:[%s5 + $0x78] sm:$0xff]
    %s1547 = scalar_lea.vmem [#allocation4], 2
    %v1548 = vld [vmem:[%s1547] ss:$8 sm:$0x3]
    %s1549 = scalar_lea.vmem [#allocation4], 66
    %v1550 = vld [vmem:[%s1549] ss:$8 sm:$0x3]
    %s1551 = scalar_lea.vmem [#allocation4], 3
    %v1552 = vld [vmem:[%s1551] ss:$8 sm:$0x3]
    %s1553 = scalar_lea.vmem [#allocation4], 67
    %v1554 = vld [vmem:[%s1553] ss:$8 sm:$0x3]
    %v1555 = vmax.f32 %v1548, %v1552
    %v1556 = vmax.f32 %v1550, %v1554
    %v1559 = vrot.slane %v1555, 1
    %v1560 = vrot.slane %v1556, 1
    %v1563 = vmax.f32 %v1555, %v1559
    %v1564 = vmax.f32 %v1556, %v1560
    %s1565 = scalar_lea.vmem %s5, 128
    %v1566 = vld [vmem:[%s1565] sm:$0xff]
    %v1567 = vld [vmem:[%s1565 + $0x8] sm:$0xff]
    %v1568 = vld [vmem:[%s1565 + $0x10] sm:$0xff]
    %v1569 = vld [vmem:[%s1565 + $0x18] sm:$0xff]
    %v1570 = vld [vmem:[%s1565 + $0x20] sm:$0xff]
    %v1571 = vld [vmem:[%s1565 + $0x28] sm:$0xff]
    %v1572 = vld [vmem:[%s1565 + $0x30] sm:$0xff]
    %v1573 = vld [vmem:[%s1565 + $0x38] sm:$0xff]
    %v1574 = vld [vmem:[%s1565 + $0x40] sm:$0xff]
    %v1575 = vld [vmem:[%s1565 + $0x48] sm:$0xff]
    %v1576 = vld [vmem:[%s1565 + $0x50] sm:$0xff]
    %v1577 = vld [vmem:[%s1565 + $0x58] sm:$0xff]
    %v1578 = vld [vmem:[%s1565 + $0x60] sm:$0xff]
    %v1579 = vld [vmem:[%s1565 + $0x68] sm:$0xff]
    %v1580 = vld [vmem:[%s1565 + $0x70] sm:$0xff]
    %v1581 = vld [vmem:[%s1565 + $0x78] sm:$0xff]
    %1584 = vst [vmem:[#allocation1] ss:$9 sm:$0xff] %v1563
    %s1585 = scalar_lea.vmem [#allocation1], 1
    %1586 = vst [vmem:[%s1585] ss:$9 sm:$0xff] %v1564
    %v1587 = vld [vmem:[#allocation1] sm:$0xff]
    %1589 = vmatpush.msra.mxu0 %v1581
    %1590 = vmatpush.msra.mxu0 %v1580
    %1591 = vmatpush.msra.mxu0 %v1579
    %1592 = vmatpush.msra.mxu0 %v1578
    %1593 = vmatpush.msra.mxu0 %v1577
    %1594 = vmatpush.msra.mxu0 %v1576
    %1595 = vmatpush.msra.mxu0 %v1575
    %1596 = vmatpush.msra.mxu0 %v1574
    %1597 = vmatpush.msra.mxu0 %v1573
    %1598 = vmatpush.msra.mxu0 %v1572
    %1599 = vmatpush.msra.mxu0 %v1571
    %1600 = vmatpush.msra.mxu0 %v1570
    %1601 = vmatpush.msra.mxu0 %v1569
    %1602 = vmatpush.msra.mxu0 %v1568
    %1603 = vmatpush.msra.mxu0 %v1567
    %1604 = vmatpush.msra.mxu0 %v1566
    %1605 = vmatmul.f32.gmra.mxu0 %v1587
    %v1606 = vpop.f32.mrf.mxu0
    %v1607 = vadd.f32 0.0, %v1606
    %1608 = vdwg.mxu0
    %1611 = vst [vmem:[#allocation1] ss:$9 sm:$0xff] %v1529
    %s1612 = scalar_lea.vmem [#allocation1], 1
    %1613 = vst [vmem:[%s1612] ss:$9 sm:$0xff] %v1530
    %v1614 = vld [vmem:[#allocation1] sm:$0xff]
    %1616 = vmatpush.msra.mxu0 %v1546
    %1617 = vmatpush.msra.mxu0 %v1545
    %1618 = vmatpush.msra.mxu0 %v1544
    %1619 = vmatpush.msra.mxu0 %v1543
    %1620 = vmatpush.msra.mxu0 %v1542
    %1621 = vmatpush.msra.mxu0 %v1541
    %1622 = vmatpush.msra.mxu0 %v1540
    %1623 = vmatpush.msra.mxu0 %v1539
    %1624 = vmatpush.msra.mxu0 %v1538
    %1625 = vmatpush.msra.mxu0 %v1537
    %1626 = vmatpush.msra.mxu0 %v1536
    %1627 = vmatpush.msra.mxu0 %v1535
    %1628 = vmatpush.msra.mxu0 %v1534
    %1629 = vmatpush.msra.mxu0 %v1533
    %1630 = vmatpush.msra.mxu0 %v1532
    %1631 = vmatpush.msra.mxu0 %v1531
    %1632 = vmatmul.f32.gmra.mxu0 %v1614
    %v1633 = vpop.f32.mrf.mxu0
    %v1634 = vadd.f32 %v1607, %v1633
    %1635 = vdwg.mxu0
    %s1636 = scalar_lea.vmem [#allocation4], 4
    %v1637 = vld [vmem:[%s1636] ss:$8 sm:$0x3]
    %s1638 = scalar_lea.vmem [#allocation4], 68
    %v1639 = vld [vmem:[%s1638] ss:$8 sm:$0x3]
    %s1640 = scalar_lea.vmem [#allocation4], 5
    %v1641 = vld [vmem:[%s1640] ss:$8 sm:$0x3]
    %s1642 = scalar_lea.vmem [#allocation4], 69
    %v1643 = vld [vmem:[%s1642] ss:$8 sm:$0x3]
    %v1644 = vmax.f32 %v1637, %v1641
    %v1645 = vmax.f32 %v1639, %v1643
    %v1648 = vrot.slane %v1644, 1
    %v1649 = vrot.slane %v1645, 1
    %v1652 = vmax.f32 %v1644, %v1648
    %v1653 = vmax.f32 %v1645, %v1649
    %s1654 = scalar_lea.vmem %s5, 256
    %v1655 = vld [vmem:[%s1654] sm:$0xff]
    %v1656 = vld [vmem:[%s1654 + $0x8] sm:$0xff]
    %v1657 = vld [vmem:[%s1654 + $0x10] sm:$0xff]
    %v1658 = vld [vmem:[%s1654 + $0x18] sm:$0xff]
    %v1659 = vld [vmem:[%s1654 + $0x20] sm:$0xff]
    %v1660 = vld [vmem:[%s1654 + $0x28] sm:$0xff]
    %v1661 = vld [vmem:[%s1654 + $0x30] sm:$0xff]
    %v1662 = vld [vmem:[%s1654 + $0x38] sm:$0xff]
    %v1663 = vld [vmem:[%s1654 + $0x40] sm:$0xff]
    %v1664 = vld [vmem:[%s1654 + $0x48] sm:$0xff]
    %v1665 = vld [vmem:[%s1654 + $0x50] sm:$0xff]
    %v1666 = vld [vmem:[%s1654 + $0x58] sm:$0xff]
    %v1667 = vld [vmem:[%s1654 + $0x60] sm:$0xff]
    %v1668 = vld [vmem:[%s1654 + $0x68] sm:$0xff]
    %v1669 = vld [vmem:[%s1654 + $0x70] sm:$0xff]
    %v1670 = vld [vmem:[%s1654 + $0x78] sm:$0xff]
    %1673 = vst [vmem:[#allocation1] ss:$9 sm:$0xff] %v1652
    %s1674 = scalar_lea.vmem [#allocation1], 1
    %1675 = vst [vmem:[%s1674] ss:$9 sm:$0xff] %v1653
    %v1676 = vld [vmem:[#allocation1] sm:$0xff]
    %1678 = vmatpush.msra.mxu0 %v1670
    %1679 = vmatpush.msra.mxu0 %v1669
    %1680 = vmatpush.msra.mxu0 %v1668
    %1681 = vmatpush.msra.mxu0 %v1667
    %1682 = vmatpush.msra.mxu0 %v1666
    %1683 = vmatpush.msra.mxu0 %v1665
    %1684 = vmatpush.msra.mxu0 %v1664
    %1685 = vmatpush.msra.mxu0 %v1663
    %1686 = vmatpush.msra.mxu0 %v1662
    %1687 = vmatpush.msra.mxu0 %v1661
    %1688 = vmatpush.msra.mxu0 %v1660
    %1689 = vmatpush.msra.mxu0 %v1659
    %1690 = vmatpush.msra.mxu0 %v1658
    %1691 = vmatpush.msra.mxu0 %v1657
    %1692 = vmatpush.msra.mxu0 %v1656
    %1693 = vmatpush.msra.mxu0 %v1655
    %1694 = vmatmul.f32.gmra.mxu0 %v1676
    %v1695 = vpop.f32.mrf.mxu0
    %v1696 = vadd.f32 0.0, %v1695
    %1697 = vdwg.mxu0
    %v1698 = vadd.f32 %v1634, %v1696
    %s1699 = scalar_lea.vmem [#allocation4], 6
    %v1700 = vld [vmem:[%s1699] ss:$8 sm:$0x3]
    %s1701 = scalar_lea.vmem [#allocation4], 70
    %v1702 = vld [vmem:[%s1701] ss:$8 sm:$0x3]
    %s1703 = scalar_lea.vmem [#allocation4], 7
    %v1704 = vld [vmem:[%s1703] ss:$8 sm:$0x3]
    %s1705 = scalar_lea.vmem [#allocation4], 71
    %v1706 = vld [vmem:[%s1705] ss:$8 sm:$0x3]
    %v1707 = vmax.f32 %v1700, %v1704
    %v1708 = vmax.f32 %v1702, %v1706
    %v1711 = vrot.slane %v1707, 1
    %v1712 = vrot.slane %v1708, 1
    %v1715 = vmax.f32 %v1707, %v1711
    %v1716 = vmax.f32 %v1708, %v1712
    %s1717 = scalar_lea.vmem %s5, 384
    %v1718 = vld [vmem:[%s1717] sm:$0xff]
    %v1719 = vld [vmem:[%s1717 + $0x8] sm:$0xff]
    %v1720 = vld [vmem:[%s1717 + $0x10] sm:$0xff]
    %v1721 = vld [vmem:[%s1717 + $0x18] sm:$0xff]
    %v1722 = vld [vmem:[%s1717 + $0x20] sm:$0xff]
    %v1723 = vld [vmem:[%s1717 + $0x28] sm:$0xff]
    %v1724 = vld [vmem:[%s1717 + $0x30] sm:$0xff]
    %v1725 = vld [vmem:[%s1717 + $0x38] sm:$0xff]
    %v1726 = vld [vmem:[%s1717 + $0x40] sm:$0xff]
    %v1727 = vld [vmem:[%s1717 + $0x48] sm:$0xff]
    %v1728 = vld [vmem:[%s1717 + $0x50] sm:$0xff]
    %v1729 = vld [vmem:[%s1717 + $0x58] sm:$0xff]
    %v1730 = vld [vmem:[%s1717 + $0x60] sm:$0xff]
    %v1731 = vld [vmem:[%s1717 + $0x68] sm:$0xff]
    %v1732 = vld [vmem:[%s1717 + $0x70] sm:$0xff]
    %v1733 = vld [vmem:[%s1717 + $0x78] sm:$0xff]
    %1736 = vst [vmem:[#allocation1] ss:$9 sm:$0xff] %v1715
    %s1737 = scalar_lea.vmem [#allocation1], 1
    %1738 = vst [vmem:[%s1737] ss:$9 sm:$0xff] %v1716
    %v1739 = vld [vmem:[#allocation1] sm:$0xff]
    %1741 = vmatpush.msra.mxu0 %v1733
    %1742 = vmatpush.msra.mxu0 %v1732
    %1743 = vmatpush.msra.mxu0 %v1731
    %1744 = vmatpush.msra.mxu0 %v1730
    %1745 = vmatpush.msra.mxu0 %v1729
    %1746 = vmatpush.msra.mxu0 %v1728
    %1747 = vmatpush.msra.mxu0 %v1727
    %1748 = vmatpush.msra.mxu0 %v1726
    %1749 = vmatpush.msra.mxu0 %v1725
    %1750 = vmatpush.msra.mxu0 %v1724
    %1751 = vmatpush.msra.mxu0 %v1723
    %1752 = vmatpush.msra.mxu0 %v1722
    %1753 = vmatpush.msra.mxu0 %v1721
    %1754 = vmatpush.msra.mxu0 %v1720
    %1755 = vmatpush.msra.mxu0 %v1719
    %1756 = vmatpush.msra.mxu0 %v1718
    %1757 = vmatmul.f32.gmra.mxu0 %v1739
    %v1758 = vpop.f32.mrf.mxu0
    %v1759 = vadd.f32 0.0, %v1758
    %1760 = vdwg.mxu0
    %v1761 = vadd.f32 %v1698, %v1759
    %s1762 = scalar_lea.vmem [#allocation4], 16
    %v1763 = vld [vmem:[%s1762] ss:$8 sm:$0x3]
    %s1764 = scalar_lea.vmem [#allocation4], 80
    %v1765 = vld [vmem:[%s1764] ss:$8 sm:$0x3]
    %s1766 = scalar_lea.vmem [#allocation4], 17
    %v1767 = vld [vmem:[%s1766] ss:$8 sm:$0x3]
    %s1768 = scalar_lea.vmem [#allocation4], 81
    %v1769 = vld [vmem:[%s1768] ss:$8 sm:$0x3]
    %v1770 = vmax.f32 %v1763, %v1767
    %v1771 = vmax.f32 %v1765, %v1769
    %v1774 = vrot.slane %v1770, 1
    %v1775 = vrot.slane %v1771, 1
    %v1778 = vmax.f32 %v1770, %v1774
    %v1779 = vmax.f32 %v1771, %v1775
    %s1780 = scalar_lea.vmem %s5, 512
    %v1781 = vld [vmem:[%s1780] sm:$0xff]
    %v1782 = vld [vmem:[%s1780 + $0x8] sm:$0xff]
    %v1783 = vld [vmem:[%s1780 + $0x10] sm:$0xff]
    %v1784 = vld [vmem:[%s1780 + $0x18] sm:$0xff]
    %v1785 = vld [vmem:[%s1780 + $0x20] sm:$0xff]
    %v1786 = vld [vmem:[%s1780 + $0x28] sm:$0xff]
    %v1787 = vld [vmem:[%s1780 + $0x30] sm:$0xff]
    %v1788 = vld [vmem:[%s1780 + $0x38] sm:$0xff]
    %v1789 = vld [vmem:[%s1780 + $0x40] sm:$0xff]
    %v1790 = vld [vmem:[%s1780 + $0x48] sm:$0xff]
    %v1791 = vld [vmem:[%s1780 + $0x50] sm:$0xff]
    %v1792 = vld [vmem:[%s1780 + $0x58] sm:$0xff]
    %v1793 = vld [vmem:[%s1780 + $0x60] sm:$0xff]
    %v1794 = vld [vmem:[%s1780 + $0x68] sm:$0xff]
    %v1795 = vld [vmem:[%s1780 + $0x70] sm:$0xff]
    %v1796 = vld [vmem:[%s1780 + $0x78] sm:$0xff]
    %1799 = vst [vmem:[#allocation1] ss:$9 sm:$0xff] %v1778
    %s1800 = scalar_lea.vmem [#allocation1], 1
    %1801 = vst [vmem:[%s1800] ss:$9 sm:$0xff] %v1779
    %v1802 = vld [vmem:[#allocation1] sm:$0xff]
    %1804 = vmatpush.msra.mxu0 %v1796
    %1805 = vmatpush.msra.mxu0 %v1795
    %1806 = vmatpush.msra.mxu0 %v1794
    %1807 = vmatpush.msra.mxu0 %v1793
    %1808 = vmatpush.msra.mxu0 %v1792
    %1809 = vmatpush.msra.mxu0 %v1791
    %1810 = vmatpush.msra.mxu0 %v1790
    %1811 = vmatpush.msra.mxu0 %v1789
    %1812 = vmatpush.msra.mxu0 %v1788
    %1813 = vmatpush.msra.mxu0 %v1787
    %1814 = vmatpush.msra.mxu0 %v1786
    %1815 = vmatpush.msra.mxu0 %v1785
    %1816 = vmatpush.msra.mxu0 %v1784
    %1817 = vmatpush.msra.mxu0 %v1783
    %1818 = vmatpush.msra.mxu0 %v1782
    %1819 = vmatpush.msra.mxu0 %v1781
    %1820 = vmatmul.f32.gmra.mxu0 %v1802
    %v1821 = vpop.f32.mrf.mxu0
    %v1822 = vadd.f32 0.0, %v1821
    %1823 = vdwg.mxu0
    %v1824 = vadd.f32 %v1761, %v1822
    %s1825 = scalar_lea.vmem [#allocation4], 18
    %v1826 = vld [vmem:[%s1825] ss:$8 sm:$0x3]
    %s1827 = scalar_lea.vmem [#allocation4], 82
    %v1828 = vld [vmem:[%s1827] ss:$8 sm:$0x3]
    %s1829 = scalar_lea.vmem [#allocation4], 19
    %v1830 = vld [vmem:[%s1829] ss:$8 sm:$0x3]
    %s1831 = scalar_lea.vmem [#allocation4], 83
    %v1832 = vld [vmem:[%s1831] ss:$8 sm:$0x3]
    %v1833 = vmax.f32 %v1826, %v1830
    %v1834 = vmax.f32 %v1828, %v1832
    %v1837 = vrot.slane %v1833, 1
    %v1838 = vrot.slane %v1834, 1
    %v1841 = vmax.f32 %v1833, %v1837
    %v1842 = vmax.f32 %v1834, %v1838
    %s1843 = scalar_lea.vmem %s5, 640
    %v1844 = vld [vmem:[%s1843] sm:$0xff]
    %v1845 = vld [vmem:[%s1843 + $0x8] sm:$0xff]
    %v1846 = vld [vmem:[%s1843 + $0x10] sm:$0xff]
    %v1847 = vld [vmem:[%s1843 + $0x18] sm:$0xff]
    %v1848 = vld [vmem:[%s1843 + $0x20] sm:$0xff]
    %v1849 = vld [vmem:[%s1843 + $0x28] sm:$0xff]
    %v1850 = vld [vmem:[%s1843 + $0x30] sm:$0xff]
    %v1851 = vld [vmem:[%s1843 + $0x38] sm:$0xff]
    %v1852 = vld [vmem:[%s1843 + $0x40] sm:$0xff]
    %v1853 = vld [vmem:[%s1843 + $0x48] sm:$0xff]
    %v1854 = vld [vmem:[%s1843 + $0x50] sm:$0xff]
    %v1855 = vld [vmem:[%s1843 + $0x58] sm:$0xff]
    %v1856 = vld [vmem:[%s1843 + $0x60] sm:$0xff]
    %v1857 = vld [vmem:[%s1843 + $0x68] sm:$0xff]
    %v1858 = vld [vmem:[%s1843 + $0x70] sm:$0xff]
    %v1859 = vld [vmem:[%s1843 + $0x78] sm:$0xff]
    %1862 = vst [vmem:[#allocation1] ss:$9 sm:$0xff] %v1841
    %s1863 = scalar_lea.vmem [#allocation1], 1
    %1864 = vst [vmem:[%s1863] ss:$9 sm:$0xff] %v1842
    %v1865 = vld [vmem:[#allocation1] sm:$0xff]
    %1867 = vmatpush.msra.mxu0 %v1859
    %1868 = vmatpush.msra.mxu0 %v1858
    %1869 = vmatpush.msra.mxu0 %v1857
    %1870 = vmatpush.msra.mxu0 %v1856
    %1871 = vmatpush.msra.mxu0 %v1855
    %1872 = vmatpush.msra.mxu0 %v1854
    %1873 = vmatpush.msra.mxu0 %v1853
    %1874 = vmatpush.msra.mxu0 %v1852
    %1875 = vmatpush.msra.mxu0 %v1851
    %1876 = vmatpush.msra.mxu0 %v1850
    %1877 = vmatpush.msra.mxu0 %v1849
    %1878 = vmatpush.msra.mxu0 %v1848
    %1879 = vmatpush.msra.mxu0 %v1847
    %1880 = vmatpush.msra.mxu0 %v1846
    %1881 = vmatpush.msra.mxu0 %v1845
    %1882 = vmatpush.msra.mxu0 %v1844
    %1883 = vmatmul.f32.gmra.mxu0 %v1865
    %v1884 = vpop.f32.mrf.mxu0
    %v1885 = vadd.f32 0.0, %v1884
    %1886 = vdwg.mxu0
    %v1887 = vadd.f32 %v1824, %v1885
    %s1888 = scalar_lea.vmem [#allocation4], 20
    %v1889 = vld [vmem:[%s1888] ss:$8 sm:$0x3]
    %s1890 = scalar_lea.vmem [#allocation4], 84
    %v1891 = vld [vmem:[%s1890] ss:$8 sm:$0x3]
    %s1892 = scalar_lea.vmem [#allocation4], 21
    %v1893 = vld [vmem:[%s1892] ss:$8 sm:$0x3]
    %s1894 = scalar_lea.vmem [#allocation4], 85
    %v1895 = vld [vmem:[%s1894] ss:$8 sm:$0x3]
    %v1896 = vmax.f32 %v1889, %v1893
    %v1897 = vmax.f32 %v1891, %v1895
    %v1900 = vrot.slane %v1896, 1
    %v1901 = vrot.slane %v1897, 1
    %v1904 = vmax.f32 %v1896, %v1900
    %v1905 = vmax.f32 %v1897, %v1901
    %s1906 = scalar_lea.vmem %s5, 768
    %v1907 = vld [vmem:[%s1906] sm:$0xff]
    %v1908 = vld [vmem:[%s1906 + $0x8] sm:$0xff]
    %v1909 = vld [vmem:[%s1906 + $0x10] sm:$0xff]
    %v1910 = vld [vmem:[%s1906 + $0x18] sm:$0xff]
    %v1911 = vld [vmem:[%s1906 + $0x20] sm:$0xff]
    %v1912 = vld [vmem:[%s1906 + $0x28] sm:$0xff]
    %v1913 = vld [vmem:[%s1906 + $0x30] sm:$0xff]
    %v1914 = vld [vmem:[%s1906 + $0x38] sm:$0xff]
    %v1915 = vld [vmem:[%s1906 + $0x40] sm:$0xff]
    %v1916 = vld [vmem:[%s1906 + $0x48] sm:$0xff]
    %v1917 = vld [vmem:[%s1906 + $0x50] sm:$0xff]
    %v1918 = vld [vmem:[%s1906 + $0x58] sm:$0xff]
    %v1919 = vld [vmem:[%s1906 + $0x60] sm:$0xff]
    %v1920 = vld [vmem:[%s1906 + $0x68] sm:$0xff]
    %v1921 = vld [vmem:[%s1906 + $0x70] sm:$0xff]
    %v1922 = vld [vmem:[%s1906 + $0x78] sm:$0xff]
    %1925 = vst [vmem:[#allocation1] ss:$9 sm:$0xff] %v1904
    %s1926 = scalar_lea.vmem [#allocation1], 1
    %1927 = vst [vmem:[%s1926] ss:$9 sm:$0xff] %v1905
    %v1928 = vld [vmem:[#allocation1] sm:$0xff]
    %1930 = vmatpush.msra.mxu0 %v1922
    %1931 = vmatpush.msra.mxu0 %v1921
    %1932 = vmatpush.msra.mxu0 %v1920
    %1933 = vmatpush.msra.mxu0 %v1919
    %1934 = vmatpush.msra.mxu0 %v1918
    %1935 = vmatpush.msra.mxu0 %v1917
    %1936 = vmatpush.msra.mxu0 %v1916
    %1937 = vmatpush.msra.mxu0 %v1915
    %1938 = vmatpush.msra.mxu0 %v1914
    %1939 = vmatpush.msra.mxu0 %v1913
    %1940 = vmatpush.msra.mxu0 %v1912
    %1941 = vmatpush.msra.mxu0 %v1911
    %1942 = vmatpush.msra.mxu0 %v1910
    %1943 = vmatpush.msra.mxu0 %v1909
    %1944 = vmatpush.msra.mxu0 %v1908
    %1945 = vmatpush.msra.mxu0 %v1907
    %1946 = vmatmul.f32.gmra.mxu0 %v1928
    %v1947 = vpop.f32.mrf.mxu0
    %v1948 = vadd.f32 0.0, %v1947
    %1949 = vdwg.mxu0
    %v1950 = vadd.f32 %v1887, %v1948
    %s1951 = scalar_lea.vmem [#allocation4], 22
    %v1952 = vld [vmem:[%s1951] ss:$8 sm:$0x3]
    %s1953 = scalar_lea.vmem [#allocation4], 86
    %v1954 = vld [vmem:[%s1953] ss:$8 sm:$0x3]
    %s1955 = scalar_lea.vmem [#allocation4], 23
    %v1956 = vld [vmem:[%s1955] ss:$8 sm:$0x3]
    %s1957 = scalar_lea.vmem [#allocation4], 87
    %v1958 = vld [vmem:[%s1957] ss:$8 sm:$0x3]
    %v1959 = vmax.f32 %v1952, %v1956
    %v1960 = vmax.f32 %v1954, %v1958
    %v1963 = vrot.slane %v1959, 1
    %v1964 = vrot.slane %v1960, 1
    %v1967 = vmax.f32 %v1959, %v1963
    %v1968 = vmax.f32 %v1960, %v1964
    %s1969 = scalar_lea.vmem %s5, 896
    %v1970 = vld [vmem:[%s1969] sm:$0xff]
    %v1971 = vld [vmem:[%s1969 + $0x8] sm:$0xff]
    %v1972 = vld [vmem:[%s1969 + $0x10] sm:$0xff]
    %v1973 = vld [vmem:[%s1969 + $0x18] sm:$0xff]
    %v1974 = vld [vmem:[%s1969 + $0x20] sm:$0xff]
    %v1975 = vld [vmem:[%s1969 + $0x28] sm:$0xff]
    %v1976 = vld [vmem:[%s1969 + $0x30] sm:$0xff]
    %v1977 = vld [vmem:[%s1969 + $0x38] sm:$0xff]
    %v1978 = vld [vmem:[%s1969 + $0x40] sm:$0xff]
    %v1979 = vld [vmem:[%s1969 + $0x48] sm:$0xff]
    %v1980 = vld [vmem:[%s1969 + $0x50] sm:$0xff]
    %v1981 = vld [vmem:[%s1969 + $0x58] sm:$0xff]
    %v1982 = vld [vmem:[%s1969 + $0x60] sm:$0xff]
    %v1983 = vld [vmem:[%s1969 + $0x68] sm:$0xff]
    %v1984 = vld [vmem:[%s1969 + $0x70] sm:$0xff]
    %v1985 = vld [vmem:[%s1969 + $0x78] sm:$0xff]
    %1988 = vst [vmem:[#allocation1] ss:$9 sm:$0xff] %v1967
    %s1989 = scalar_lea.vmem [#allocation1], 1
    %1990 = vst [vmem:[%s1989] ss:$9 sm:$0xff] %v1968
    %v1991 = vld [vmem:[#allocation1] sm:$0xff]
    %1993 = vmatpush.msra.mxu0 %v1985
    %1994 = vmatpush.msra.mxu0 %v1984
    %1995 = vmatpush.msra.mxu0 %v1983
    %1996 = vmatpush.msra.mxu0 %v1982
    %1997 = vmatpush.msra.mxu0 %v1981
    %1998 = vmatpush.msra.mxu0 %v1980
    %1999 = vmatpush.msra.mxu0 %v1979
    %2000 = vmatpush.msra.mxu0 %v1978
    %2001 = vmatpush.msra.mxu0 %v1977
    %2002 = vmatpush.msra.mxu0 %v1976
    %2003 = vmatpush.msra.mxu0 %v1975
    %2004 = vmatpush.msra.mxu0 %v1974
    %2005 = vmatpush.msra.mxu0 %v1973
    %2006 = vmatpush.msra.mxu0 %v1972
    %2007 = vmatpush.msra.mxu0 %v1971
    %2008 = vmatpush.msra.mxu0 %v1970
    %2009 = vmatmul.f32.gmra.mxu0 %v1991
    %v2010 = vpop.f32.mrf.mxu0
    %v2011 = vadd.f32 0.0, %v2010
    %2012 = vdwg.mxu0
    %v2013 = vadd.f32 %v1950, %v2011
    %s2014 = scalar_lea.vmem [#allocation4], 32
    %v2015 = vld [vmem:[%s2014] ss:$8 sm:$0x3]
    %s2016 = scalar_lea.vmem [#allocation4], 96
    %v2017 = vld [vmem:[%s2016] ss:$8 sm:$0x3]
    %s2018 = scalar_lea.vmem [#allocation4], 33
    %v2019 = vld [vmem:[%s2018] ss:$8 sm:$0x3]
    %s2020 = scalar_lea.vmem [#allocation4], 97
    %v2021 = vld [vmem:[%s2020] ss:$8 sm:$0x3]
    %v2022 = vmax.f32 %v2015, %v2019
    %v2023 = vmax.f32 %v2017, %v2021
    %v2026 = vrot.slane %v2022, 1
    %v2027 = vrot.slane %v2023, 1
    %v2030 = vmax.f32 %v2022, %v2026
    %v2031 = vmax.f32 %v2023, %v2027
    %s2032 = scalar_lea.vmem %s5, 1024
    %v2033 = vld [vmem:[%s2032] sm:$0xff]
    %v2034 = vld [vmem:[%s2032 + $0x8] sm:$0xff]
    %v2035 = vld [vmem:[%s2032 + $0x10] sm:$0xff]
    %v2036 = vld [vmem:[%s2032 + $0x18] sm:$0xff]
    %v2037 = vld [vmem:[%s2032 + $0x20] sm:$0xff]
    %v2038 = vld [vmem:[%s2032 + $0x28] sm:$0xff]
    %v2039 = vld [vmem:[%s2032 + $0x30] sm:$0xff]
    %v2040 = vld [vmem:[%s2032 + $0x38] sm:$0xff]
    %v2041 = vld [vmem:[%s2032 + $0x40] sm:$0xff]
    %v2042 = vld [vmem:[%s2032 + $0x48] sm:$0xff]
    %v2043 = vld [vmem:[%s2032 + $0x50] sm:$0xff]
    %v2044 = vld [vmem:[%s2032 + $0x58] sm:$0xff]
    %v2045 = vld [vmem:[%s2032 + $0x60] sm:$0xff]
    %v2046 = vld [vmem:[%s2032 + $0x68] sm:$0xff]
    %v2047 = vld [vmem:[%s2032 + $0x70] sm:$0xff]
    %v2048 = vld [vmem:[%s2032 + $0x78] sm:$0xff]
    %2051 = vst [vmem:[#allocation1] ss:$9 sm:$0xff] %v2030
    %s2052 = scalar_lea.vmem [#allocation1], 1
    %2053 = vst [vmem:[%s2052] ss:$9 sm:$0xff] %v2031
    %v2054 = vld [vmem:[#allocation1] sm:$0xff]
    %2056 = vmatpush.msra.mxu0 %v2048
    %2057 = vmatpush.msra.mxu0 %v2047
    %2058 = vmatpush.msra.mxu0 %v2046
    %2059 = vmatpush.msra.mxu0 %v2045
    %2060 = vmatpush.msra.mxu0 %v2044
    %2061 = vmatpush.msra.mxu0 %v2043
    %2062 = vmatpush.msra.mxu0 %v2042
    %2063 = vmatpush.msra.mxu0 %v2041
    %2064 = vmatpush.msra.mxu0 %v2040
    %2065 = vmatpush.msra.mxu0 %v2039
    %2066 = vmatpush.msra.mxu0 %v2038
    %2067 = vmatpush.msra.mxu0 %v2037
    %2068 = vmatpush.msra.mxu0 %v2036
    %2069 = vmatpush.msra.mxu0 %v2035
    %2070 = vmatpush.msra.mxu0 %v2034
    %2071 = vmatpush.msra.mxu0 %v2033
    %2072 = vmatmul.f32.gmra.mxu0 %v2054
    %v2073 = vpop.f32.mrf.mxu0
    %v2074 = vadd.f32 0.0, %v2073
    %2075 = vdwg.mxu0
    %v2076 = vadd.f32 %v2013, %v2074
    %s2077 = scalar_lea.vmem [#allocation4], 34
    %v2078 = vld [vmem:[%s2077] ss:$8 sm:$0x3]
    %s2079 = scalar_lea.vmem [#allocation4], 98
    %v2080 = vld [vmem:[%s2079] ss:$8 sm:$0x3]
    %s2081 = scalar_lea.vmem [#allocation4], 35
    %v2082 = vld [vmem:[%s2081] ss:$8 sm:$0x3]
    %s2083 = scalar_lea.vmem [#allocation4], 99
    %v2084 = vld [vmem:[%s2083] ss:$8 sm:$0x3]
    %v2085 = vmax.f32 %v2078, %v2082
    %v2086 = vmax.f32 %v2080, %v2084
    %v2089 = vrot.slane %v2085, 1
    %v2090 = vrot.slane %v2086, 1
    %v2093 = vmax.f32 %v2085, %v2089
    %v2094 = vmax.f32 %v2086, %v2090
    %s2095 = scalar_lea.vmem %s5, 1152
    %v2096 = vld [vmem:[%s2095] sm:$0xff]
    %v2097 = vld [vmem:[%s2095 + $0x8] sm:$0xff]
    %v2098 = vld [vmem:[%s2095 + $0x10] sm:$0xff]
    %v2099 = vld [vmem:[%s2095 + $0x18] sm:$0xff]
    %v2100 = vld [vmem:[%s2095 + $0x20] sm:$0xff]
    %v2101 = vld [vmem:[%s2095 + $0x28] sm:$0xff]
    %v2102 = vld [vmem:[%s2095 + $0x30] sm:$0xff]
    %v2103 = vld [vmem:[%s2095 + $0x38] sm:$0xff]
    %v2104 = vld [vmem:[%s2095 + $0x40] sm:$0xff]
    %v2105 = vld [vmem:[%s2095 + $0x48] sm:$0xff]
    %v2106 = vld [vmem:[%s2095 + $0x50] sm:$0xff]
    %v2107 = vld [vmem:[%s2095 + $0x58] sm:$0xff]
    %v2108 = vld [vmem:[%s2095 + $0x60] sm:$0xff]
    %v2109 = vld [vmem:[%s2095 + $0x68] sm:$0xff]
    %v2110 = vld [vmem:[%s2095 + $0x70] sm:$0xff]
    %v2111 = vld [vmem:[%s2095 + $0x78] sm:$0xff]
    %2114 = vst [vmem:[#allocation1] ss:$9 sm:$0xff] %v2093
    %s2115 = scalar_lea.vmem [#allocation1], 1
    %2116 = vst [vmem:[%s2115] ss:$9 sm:$0xff] %v2094
    %v2117 = vld [vmem:[#allocation1] sm:$0xff]
    %2119 = vmatpush.msra.mxu0 %v2111
    %2120 = vmatpush.msra.mxu0 %v2110
    %2121 = vmatpush.msra.mxu0 %v2109
    %2122 = vmatpush.msra.mxu0 %v2108
    %2123 = vmatpush.msra.mxu0 %v2107
    %2124 = vmatpush.msra.mxu0 %v2106
    %2125 = vmatpush.msra.mxu0 %v2105
    %2126 = vmatpush.msra.mxu0 %v2104
    %2127 = vmatpush.msra.mxu0 %v2103
    %2128 = vmatpush.msra.mxu0 %v2102
    %2129 = vmatpush.msra.mxu0 %v2101
    %2130 = vmatpush.msra.mxu0 %v2100
    %2131 = vmatpush.msra.mxu0 %v2099
    %2132 = vmatpush.msra.mxu0 %v2098
    %2133 = vmatpush.msra.mxu0 %v2097
    %2134 = vmatpush.msra.mxu0 %v2096
    %2135 = vmatmul.f32.gmra.mxu0 %v2117
    %v2136 = vpop.f32.mrf.mxu0
    %v2137 = vadd.f32 0.0, %v2136
    %2138 = vdwg.mxu0
    %v2139 = vadd.f32 %v2076, %v2137
    %s2140 = scalar_lea.vmem [#allocation4], 36
    %v2141 = vld [vmem:[%s2140] ss:$8 sm:$0x3]
    %s2142 = scalar_lea.vmem [#allocation4], 100
    %v2143 = vld [vmem:[%s2142] ss:$8 sm:$0x3]
    %s2144 = scalar_lea.vmem [#allocation4], 37
    %v2145 = vld [vmem:[%s2144] ss:$8 sm:$0x3]
    %s2146 = scalar_lea.vmem [#allocation4], 101
    %v2147 = vld [vmem:[%s2146] ss:$8 sm:$0x3]
    %v2148 = vmax.f32 %v2141, %v2145
    %v2149 = vmax.f32 %v2143, %v2147
    %v2152 = vrot.slane %v2148, 1
    %v2153 = vrot.slane %v2149, 1
    %v2156 = vmax.f32 %v2148, %v2152
    %v2157 = vmax.f32 %v2149, %v2153
    %s2158 = scalar_lea.vmem %s5, 1280
    %v2159 = vld [vmem:[%s2158] sm:$0xff]
    %v2160 = vld [vmem:[%s2158 + $0x8] sm:$0xff]
    %v2161 = vld [vmem:[%s2158 + $0x10] sm:$0xff]
    %v2162 = vld [vmem:[%s2158 + $0x18] sm:$0xff]
    %v2163 = vld [vmem:[%s2158 + $0x20] sm:$0xff]
    %v2164 = vld [vmem:[%s2158 + $0x28] sm:$0xff]
    %v2165 = vld [vmem:[%s2158 + $0x30] sm:$0xff]
    %v2166 = vld [vmem:[%s2158 + $0x38] sm:$0xff]
    %v2167 = vld [vmem:[%s2158 + $0x40] sm:$0xff]
    %v2168 = vld [vmem:[%s2158 + $0x48] sm:$0xff]
    %v2169 = vld [vmem:[%s2158 + $0x50] sm:$0xff]
    %v2170 = vld [vmem:[%s2158 + $0x58] sm:$0xff]
    %v2171 = vld [vmem:[%s2158 + $0x60] sm:$0xff]
    %v2172 = vld [vmem:[%s2158 + $0x68] sm:$0xff]
    %v2173 = vld [vmem:[%s2158 + $0x70] sm:$0xff]
    %v2174 = vld [vmem:[%s2158 + $0x78] sm:$0xff]
    %2177 = vst [vmem:[#allocation1] ss:$9 sm:$0xff] %v2156
    %s2178 = scalar_lea.vmem [#allocation1], 1
    %2179 = vst [vmem:[%s2178] ss:$9 sm:$0xff] %v2157
    %v2180 = vld [vmem:[#allocation1] sm:$0xff]
    %2182 = vmatpush.msra.mxu0 %v2174
    %2183 = vmatpush.msra.mxu0 %v2173
    %2184 = vmatpush.msra.mxu0 %v2172
    %2185 = vmatpush.msra.mxu0 %v2171
    %2186 = vmatpush.msra.mxu0 %v2170
    %2187 = vmatpush.msra.mxu0 %v2169
    %2188 = vmatpush.msra.mxu0 %v2168
    %2189 = vmatpush.msra.mxu0 %v2167
    %2190 = vmatpush.msra.mxu0 %v2166
    %2191 = vmatpush.msra.mxu0 %v2165
    %2192 = vmatpush.msra.mxu0 %v2164
    %2193 = vmatpush.msra.mxu0 %v2163
    %2194 = vmatpush.msra.mxu0 %v2162
    %2195 = vmatpush.msra.mxu0 %v2161
    %2196 = vmatpush.msra.mxu0 %v2160
    %2197 = vmatpush.msra.mxu0 %v2159
    %2198 = vmatmul.f32.gmra.mxu0 %v2180
    %v2199 = vpop.f32.mrf.mxu0
    %v2200 = vadd.f32 0.0, %v2199
    %2201 = vdwg.mxu0
    %v2202 = vadd.f32 %v2139, %v2200
    %s2203 = scalar_lea.vmem [#allocation4], 38
    %v2204 = vld [vmem:[%s2203] ss:$8 sm:$0x3]
    %s2205 = scalar_lea.vmem [#allocation4], 102
    %v2206 = vld [vmem:[%s2205] ss:$8 sm:$0x3]
    %s2207 = scalar_lea.vmem [#allocation4], 39
    %v2208 = vld [vmem:[%s2207] ss:$8 sm:$0x3]
    %s2209 = scalar_lea.vmem [#allocation4], 103
    %v2210 = vld [vmem:[%s2209] ss:$8 sm:$0x3]
    %v2211 = vmax.f32 %v2204, %v2208
    %v2212 = vmax.f32 %v2206, %v2210
    %v2215 = vrot.slane %v2211, 1
    %v2216 = vrot.slane %v2212, 1
    %v2219 = vmax.f32 %v2211, %v2215
    %v2220 = vmax.f32 %v2212, %v2216
    %s2221 = scalar_lea.vmem %s5, 1408
    %v2222 = vld [vmem:[%s2221] sm:$0xff]
    %v2223 = vld [vmem:[%s2221 + $0x8] sm:$0xff]
    %v2224 = vld [vmem:[%s2221 + $0x10] sm:$0xff]
    %v2225 = vld [vmem:[%s2221 + $0x18] sm:$0xff]
    %v2226 = vld [vmem:[%s2221 + $0x20] sm:$0xff]
    %v2227 = vld [vmem:[%s2221 + $0x28] sm:$0xff]
    %v2228 = vld [vmem:[%s2221 + $0x30] sm:$0xff]
    %v2229 = vld [vmem:[%s2221 + $0x38] sm:$0xff]
    %v2230 = vld [vmem:[%s2221 + $0x40] sm:$0xff]
    %v2231 = vld [vmem:[%s2221 + $0x48] sm:$0xff]
    %v2232 = vld [vmem:[%s2221 + $0x50] sm:$0xff]
    %v2233 = vld [vmem:[%s2221 + $0x58] sm:$0xff]
    %v2234 = vld [vmem:[%s2221 + $0x60] sm:$0xff]
    %v2235 = vld [vmem:[%s2221 + $0x68] sm:$0xff]
    %v2236 = vld [vmem:[%s2221 + $0x70] sm:$0xff]
    %v2237 = vld [vmem:[%s2221 + $0x78] sm:$0xff]
    %2240 = vst [vmem:[#allocation1] ss:$9 sm:$0xff] %v2219
    %s2241 = scalar_lea.vmem [#allocation1], 1
    %2242 = vst [vmem:[%s2241] ss:$9 sm:$0xff] %v2220
    %v2243 = vld [vmem:[#allocation1] sm:$0xff]
    %2245 = vmatpush.msra.mxu0 %v2237
    %2246 = vmatpush.msra.mxu0 %v2236
    %2247 = vmatpush.msra.mxu0 %v2235
    %2248 = vmatpush.msra.mxu0 %v2234
    %2249 = vmatpush.msra.mxu0 %v2233
    %2250 = vmatpush.msra.mxu0 %v2232
    %2251 = vmatpush.msra.mxu0 %v2231
    %2252 = vmatpush.msra.mxu0 %v2230
    %2253 = vmatpush.msra.mxu0 %v2229
    %2254 = vmatpush.msra.mxu0 %v2228
    %2255 = vmatpush.msra.mxu0 %v2227
    %2256 = vmatpush.msra.mxu0 %v2226
    %2257 = vmatpush.msra.mxu0 %v2225
    %2258 = vmatpush.msra.mxu0 %v2224
    %2259 = vmatpush.msra.mxu0 %v2223
    %2260 = vmatpush.msra.mxu0 %v2222
    %2261 = vmatmul.f32.gmra.mxu0 %v2243
    %v2262 = vpop.f32.mrf.mxu0
    %v2263 = vadd.f32 0.0, %v2262
    %2264 = vdwg.mxu0
    %v2265 = vadd.f32 %v2202, %v2263
    %s2266 = scalar_lea.vmem [#allocation4], 48
    %v2267 = vld [vmem:[%s2266] ss:$8 sm:$0x3]
    %s2268 = scalar_lea.vmem [#allocation4], 112
    %v2269 = vld [vmem:[%s2268] ss:$8 sm:$0x3]
    %s2270 = scalar_lea.vmem [#allocation4], 49
    %v2271 = vld [vmem:[%s2270] ss:$8 sm:$0x3]
    %s2272 = scalar_lea.vmem [#allocation4], 113
    %v2273 = vld [vmem:[%s2272] ss:$8 sm:$0x3]
    %v2274 = vmax.f32 %v2267, %v2271
    %v2275 = vmax.f32 %v2269, %v2273
    %v2278 = vrot.slane %v2274, 1
    %v2279 = vrot.slane %v2275, 1
    %v2282 = vmax.f32 %v2274, %v2278
    %v2283 = vmax.f32 %v2275, %v2279
    %s2284 = scalar_lea.vmem %s5, 1536
    %v2285 = vld [vmem:[%s2284] sm:$0xff]
    %v2286 = vld [vmem:[%s2284 + $0x8] sm:$0xff]
    %v2287 = vld [vmem:[%s2284 + $0x10] sm:$0xff]
    %v2288 = vld [vmem:[%s2284 + $0x18] sm:$0xff]
    %v2289 = vld [vmem:[%s2284 + $0x20] sm:$0xff]
    %v2290 = vld [vmem:[%s2284 + $0x28] sm:$0xff]
    %v2291 = vld [vmem:[%s2284 + $0x30] sm:$0xff]
    %v2292 = vld [vmem:[%s2284 + $0x38] sm:$0xff]
    %v2293 = vld [vmem:[%s2284 + $0x40] sm:$0xff]
    %v2294 = vld [vmem:[%s2284 + $0x48] sm:$0xff]
    %v2295 = vld [vmem:[%s2284 + $0x50] sm:$0xff]
    %v2296 = vld [vmem:[%s2284 + $0x58] sm:$0xff]
    %v2297 = vld [vmem:[%s2284 + $0x60] sm:$0xff]
    %v2298 = vld [vmem:[%s2284 + $0x68] sm:$0xff]
    %v2299 = vld [vmem:[%s2284 + $0x70] sm:$0xff]
    %v2300 = vld [vmem:[%s2284 + $0x78] sm:$0xff]
    %2303 = vst [vmem:[#allocation1] ss:$9 sm:$0xff] %v2282
    %s2304 = scalar_lea.vmem [#allocation1], 1
    %2305 = vst [vmem:[%s2304] ss:$9 sm:$0xff] %v2283
    %v2306 = vld [vmem:[#allocation1] sm:$0xff]
    %2308 = vmatpush.msra.mxu0 %v2300
    %2309 = vmatpush.msra.mxu0 %v2299
    %2310 = vmatpush.msra.mxu0 %v2298
    %2311 = vmatpush.msra.mxu0 %v2297
    %2312 = vmatpush.msra.mxu0 %v2296
    %2313 = vmatpush.msra.mxu0 %v2295
    %2314 = vmatpush.msra.mxu0 %v2294
    %2315 = vmatpush.msra.mxu0 %v2293
    %2316 = vmatpush.msra.mxu0 %v2292
    %2317 = vmatpush.msra.mxu0 %v2291
    %2318 = vmatpush.msra.mxu0 %v2290
    %2319 = vmatpush.msra.mxu0 %v2289
    %2320 = vmatpush.msra.mxu0 %v2288
    %2321 = vmatpush.msra.mxu0 %v2287
    %2322 = vmatpush.msra.mxu0 %v2286
    %2323 = vmatpush.msra.mxu0 %v2285
    %2324 = vmatmul.f32.gmra.mxu0 %v2306
    %v2325 = vpop.f32.mrf.mxu0
    %v2326 = vadd.f32 0.0, %v2325
    %2327 = vdwg.mxu0
    %v2328 = vadd.f32 %v2265, %v2326
    %s2329 = scalar_lea.vmem [#allocation4], 50
    %v2330 = vld [vmem:[%s2329] ss:$8 sm:$0x3]
    %s2331 = scalar_lea.vmem [#allocation4], 114
    %v2332 = vld [vmem:[%s2331] ss:$8 sm:$0x3]
    %s2333 = scalar_lea.vmem [#allocation4], 51
    %v2334 = vld [vmem:[%s2333] ss:$8 sm:$0x3]
    %s2335 = scalar_lea.vmem [#allocation4], 115
    %v2336 = vld [vmem:[%s2335] ss:$8 sm:$0x3]
    %v2337 = vmax.f32 %v2330, %v2334
    %v2338 = vmax.f32 %v2332, %v2336
    %v2341 = vrot.slane %v2337, 1
    %v2342 = vrot.slane %v2338, 1
    %v2345 = vmax.f32 %v2337, %v2341
    %v2346 = vmax.f32 %v2338, %v2342
    %s2347 = scalar_lea.vmem %s5, 1664
    %v2348 = vld [vmem:[%s2347] sm:$0xff]
    %v2349 = vld [vmem:[%s2347 + $0x8] sm:$0xff]
    %v2350 = vld [vmem:[%s2347 + $0x10] sm:$0xff]
    %v2351 = vld [vmem:[%s2347 + $0x18] sm:$0xff]
    %v2352 = vld [vmem:[%s2347 + $0x20] sm:$0xff]
    %v2353 = vld [vmem:[%s2347 + $0x28] sm:$0xff]
    %v2354 = vld [vmem:[%s2347 + $0x30] sm:$0xff]
    %v2355 = vld [vmem:[%s2347 + $0x38] sm:$0xff]
    %v2356 = vld [vmem:[%s2347 + $0x40] sm:$0xff]
    %v2357 = vld [vmem:[%s2347 + $0x48] sm:$0xff]
    %v2358 = vld [vmem:[%s2347 + $0x50] sm:$0xff]
    %v2359 = vld [vmem:[%s2347 + $0x58] sm:$0xff]
    %v2360 = vld [vmem:[%s2347 + $0x60] sm:$0xff]
    %v2361 = vld [vmem:[%s2347 + $0x68] sm:$0xff]
    %v2362 = vld [vmem:[%s2347 + $0x70] sm:$0xff]
    %v2363 = vld [vmem:[%s2347 + $0x78] sm:$0xff]
    %2366 = vst [vmem:[#allocation1] ss:$9 sm:$0xff] %v2345
    %s2367 = scalar_lea.vmem [#allocation1], 1
    %2368 = vst [vmem:[%s2367] ss:$9 sm:$0xff] %v2346
    %v2369 = vld [vmem:[#allocation1] sm:$0xff]
    %2371 = vmatpush.msra.mxu0 %v2363
    %2372 = vmatpush.msra.mxu0 %v2362
    %2373 = vmatpush.msra.mxu0 %v2361
    %2374 = vmatpush.msra.mxu0 %v2360
    %2375 = vmatpush.msra.mxu0 %v2359
    %2376 = vmatpush.msra.mxu0 %v2358
    %2377 = vmatpush.msra.mxu0 %v2357
    %2378 = vmatpush.msra.mxu0 %v2356
    %2379 = vmatpush.msra.mxu0 %v2355
    %2380 = vmatpush.msra.mxu0 %v2354
    %2381 = vmatpush.msra.mxu0 %v2353
    %2382 = vmatpush.msra.mxu0 %v2352
    %2383 = vmatpush.msra.mxu0 %v2351
    %2384 = vmatpush.msra.mxu0 %v2350
    %2385 = vmatpush.msra.mxu0 %v2349
    %2386 = vmatpush.msra.mxu0 %v2348
    %2387 = vmatmul.f32.gmra.mxu0 %v2369
    %v2388 = vpop.f32.mrf.mxu0
    %v2389 = vadd.f32 0.0, %v2388
    %2390 = vdwg.mxu0
    %v2391 = vadd.f32 %v2328, %v2389
    %s2392 = scalar_lea.vmem [#allocation4], 52
    %v2393 = vld [vmem:[%s2392] ss:$8 sm:$0x3]
    %s2394 = scalar_lea.vmem [#allocation4], 116
    %v2395 = vld [vmem:[%s2394] ss:$8 sm:$0x3]
    %s2396 = scalar_lea.vmem [#allocation4], 53
    %v2397 = vld [vmem:[%s2396] ss:$8 sm:$0x3]
    %s2398 = scalar_lea.vmem [#allocation4], 117
    %v2399 = vld [vmem:[%s2398] ss:$8 sm:$0x3]
    %v2400 = vmax.f32 %v2393, %v2397
    %v2401 = vmax.f32 %v2395, %v2399
    %v2404 = vrot.slane %v2400, 1
    %v2405 = vrot.slane %v2401, 1
    %v2408 = vmax.f32 %v2400, %v2404
    %v2409 = vmax.f32 %v2401, %v2405
    %s2410 = scalar_lea.vmem %s5, 1792
    %v2411 = vld [vmem:[%s2410] sm:$0xff]
    %v2412 = vld [vmem:[%s2410 + $0x8] sm:$0xff]
    %v2413 = vld [vmem:[%s2410 + $0x10] sm:$0xff]
    %v2414 = vld [vmem:[%s2410 + $0x18] sm:$0xff]
    %v2415 = vld [vmem:[%s2410 + $0x20] sm:$0xff]
    %v2416 = vld [vmem:[%s2410 + $0x28] sm:$0xff]
    %v2417 = vld [vmem:[%s2410 + $0x30] sm:$0xff]
    %v2418 = vld [vmem:[%s2410 + $0x38] sm:$0xff]
    %v2419 = vld [vmem:[%s2410 + $0x40] sm:$0xff]
    %v2420 = vld [vmem:[%s2410 + $0x48] sm:$0xff]
    %v2421 = vld [vmem:[%s2410 + $0x50] sm:$0xff]
    %v2422 = vld [vmem:[%s2410 + $0x58] sm:$0xff]
    %v2423 = vld [vmem:[%s2410 + $0x60] sm:$0xff]
    %v2424 = vld [vmem:[%s2410 + $0x68] sm:$0xff]
    %v2425 = vld [vmem:[%s2410 + $0x70] sm:$0xff]
    %v2426 = vld [vmem:[%s2410 + $0x78] sm:$0xff]
    %2429 = vst [vmem:[#allocation1] ss:$9 sm:$0xff] %v2408
    %s2430 = scalar_lea.vmem [#allocation1], 1
    %2431 = vst [vmem:[%s2430] ss:$9 sm:$0xff] %v2409
    %v2432 = vld [vmem:[#allocation1] sm:$0xff]
    %2434 = vmatpush.msra.mxu0 %v2426
    %2435 = vmatpush.msra.mxu0 %v2425
    %2436 = vmatpush.msra.mxu0 %v2424
    %2437 = vmatpush.msra.mxu0 %v2423
    %2438 = vmatpush.msra.mxu0 %v2422
    %2439 = vmatpush.msra.mxu0 %v2421
    %2440 = vmatpush.msra.mxu0 %v2420
    %2441 = vmatpush.msra.mxu0 %v2419
    %2442 = vmatpush.msra.mxu0 %v2418
    %2443 = vmatpush.msra.mxu0 %v2417
    %2444 = vmatpush.msra.mxu0 %v2416
    %2445 = vmatpush.msra.mxu0 %v2415
    %2446 = vmatpush.msra.mxu0 %v2414
    %2447 = vmatpush.msra.mxu0 %v2413
    %2448 = vmatpush.msra.mxu0 %v2412
    %2449 = vmatpush.msra.mxu0 %v2411
    %2450 = vmatmul.f32.gmra.mxu0 %v2432
    %v2451 = vpop.f32.mrf.mxu0
    %v2452 = vadd.f32 0.0, %v2451
    %2453 = vdwg.mxu0
    %v2454 = vadd.f32 %v2391, %v2452
    %s2455 = scalar_lea.vmem [#allocation4], 54
    %v2456 = vld [vmem:[%s2455] ss:$8 sm:$0x3]
    %s2457 = scalar_lea.vmem [#allocation4], 118
    %v2458 = vld [vmem:[%s2457] ss:$8 sm:$0x3]
    %s2459 = scalar_lea.vmem [#allocation4], 55
    %v2460 = vld [vmem:[%s2459] ss:$8 sm:$0x3]
    %s2461 = scalar_lea.vmem [#allocation4], 119
    %v2462 = vld [vmem:[%s2461] ss:$8 sm:$0x3]
    %v2463 = vmax.f32 %v2456, %v2460
    %v2464 = vmax.f32 %v2458, %v2462
    %v2467 = vrot.slane %v2463, 1
    %v2468 = vrot.slane %v2464, 1
    %v2471 = vmax.f32 %v2463, %v2467
    %v2472 = vmax.f32 %v2464, %v2468
    %s2473 = scalar_lea.vmem %s5, 1920
    %v2474 = vld [vmem:[%s2473] sm:$0xff]
    %v2475 = vld [vmem:[%s2473 + $0x8] sm:$0xff]
    %v2476 = vld [vmem:[%s2473 + $0x10] sm:$0xff]
    %v2477 = vld [vmem:[%s2473 + $0x18] sm:$0xff]
    %v2478 = vld [vmem:[%s2473 + $0x20] sm:$0xff]
    %v2479 = vld [vmem:[%s2473 + $0x28] sm:$0xff]
    %v2480 = vld [vmem:[%s2473 + $0x30] sm:$0xff]
    %v2481 = vld [vmem:[%s2473 + $0x38] sm:$0xff]
    %v2482 = vld [vmem:[%s2473 + $0x40] sm:$0xff]
    %v2483 = vld [vmem:[%s2473 + $0x48] sm:$0xff]
    %v2484 = vld [vmem:[%s2473 + $0x50] sm:$0xff]
    %v2485 = vld [vmem:[%s2473 + $0x58] sm:$0xff]
    %v2486 = vld [vmem:[%s2473 + $0x60] sm:$0xff]
    %v2487 = vld [vmem:[%s2473 + $0x68] sm:$0xff]
    %v2488 = vld [vmem:[%s2473 + $0x70] sm:$0xff]
    %v2489 = vld [vmem:[%s2473 + $0x78] sm:$0xff]
    %2492 = vst [vmem:[#allocation1] ss:$9 sm:$0xff] %v2471
    %s2493 = scalar_lea.vmem [#allocation1], 1
    %2494 = vst [vmem:[%s2493] ss:$9 sm:$0xff] %v2472
    %v2495 = vld [vmem:[#allocation1] sm:$0xff]
    %2497 = vmatpush.msra.mxu0 %v2489
    %2498 = vmatpush.msra.mxu0 %v2488
    %2499 = vmatpush.msra.mxu0 %v2487
    %2500 = vmatpush.msra.mxu0 %v2486
    %2501 = vmatpush.msra.mxu0 %v2485
    %2502 = vmatpush.msra.mxu0 %v2484
    %2503 = vmatpush.msra.mxu0 %v2483
    %2504 = vmatpush.msra.mxu0 %v2482
    %2505 = vmatpush.msra.mxu0 %v2481
    %2506 = vmatpush.msra.mxu0 %v2480
    %2507 = vmatpush.msra.mxu0 %v2479
    %2508 = vmatpush.msra.mxu0 %v2478
    %2509 = vmatpush.msra.mxu0 %v2477
    %2510 = vmatpush.msra.mxu0 %v2476
    %2511 = vmatpush.msra.mxu0 %v2475
    %2512 = vmatpush.msra.mxu0 %v2474
    %2513 = vmatmul.f32.gmra.mxu0 %v2495
    %v2514 = vpop.f32.mrf.mxu0
    %v2515 = vadd.f32 0.0, %v2514
    %2516 = vdwg.mxu0
    %v2517 = vadd.f32 %v2454, %v2515
    %v2518 = vld [vmem:[%s6] sm:$0x1]
    %v2520 = vperm.slane %v2518, 0
    %v2522 = vadd.f32 %v2517, %v2520
    %v2523 = vmax.f32 %v2522, 0.0
    %v2524 = vld [vmem:[%s7] sm:$0xff]
    %v2525 = vld [vmem:[%s7 + $0x8] sm:$0xff]
    %v2526 = vld [vmem:[%s7 + $0x10] sm:$0xff]
    %v2527 = vld [vmem:[%s7 + $0x18] sm:$0xff]
    %v2528 = vld [vmem:[%s8] sm:$0x1]
    %v2530 = vperm.slane %v2528, 0
    %vm2532 = vcmask 261120
    %v2534 = vsel %vm2532, %v2523, 0
    %2536 = vmatpush.msra.mxu0 0.0
    %2537 = vmatpush.msra.mxu0 0.0
    %2538 = vmatpush.msra.mxu0 0.0
    %2539 = vmatpush.msra.mxu0 0.0
    %2540 = vmatpush.msra.mxu0 0.0
    %2541 = vmatpush.msra.mxu0 0.0
    %2542 = vmatpush.msra.mxu0 0.0
    %2543 = vmatpush.msra.mxu0 0.0
    %2544 = vmatpush.msra.mxu0 0.0
    %2545 = vmatpush.msra.mxu0 0.0
    %2546 = vmatpush.msra.mxu0 0.0
    %2547 = vmatpush.msra.mxu0 0.0
    %2548 = vmatpush.msra.mxu0 %v2527
    %2549 = vmatpush.msra.mxu0 %v2526
    %2550 = vmatpush.msra.mxu0 %v2525
    %2551 = vmatpush.msra.mxu0 %v2524
    %2552 = vmatmul.f32.gmra.mxu0 %v2534
    %v2553 = vpop.f32.mrf.mxu0
    %v2554 = vadd.f32 %v2530, %v2553
    %2555 = vdwg.mxu0
    %v2556 = vmax.f32 %v2554, 0.0
    %v2557 = vld [vmem:[%s9] sm:$0xff]
    %v2558 = vld [vmem:[%s9 + $0x8] sm:$0xff]
    %v2559 = vld [vmem:[%s9 + $0x10] sm:$0xff]
    %v2560 = vld [vmem:[%s9 + $0x18] sm:$0xff]
    %v2561 = vld [vmem:[%s10] sm:$0x1]
    %v2563 = vperm.slane %v2561, 0
    %v2566 = vsel %vm2532, %v2556, 0
    %2568 = vmatpush.msra.mxu0 0.0
    %2569 = vmatpush.msra.mxu0 0.0
    %2570 = vmatpush.msra.mxu0 0.0
    %2571 = vmatpush.msra.mxu0 0.0
    %2572 = vmatpush.msra.mxu0 0.0
    %2573 = vmatpush.msra.mxu0 0.0
    %2574 = vmatpush.msra.mxu0 0.0
    %2575 = vmatpush.msra.mxu0 0.0
    %2576 = vmatpush.msra.mxu0 0.0
    %2577 = vmatpush.msra.mxu0 0.0
    %2578 = vmatpush.msra.mxu0 0.0
    %2579 = vmatpush.msra.mxu0 0.0
    %2580 = vmatpush.msra.mxu0 %v2560
    %2581 = vmatpush.msra.mxu0 %v2559
    %2582 = vmatpush.msra.mxu0 %v2558
    %2583 = vmatpush.msra.mxu0 %v2557
    %2584 = vmatmul.f32.gmra.mxu0 %v2566
    %v2585 = vpop.f32.mrf.mxu0
    %v2586 = vadd.f32 %v2563, %v2585
    %2587 = vdwg.mxu0
    %v2588 = vmul.f32 %v2586, %v2586
    %vm2589 = vcmask 123904
    %v2590 = vsel %vm2589, %v2588, 0.0
    %2591 = vadd.xlane.f32.xlu0 %v2590
    %v2592 = vpop.xlane.xlu0 %2591
    %v2593 = vmax.f32 %v2592, 1e-24
    %v2594 = vrsqrt.pop %v2593
    %v2595 = vmul.f32 %v2594, %v2593
    %v2596 = vmul.f32 %v2595, %v2594
    %v2597 = vmul.f32 0.5, %v2596
    %v2598 = vsub.f32 1.5, %v2597
    %v2599 = vmul.f32 %v2594, %v2598
    %vm2600 = vweird.f32 %v2593
    %vm2601 = vweird.f32 %v2594
    %vm2602 = vmor %vm2600, %vm2601
    %v2603 = vsel %vm2602, %v2594, %v2599
    %v2604 = vmul.f32 %v2586, %v2603
    %2605 = vst.msk [vmem:[#allocation5] sm:$0x3] %vm2589, %v2604
    // Predicated region
    $region46: #{_forward_pair.3} parent=1 // pred_check
      _
    $region47: #{_forward_pair.3} parent=1 // pred_check_branch
      %2607 = sbr.rel (0) target = $region49
    $region48: #{_forward_pair.3} parent=1 // pred_region
      %2609 = vsyncadd [#allocation6], 0
      %s2611 = sshll.u32 [#allocation5], 4
      %s2612 = int_to_ptr.vmem [resolvable:$true] %s2611
      %s2613 = sshll.u32 %s11, 4
      %s2614 = int_to_ptr.hbm [resolvable:$true] %s2613
      %2616 = dma.vmem_to_hbm [thread:$0]  %s2612, 32, %s2614, [#allocation6]
    $region49: #{_forward_pair.3} parent=1 // pred_fallthru
      _
    // Predicated region
    $region50: #{_forward_pair.3} parent=1 // pred_check
      _
    $region51: #{_forward_pair.3} parent=1 // pred_check_branch
      %2618 = sbr.rel (0) target = $region53
    $region52: #{_forward_pair.3} parent=1 // pred_region
      %2620 = dma.done [#allocation6], 32
    $region53: #{_forward_pair.3} parent=1 // pred_fallthru
      _
    %2621 = vsyncpa [#allocation6], 1

</llo_original>
